<compile_context>
chip_gen: v5e
topology: v5e:2x2
jax: 0.10.0
libtpu: 0.0.40
codegen_flags: <defaults>
</compile_context>

<pallas_src>
import jax
import jax.numpy as jnp
from jax import lax
from jax.experimental import pallas as pl
from jax.experimental.pallas import tpu as pltpu

EPS = 1e-5  # PyTorch GroupNorm default eps


def _vmem_limit_bytes(cap_bytes=64 * 1024 * 1024, default=32 * 1024 * 1024):
    """Per-generation VMEM budget: half of physical VMEM, capped (v7x has 64 MiB)."""
    try:
        info = pltpu.get_tpu_info()
        vmem = getattr(info, "vmem_capacity_bytes", None)
        if vmem is None:
            return default
        return int(min(vmem // 2, cap_bytes))
    except Exception:
        return default


# ============================================================================
# Kernel 1: InterViewAAModule (self.omega)
# ============================================================================
# Packed omega parameter layout: ONE (OM_ROWS, 4) f32 VMEM block.
OM_CONV = 0        # rows 0..143 : conv3x3 weights, row = (dy*3+dx)*16 + c, col = out-ch
OM_WA = 144        # rows 144..147: resblock conv_a (1x1) transposed [c, o]
OM_WB = 152        # rows 152..155: resblock conv_b (1x1) transposed [c, o]
OM_B1, OM_G1, OM_BE1 = 160, 161, 162
OM_BA, OM_GA, OM_BEA = 163, 164, 165
OM_BB, OM_GB, OM_BEB = 166, 167, 168
OM_WF, OM_BF = 169, 170
OM_ROWS = 176      # padded to a multiple of 8


def pack_omega_params(p):
    f32 = jnp.float32
    # (O, I, KH, KW) -> (KH, KW, I, O) flattened to (144, 4)
    wt = jnp.transpose(p['w1'], (2, 3, 1, 0)).reshape(144, 4)
    z4 = jnp.zeros((4, 4), f32)
    vec = jnp.stack([p['b1'], p['g1'], p['be1'],
                     p['ba'], p['ga'], p['bea'],
                     p['bb'], p['gb'], p['beb'],
                     p['wf']], axis=0)                              # rows 160..169
    bf_row = jnp.pad(p['bf'][None, :], ((0, 0), (0, 3)))            # row 170
    P = jnp.concatenate([wt,
                         jnp.transpose(p['wa']), z4,
                         jnp.transpose(p['wb']), z4,
                         vec, bf_row,
                         jnp.zeros((OM_ROWS - 171, 4), f32)], axis=0)
    assert P.shape == (OM_ROWS, 4)
    return P.astype(f32)


def make_omega_kernel(H, W):
    f32, bf16 = jnp.float32, jnp.bfloat16
    HW = H * W
    inv_n = 1.0 / (4.0 * HW)   # GroupNorm(1, 4) normalizes over C*H*W of one sample

    def kernel(x_ref, p_ref, o_ref):
        # x_ref: (1, H+2, W+2, 16) bf16 halo image (HWC), p_ref: (OM_ROWS, 4) f32,
        # o_ref: (1, H*W, 1) f32
        x = x_ref[0]

        # Hoist the 3 dx-shifted column views: the unaligned sublane shift is
        # materialized once per dx (3x) instead of once per tap per channel.
        xcols = []
        for dx in range(3):
            v = x[:, dx:dx + W, :]                       # (H+2, W, 16)
            xcols.append(v.reshape((H + 2) * W, 16))     # row index = h * W + w

        # conv3x3 (16 -> 4) as 9 per-tap MXU matmuls with f32 accumulation.
        acc = jnp.zeros((HW, 4), f32)
        for dy in range(3):
            r0 = dy * W
            for dx in range(3):
                tap = xcols[dx][r0:r0 + HW]              # (HW, 16) bf16
                w0 = OM_CONV + (dy * 3 + dx) * 16
                w_tap = p_ref[w0:w0 + 16, :].astype(bf16)
                acc = acc + jnp.dot(tap, w_tap, preferred_element_type=f32)

        def gn(y, g_row, b_row, relu):
            # GroupNorm(num_groups=1): stats over all channels & pixels of the sample.
            mu = jnp.sum(y, keepdims=True) * inv_n
            d = y - mu
            var = jnp.sum(d * d, keepdims=True) * inv_n
            out = d * lax.rsqrt(var + EPS) * p_ref[g_row:g_row + 1, :] \
                + p_ref[b_row:b_row + 1, :]
            return jnp.maximum(out, 0.0) if relu else out

        y1 = gn(acc + p_ref[OM_B1:OM_B1 + 1, :], OM_G1, OM_BE1, relu=True)

        # ResnetBlockGn(4, kernel_size=1): two 1x1 convs = (HW,4)@(4,4) matmuls.
        r = jnp.dot(y1, p_ref[OM_WA:OM_WA + 4, :], preferred_element_type=f32) \
            + p_ref[OM_BA:OM_BA + 1, :]
        r = gn(r, OM_GA, OM_BEA, relu=True)
        r = jnp.dot(r, p_ref[OM_WB:OM_WB + 4, :], preferred_element_type=f32) \
            + p_ref[OM_BB:OM_BB + 1, :]
        r = gn(r, OM_GB, OM_BEB, relu=False)
        y2 = jnp.maximum(r + y1, 0.0)

        # final conv1x1 (4 -> 1) + sigmoid
        out = jnp.sum(y2 * p_ref[OM_WF:OM_WF + 1, :], axis=1, keepdims=True) \
            + p_ref[OM_BF:OM_BF + 1, 0:1]
        o_ref[0] = jax.nn.sigmoid(out)

    return kernel


def omega_forward(p, x_nchw):
    """InterViewAAModule.forward. x: (B,16,H,W) NCHW f32 -> (B, H*W, 1) f32.
    (PyTorch returns (B,1,H,W); here the map is returned flattened per pixel.)"""
    B, C, H, W = x_nchw.shape
    assert C == 16
    assert W % 8 == 0  # TODO(synk): general W needs a relayout-aware tap path
    # One fused XLA transpose+pad+cast pass (TODO(synk): fuse into the producer).
    xh = jnp.pad(jnp.transpose(x_nchw, (0, 2, 3, 1)).astype(jnp.bfloat16),
                 ((0, 0), (1, 1), (1, 1), (0, 0)))
    P = pack_omega_params(p)
    return pl.pallas_call(
        make_omega_kernel(H, W),
        out_shape=jax.ShapeDtypeStruct((B, H * W, 1), jnp.float32),
        grid=(B,),
        in_specs=[pl.BlockSpec((1, H + 2, W + 2, 16), lambda b: (b, 0, 0, 0)),
                  pl.BlockSpec((OM_ROWS, 4), lambda b: (0, 0))],
        out_specs=pl.BlockSpec((1, H * W, 1), lambda b: (b, 0, 0)),
        compiler_params=pltpu.CompilerParams(
            dimension_semantics=("parallel",),
            vmem_limit_bytes=_vmem_limit_bytes()),
    )(xh, P)


def omega_reference(p, x_nchw):
    """Pure-JAX reference mirroring the kernel numerics (bf16 image + bf16 conv
    weights, f32 math everywhere else).  Returns (B, H*W, 1)."""
    hp = lax.Precision.HIGHEST
    x = x_nchw.astype(jnp.bfloat16).astype(jnp.float32)
    w1 = p['w1'].astype(jnp.bfloat16).astype(jnp.float32)

    def gnrm(t, g, b):
        mu = jnp.mean(t, axis=(1, 2, 3), keepdims=True)
        var = jnp.mean((t - mu) ** 2, axis=(1, 2, 3), keepdims=True)
        return (t - mu) * lax.rsqrt(var + EPS) * g.reshape(1, -1, 1, 1) + b.reshape(1, -1, 1, 1)

    y = lax.conv_general_dilated(x, w1, (1, 1), 'SAME',
                                 dimension_numbers=('NCHW', 'OIHW', 'NCHW'),
                                 precision=hp) + p['b1'].reshape(1, 4, 1, 1)
    y = jax.nn.relu(gnrm(y, p['g1'], p['be1']))
    r = jnp.einsum('oc,bchw->bohw', p['wa'], y, precision=hp) + p['ba'].reshape(1, 4, 1, 1)
    r = jax.nn.relu(gnrm(r, p['ga'], p['bea']))
    r = jnp.einsum('oc,bchw->bohw', p['wb'], r, precision=hp) + p['bb'].reshape(1, 4, 1, 1)
    r = gnrm(r, p['gb'], p['beb'])
    y = jax.nn.relu(r + y)
    out = jax.nn.sigmoid(jnp.einsum('c,bchw->bhw', p['wf'], y, precision=hp) + p['bf'][0])
    B, H, W = out.shape
    return out.reshape(B, H * W, 1)


# ============================================================================
# Kernel 2: the fusion head at the end of Network.forward
# ============================================================================
# Packed weight-matrix layout (rows, 8-aligned starts; 64 columns, zero-padded).
R_W1, R_W2, R_WOA, R_WOB, R_WN = 0, 64, 128, 192, 208
R_WR1, R_WR2, R_WN1, R_WN2, R_TOT = 304, 320, 336, 352, 368
# Packed bias rows.
B_B1, B_B2, B_BO, B_BN, B_BR1, B_BR2, B_BN1, B_BN2 = range(8)


def pack_head_weights(p):
    W = jnp.zeros((R_TOT, 64), jnp.float32)

    def put(W, r, m):
        k, n = m.shape
        return W.at[r:r + k, 0:n].set(m)

    W = put(W, R_W1, p['w1'])      # (64, 64)
    W = put(W, R_W2, p['w2'])      # (64, 3)
    W = put(W, R_WOA, p['woa'])    # (64, 8)
    W = put(W, R_WOB, p['wob'])    # (3, 8)
    W = put(W, R_WN, p['wn'])      # (91, 8)  rows 91..95 stay zero (VMEM-only K padding)
    W = put(W, R_WR1, p['wr1'])    # (8, 16)
    W = put(W, R_WR2, p['wr2'])    # (16, 1)
    W = put(W, R_WN1, p['wn1'])    # (8, 16)
    W = put(W, R_WN2, p['wn2'])    # (16, 1)

    Bv = jnp.zeros((8, 64), jnp.float32)
    for row, name in [(B_B1, 'b1'), (B_B2, 'b2'), (B_BO, 'bo'), (B_BN, 'bn'),
                      (B_BR1, 'br1'), (B_BR2, 'br2'), (B_BN1, 'bn1'), (B_BN2, 'bn2')]:
        v = p[name]
        Bv = Bv.at[row, 0:v.shape[0]].set(v)
    return W.astype(jnp.bfloat16), Bv


def make_head_kernel(n_src):
    f32, bf16 = jnp.float32, jnp.bfloat16

    def kernel(fr_ref, fn_ref, wv_ref, w_ref, b_ref, o_ref):
        # fr_ref (1,T,64) f32, fn_ref (1,T,91) f32, wv_ref (1,T,S*8) f32,
        # w_ref (R_TOT,64) bf16, b_ref (8,64) f32, o_ref (1,T,8) f32
        fn32 = fn_ref[0]
        fr = fr_ref[0].astype(bf16)          # in-kernel cast: no extra wrapper HBM pass
        fn = fn32.astype(bf16)
        # rgb_nf is the last 3 channels of fea_nf (fea_nf = cat(fea_transmit, rgb)),
        # kept in exact f32.
        rgb_nf = fn32[:, 88:91]

        # color_rf: Linear(64,64)+ReLU+Linear(64,3)+Sigmoid
        h = jnp.dot(fr, w_ref[R_W1:R_W1 + 64, 0:64],
                    preferred_element_type=f32) + b_ref[B_B1:B_B1 + 1, 0:64]
        h = jnp.maximum(h, 0.0)
        rgb_rf = jax.nn.sigmoid(
            jnp.dot(h.astype(bf16), w_ref[R_W2:R_W2 + 64, 0:3],
                    preferred_element_type=f32) + b_ref[B_B2:B_B2 + 1, 0:3])

        # out_rf on cat(fea_rf, rgb_rf): split matmul == concat
        frf8 = jnp.maximum(
            jnp.dot(fr, w_ref[R_WOA:R_WOA + 64, 0:8], preferred_element_type=f32)
            + jnp.dot(rgb_rf.astype(bf16), w_ref[R_WOB:R_WOB + 3, 0:8],
                      preferred_element_type=f32)
            + b_ref[B_BO:B_BO + 1, 0:8], 0.0)

        # out_nf: K padded 91 -> 96 in VMEM only (weight rows 91..95 are zero)
        fn96 = jnp.concatenate([fn, jnp.zeros((fn.shape[0], 5), bf16)], axis=-1)
        fnf8 = jnp.maximum(
            jnp.dot(fn96, w_ref[R_WN:R_WN + 96, 0:8], preferred_element_type=f32)
            + b_ref[B_BN:B_BN + 1, 0:8], 0.0)

        # cost volumes: direct sum_s (f - w_s)^2 in f32 (robust to cancellation;
        # VALU has slack on a mem-bound kernel).
        # TODO(synk): if n_src grows large, pre-reduce warped upstream to keep the
        # input traffic S-independent.
        wv = wv_ref[0]
        vol_rf = jnp.zeros_like(frf8)
        vol_nf = jnp.zeros_like(fnf8)
        for s in range(n_src):
            ws = wv[:, s * 8:(s + 1) * 8]
            dr = frf8 - ws
            dn = fnf8 - ws
            vol_rf = vol_rf + dr * dr
            vol_nf = vol_nf + dn * dn

        def wgt_head(vol, rw1, rb1, rw2, rb2):
            hh = jnp.maximum(
                jnp.dot(vol.astype(bf16), w_ref[rw1:rw1 + 8, 0:16],
                        preferred_element_type=f32) + b_ref[rb1:rb1 + 1, 0:16], 0.0)
            return jax.nn.sigmoid(
                jnp.dot(hh.astype(bf16), w_ref[rw2:rw2 + 16, 0:1],
                        preferred_element_type=f32) + b_ref[rb2:rb2 + 1, 0:1])

        lr = wgt_head(vol_rf, R_WR1, B_BR1, R_WR2, B_BR2)
        ln = wgt_head(vol_nf, R_WN1, B_BN1, R_WN2, B_BN2)

        # 2-way softmax over (w_nf, w_rf) == sigmoid of the difference:
        # exact, divide-free (EUP), keeps the VALU slot clear.
        w_nf = jax.nn.sigmoid(ln - lr)
        w_rf = jax.nn.sigmoid(lr - ln)
        rgb = w_nf * rgb_nf + w_rf * rgb_rf
        # TODO(synk): cfg.gefu.reweighting would further average rgb with rgb_nf; cfg not provided.

        # single concatenated dense store: [rgb(3) | w_nf(1) | w_rf(1) | rgb_rf(3)]
        # TODO(synk): a (B, 8, HW) lane-dense layout (in-kernel transpose) would further
        # relieve the vst slot; the output is only ~4% of the tile's HBM traffic, so the
        # packed single store is kept for lowering robustness.
        o_ref[0] = jnp.concatenate([rgb, w_nf, w_rf, rgb_rf], axis=-1)

    return kernel


def head_forward(p, fea_rf, fea_nf, warped_packed, *, tile_hw=None):
    """Fusion head.
    fea_rf (B,HW,64) f32, fea_nf (B,HW,91) f32 (= cat(fea_transmit, rgb_nf)),
    warped_packed (B,HW,S*8) f32.  Returns (rgb, w_nf, w_rf, rgb_rf), each (B,HW,C)."""
    B, HW, Cr = fea_rf.shape
    assert Cr == 64 and fea_nf.shape[-1] == 91
    S8 = warped_packed.shape[-1]
    assert S8 % 8 == 0
    n_src = S8 // 8
    if tile_hw is None:
        tile_hw = HW if HW <= 8192 else 8192
    assert HW % tile_hw == 0 and tile_hw % 8 == 0

    Wp, Bp = pack_head_weights(p)
    n_tiles = HW // tile_hw

    out = pl.pallas_call(
        make_head_kernel(n_src),
        out_shape=jax.ShapeDtypeStruct((B, HW, 8), jnp.float32),
        grid=(B, n_tiles),
        in_specs=[pl.BlockSpec((1, tile_hw, 64), lambda b, t: (b, t, 0)),
                  pl.BlockSpec((1, tile_hw, 91), lambda b, t: (b, t, 0)),
                  pl.BlockSpec((1, tile_hw, S8), lambda b, t: (b, t, 0)),
                  pl.BlockSpec((R_TOT, 64), lambda b, t: (0, 0)),
                  pl.BlockSpec((8, 64), lambda b, t: (0, 0))],
        out_specs=pl.BlockSpec((1, tile_hw, 8), lambda b, t: (b, t, 0)),
        compiler_params=pltpu.CompilerParams(
            dimension_semantics=("parallel", "parallel"),
            vmem_limit_bytes=_vmem_limit_bytes()),
    )(fea_rf, fea_nf, warped_packed, Wp, Bp)

    return out[..., 0:3], out[..., 3:4], out[..., 4:5], out[..., 5:8]


def head_reference_mirror(p, fea_rf, fea_nf, warped_packed, n_src):
    """Pure-JAX mirror of the kernel numerics (bf16 matmul inputs, f32 accumulation,
    f32 cost volumes, sigmoid-difference softmax)."""
    f32, bf16 = jnp.float32, jnp.bfloat16
    fr = fea_rf.astype(bf16)
    fn = fea_nf.astype(bf16)
    rgb_nf = fea_nf[..., 88:91]
    W = {k: p[k].astype(bf16) for k in
         ['w1', 'w2', 'woa', 'wob', 'wn', 'wr1', 'wr2', 'wn1', 'wn2']}

    h = jnp.maximum(jnp.dot(fr, W['w1'], preferred_element_type=f32) + p['b1'], 0.0)
    rgb_rf = jax.nn.sigmoid(jnp.dot(h.astype(bf16), W['w2'], preferred_element_type=f32) + p['b2'])
    frf8 = jnp.maximum(jnp.dot(fr, W['woa'], preferred_element_type=f32)
                       + jnp.dot(rgb_rf.astype(bf16), W['wob'], preferred_element_type=f32)
                       + p['bo'], 0.0)
    fnf8 = jnp.maximum(jnp.dot(fn, W['wn'], preferred_element_type=f32) + p['bn'], 0.0)

    vol_rf = jnp.zeros_like(frf8)
    vol_nf = jnp.zeros_like(fnf8)
    for s in range(n_src):
        ws = warped_packed[..., s * 8:(s + 1) * 8]
        vol_rf = vol_rf + (frf8 - ws) ** 2
        vol_nf = vol_nf + (fnf8 - ws) ** 2

    def wgt(vol, a, ba, b, bb):
        hh = jnp.maximum(jnp.dot(vol.astype(bf16), a, preferred_element_type=f32) + ba, 0.0)
        return jax.nn.sigmoid(jnp.dot(hh.astype(bf16), b, preferred_element_type=f32) + bb)

    lr = wgt(vol_rf, W['wr1'], p['br1'], W['wr2'], p['br2'])
    ln = wgt(vol_nf, W['wn1'], p['bn1'], W['wn2'], p['bn2'])
    w_nf = jax.nn.sigmoid(ln - lr)
    w_rf = jax.nn.sigmoid(lr - ln)
    return w_nf * rgb_nf + w_rf * rgb_rf, w_nf, w_rf, rgb_rf


def head_reference_f32(p, fea_rf, fea_nf, warped_packed, n_src):
    """Faithful full-f32 reference of the PyTorch fusion head."""
    hp = lax.Precision.HIGHEST
    rgb_nf = fea_nf[..., 88:91]
    h = jax.nn.relu(jnp.dot(fea_rf, p['w1'], precision=hp) + p['b1'])
    rgb_rf = jax.nn.sigmoid(jnp.dot(h, p['w2'], precision=hp) + p['b2'])
    cat_rf = jnp.concatenate([fea_rf, rgb_rf], axis=-1)
    w_o = jnp.concatenate([p['woa'], p['wob']], axis=0)
    frf8 = jax.nn.relu(jnp.dot(cat_rf, w_o, precision=hp) + p['bo'])
    fnf8 = jax.nn.relu(jnp.dot(fea_nf, p['wn'], precision=hp) + p['bn'])
    vol_rf, vol_nf = 0.0, 0.0
    for s in range(n_src):
        ws = warped_packed[..., s * 8:(s + 1) * 8]
        vol_rf = vol_rf + (frf8 - ws) ** 2
        vol_nf = vol_nf + (fnf8 - ws) ** 2
    lr = jax.nn.sigmoid(jnp.dot(jax.nn.relu(jnp.dot(vol_rf, p['wr1'], precision=hp) + p['br1']),
                                p['wr2'], precision=hp) + p['br2'])
    ln = jax.nn.sigmoid(jnp.dot(jax.nn.relu(jnp.dot(vol_nf, p['wn1'], precision=hp) + p['bn1']),
                                p['wn2'], precision=hp) + p['bn2'])
    w = jax.nn.softmax(jnp.concatenate([ln, lr], axis=-1), axis=-1)
    w_nf, w_rf = w[..., 0:1], w[..., 1:2]
    return w_nf * rgb_nf + w_rf * rgb_rf, w_nf, w_rf, rgb_rf


# ============================================================================
# Deterministic parameter construction + driver
# ============================================================================
def _init(key, shape, scale=0.1):
    return scale * jax.random.normal(key, shape, jnp.float32)


def make_params(key):
    ks = iter(jax.random.split(key, 64))
    omega = dict(
        w1=_init(next(ks), (4, 16, 3, 3)),
        b1=_init(next(ks), (4,), 0.01),
        g1=1.0 + _init(next(ks), (4,)), be1=_init(next(ks), (4,), 0.05),
        wa=_init(next(ks), (4, 4), 0.3), ba=_init(next(ks), (4,), 0.01),
        ga=1.0 + _init(next(ks), (4,)), bea=_init(next(ks), (4,), 0.05),
        wb=_init(next(ks), (4, 4), 0.3), bb=_init(next(ks), (4,), 0.01),
        gb=1.0 + _init(next(ks), (4,)), beb=_init(next(ks), (4,), 0.05),
        wf=_init(next(ks), (4,), 0.3), bf=_init(next(ks), (1,), 0.01),
    )
    head = dict(
        w1=_init(next(ks), (64, 64)), b1=_init(next(ks), (64,), 0.01),
        w2=_init(next(ks), (64, 3)), b2=_init(next(ks), (3,), 0.01),
        woa=_init(next(ks), (64, 8)), wob=_init(next(ks), (3, 8)), bo=_init(next(ks), (8,), 0.01),
        wn=_init(next(ks), (91, 8)), bn=_init(next(ks), (8,), 0.01),
        wr1=_init(next(ks), (8, 16)), br1=_init(next(ks), (16,), 0.01),
        wr2=_init(next(ks), (16, 1)), br2=_init(next(ks), (1,), 0.01),
        wn1=_init(next(ks), (8, 16)), bn1=_init(next(ks), (16,), 0.01),
        wn2=_init(next(ks), (16, 1)), bn2=_init(next(ks), (1,), 0.01),
    )
    return omega, head


if __name__ == "__main__":
    key = jax.random.PRNGKey(0)
    B, S, H, W = 2, 3, 16, 16
    HW = H * W
    pkey, dkey = jax.random.split(key)
    omega_p, head_p = make_params(pkey)

    dks = jax.random.split(dkey, 5)
    x_omega = jax.random.normal(dks[0], (B, 16, H, W), jnp.float32)        # NCHW, as in PyTorch
    fea_rf = jax.random.normal(dks[1], (B, HW, 64), jnp.float32)           # AutoEncoder output stand-in
    fea_transmit = jax.random.normal(dks[2], (B, HW, 88), jnp.float32)     # NeRF fea_transmit stand-in
    rgb_nf_in = jax.nn.sigmoid(jax.random.normal(dks[3], (B, HW, 3), jnp.float32))
    fea_nf = jnp.concatenate([fea_transmit, rgb_nf_in], axis=-1)           # (B, HW, 91)
    warped = jax.random.normal(dks[4], (B, HW, S * 8), jnp.float32)        # homo_warp outputs, lane-packed

    omega_out = omega_forward(omega_p, x_omega)                            # (B, HW, 1)
    rgb, w_nf, w_rf, rgb_rf = head_forward(head_p, fea_rf, fea_nf, warped, tile_hw=128)
    jax.block_until_ready((omega_out, rgb, w_nf, w_rf, rgb_rf))

    # --- tight checks: Pallas lowering vs pure-JAX mirror of the same numerics ---
    om_ref = omega_reference(omega_p, x_omega)
    assert jnp.allclose(omega_out, om_ref, atol=2e-3, rtol=2e-3), \
        ("omega", float(jnp.max(jnp.abs(omega_out - om_ref))))

    ref = head_reference_mirror(head_p, fea_rf, fea_nf, warped, S)
    for got, want, name in zip((rgb, w_nf, w_rf, rgb_rf), ref, ("rgb", "w_nf", "w_rf", "rgb_rf")):
        assert jnp.allclose(got, want, atol=5e-4, rtol=5e-4), \
            (name, float(jnp.max(jnp.abs(got - want))))

    # --- loose check: semantic fidelity vs full-f32 PyTorch-equivalent formula
    #     (difference is bounded by the bf16 matmul-input quantization) ---
    ref32 = head_reference_f32(head_p, fea_rf, fea_nf, warped, S)
    for got, want, name in zip((rgb, w_nf, w_rf, rgb_rf), ref32, ("rgb", "w_nf", "w_rf", "rgb_rf")):
        assert jnp.allclose(got, want, atol=0.1, rtol=0.1), \
            (name, float(jnp.max(jnp.abs(got - want))))

    print("KERNEL_OK")
</pallas_src>

<mosaic_0001>
module attributes {stable_mosaic.version = 11 : i64} {
  func.func @kernel(%arg0: i32, %arg1: memref<1x18x18x16xbf16, #tpu.memory_space<vmem>>, %arg2: memref<176x4xf32, #tpu.memory_space<vmem>>, %arg3: memref<1x256x1xf32, #tpu.memory_space<vmem>>) attributes {dimension_semantics = [#tpu.dimension_semantics<parallel>], iteration_bounds = array<i64: 2>, scalar_prefetch = 0 : i64, scratch_operands = 0 : i64, tpu.core_type = #tpu.core_type<tc>, window_params = [{transform_indices = @transform_0, window_bounds = array<i64: 1, 18, 18, 16>}, {pipeline_mode = #tpu.pipeline_mode<synchronous>, transform_indices = @transform_1, window_bounds = array<i64: 176, 4>}, {transform_indices = @transform_2, window_bounds = array<i64: 1, 256, 1>}]} {
    %c0 = arith.constant 0 : index
    %c0_0 = arith.constant 0 : index
    %c0_1 = arith.constant 0 : index
    %c0_2 = arith.constant 0 : index
    %0 = vector.load %arg1[%c0, %c0_0, %c0_1, %c0_2] : memref<1x18x18x16xbf16, #tpu.memory_space<vmem>>, vector<1x18x18x16xbf16>
    %1 = vector.shape_cast %0 : vector<1x18x18x16xbf16> to vector<18x18x16xbf16>
    %2 = vector.extract_strided_slice %1 {offsets = [0, 0, 0], sizes = [18, 16, 16], strides = [1, 1, 1]} : vector<18x18x16xbf16> to vector<18x16x16xbf16>
    %3 = vector.shape_cast %2 : vector<18x16x16xbf16> to vector<288x16xbf16>
    %4 = vector.extract_strided_slice %1 {offsets = [0, 1, 0], sizes = [18, 16, 16], strides = [1, 1, 1]} : vector<18x18x16xbf16> to vector<18x16x16xbf16>
    %5 = vector.shape_cast %4 : vector<18x16x16xbf16> to vector<288x16xbf16>
    %6 = vector.extract_strided_slice %1 {offsets = [0, 2, 0], sizes = [18, 16, 16], strides = [1, 1, 1]} : vector<18x18x16xbf16> to vector<18x16x16xbf16>
    %7 = vector.shape_cast %6 : vector<18x16x16xbf16> to vector<288x16xbf16>
    %cst = arith.constant 0.000000e+00 : f32
    %8 = vector.broadcast %cst : f32 to vector<256x4xf32>
    %9 = vector.extract_strided_slice %3 {offsets = [0, 0], sizes = [256, 16], strides = [1, 1]} : vector<288x16xbf16> to vector<256x16xbf16>
    %c0_3 = arith.constant 0 : index
    %c0_4 = arith.constant 0 : index
    %10 = vector.load %arg2[%c0_3, %c0_4] : memref<176x4xf32, #tpu.memory_space<vmem>>, vector<16x4xf32>
    %11 = arith.truncf %10 : vector<16x4xf32> to vector<16x4xbf16>
    %cst_5 = arith.constant dense<0.000000e+00> : vector<256x4xf32>
    %12 = tpu.matmul %9, %11, %cst_5 {dimension_numbers = #tpu.dot_dimension_numbers<[1], [0], [0], [1], [0, 0, 1, 1], [], []>} : vector<256x16xbf16>, vector<16x4xbf16>, vector<256x4xf32> -> vector<256x4xf32>
    %13 = arith.addf %8, %12 : vector<256x4xf32>
    %14 = vector.extract_strided_slice %5 {offsets = [0, 0], sizes = [256, 16], strides = [1, 1]} : vector<288x16xbf16> to vector<256x16xbf16>
    %c16 = arith.constant 16 : index
    %c0_6 = arith.constant 0 : index
    %15 = vector.load %arg2[%c16, %c0_6] : memref<176x4xf32, #tpu.memory_space<vmem>>, vector<16x4xf32>
    %16 = arith.truncf %15 : vector<16x4xf32> to vector<16x4xbf16>
    %cst_7 = arith.constant dense<0.000000e+00> : vector<256x4xf32>
    %17 = tpu.matmul %14, %16, %cst_7 {dimension_numbers = #tpu.dot_dimension_numbers<[1], [0], [0], [1], [0, 0, 1, 1], [], []>} : vector<256x16xbf16>, vector<16x4xbf16>, vector<256x4xf32> -> vector<256x4xf32>
    %18 = arith.addf %13, %17 : vector<256x4xf32>
    %19 = vector.extract_strided_slice %7 {offsets = [0, 0], sizes = [256, 16], strides = [1, 1]} : vector<288x16xbf16> to vector<256x16xbf16>
    %c32 = arith.constant 32 : index
    %c0_8 = arith.constant 0 : index
    %20 = vector.load %arg2[%c32, %c0_8] : memref<176x4xf32, #tpu.memory_space<vmem>>, vector<16x4xf32>
    %21 = arith.truncf %20 : vector<16x4xf32> to vector<16x4xbf16>
    %cst_9 = arith.constant dense<0.000000e+00> : vector<256x4xf32>
    %22 = tpu.matmul %19, %21, %cst_9 {dimension_numbers = #tpu.dot_dimension_numbers<[1], [0], [0], [1], [0, 0, 1, 1], [], []>} : vector<256x16xbf16>, vector<16x4xbf16>, vector<256x4xf32> -> vector<256x4xf32>
    %23 = arith.addf %18, %22 : vector<256x4xf32>
    %24 = vector.extract_strided_slice %3 {offsets = [16, 0], sizes = [256, 16], strides = [1, 1]} : vector<288x16xbf16> to vector<256x16xbf16>
    %c48 = arith.constant 48 : index
    %c0_10 = arith.constant 0 : index
    %25 = vector.load %arg2[%c48, %c0_10] : memref<176x4xf32, #tpu.memory_space<vmem>>, vector<16x4xf32>
    %26 = arith.truncf %25 : vector<16x4xf32> to vector<16x4xbf16>
    %cst_11 = arith.constant dense<0.000000e+00> : vector<256x4xf32>
    %27 = tpu.matmul %24, %26, %cst_11 {dimension_numbers = #tpu.dot_dimension_numbers<[1], [0], [0], [1], [0, 0, 1, 1], [], []>} : vector<256x16xbf16>, vector<16x4xbf16>, vector<256x4xf32> -> vector<256x4xf32>
    %28 = arith.addf %23, %27 : vector<256x4xf32>
    %29 = vector.extract_strided_slice %5 {offsets = [16, 0], sizes = [256, 16], strides = [1, 1]} : vector<288x16xbf16> to vector<256x16xbf16>
    %c64 = arith.constant 64 : index
    %c0_12 = arith.constant 0 : index
    %30 = vector.load %arg2[%c64, %c0_12] : memref<176x4xf32, #tpu.memory_space<vmem>>, vector<16x4xf32>
    %31 = arith.truncf %30 : vector<16x4xf32> to vector<16x4xbf16>
    %cst_13 = arith.constant dense<0.000000e+00> : vector<256x4xf32>
    %32 = tpu.matmul %29, %31, %cst_13 {dimension_numbers = #tpu.dot_dimension_numbers<[1], [0], [0], [1], [0, 0, 1, 1], [], []>} : vector<256x16xbf16>, vector<16x4xbf16>, vector<256x4xf32> -> vector<256x4xf32>
    %33 = arith.addf %28, %32 : vector<256x4xf32>
    %34 = vector.extract_strided_slice %7 {offsets = [16, 0], sizes = [256, 16], strides = [1, 1]} : vector<288x16xbf16> to vector<256x16xbf16>
    %c80 = arith.constant 80 : index
    %c0_14 = arith.constant 0 : index
    %35 = vector.load %arg2[%c80, %c0_14] : memref<176x4xf32, #tpu.memory_space<vmem>>, vector<16x4xf32>
    %36 = arith.truncf %35 : vector<16x4xf32> to vector<16x4xbf16>
    %cst_15 = arith.constant dense<0.000000e+00> : vector<256x4xf32>
    %37 = tpu.matmul %34, %36, %cst_15 {dimension_numbers = #tpu.dot_dimension_numbers<[1], [0], [0], [1], [0, 0, 1, 1], [], []>} : vector<256x16xbf16>, vector<16x4xbf16>, vector<256x4xf32> -> vector<256x4xf32>
    %38 = arith.addf %33, %37 : vector<256x4xf32>
    %39 = vector.extract_strided_slice %3 {offsets = [32, 0], sizes = [256, 16], strides = [1, 1]} : vector<288x16xbf16> to vector<256x16xbf16>
    %c96 = arith.constant 96 : index
    %c0_16 = arith.constant 0 : index
    %40 = vector.load %arg2[%c96, %c0_16] : memref<176x4xf32, #tpu.memory_space<vmem>>, vector<16x4xf32>
    %41 = arith.truncf %40 : vector<16x4xf32> to vector<16x4xbf16>
    %cst_17 = arith.constant dense<0.000000e+00> : vector<256x4xf32>
    %42 = tpu.matmul %39, %41, %cst_17 {dimension_numbers = #tpu.dot_dimension_numbers<[1], [0], [0], [1], [0, 0, 1, 1], [], []>} : vector<256x16xbf16>, vector<16x4xbf16>, vector<256x4xf32> -> vector<256x4xf32>
    %43 = arith.addf %38, %42 : vector<256x4xf32>
    %44 = vector.extract_strided_slice %5 {offsets = [32, 0], sizes = [256, 16], strides = [1, 1]} : vector<288x16xbf16> to vector<256x16xbf16>
    %c112 = arith.constant 112 : index
    %c0_18 = arith.constant 0 : index
    %45 = vector.load %arg2[%c112, %c0_18] : memref<176x4xf32, #tpu.memory_space<vmem>>, vector<16x4xf32>
    %46 = arith.truncf %45 : vector<16x4xf32> to vector<16x4xbf16>
    %cst_19 = arith.constant dense<0.000000e+00> : vector<256x4xf32>
    %47 = tpu.matmul %44, %46, %cst_19 {dimension_numbers = #tpu.dot_dimension_numbers<[1], [0], [0], [1], [0, 0, 1, 1], [], []>} : vector<256x16xbf16>, vector<16x4xbf16>, vector<256x4xf32> -> vector<256x4xf32>
    %48 = arith.addf %43, %47 : vector<256x4xf32>
    %49 = vector.extract_strided_slice %7 {offsets = [32, 0], sizes = [256, 16], strides = [1, 1]} : vector<288x16xbf16> to vector<256x16xbf16>
    %c128 = arith.constant 128 : index
    %c0_20 = arith.constant 0 : index
    %50 = vector.load %arg2[%c128, %c0_20] : memref<176x4xf32, #tpu.memory_space<vmem>>, vector<16x4xf32>
    %51 = arith.truncf %50 : vector<16x4xf32> to vector<16x4xbf16>
    %cst_21 = arith.constant dense<0.000000e+00> : vector<256x4xf32>
    %52 = tpu.matmul %49, %51, %cst_21 {dimension_numbers = #tpu.dot_dimension_numbers<[1], [0], [0], [1], [0, 0, 1, 1], [], []>} : vector<256x16xbf16>, vector<16x4xbf16>, vector<256x4xf32> -> vector<256x4xf32>
    %53 = arith.addf %48, %52 : vector<256x4xf32>
    %c160 = arith.constant 160 : index
    %c0_22 = arith.constant 0 : index
    %54 = vector.load %arg2[%c160, %c0_22] : memref<176x4xf32, #tpu.memory_space<vmem>>, vector<1x4xf32>
    %55 = vector.broadcast %54 : vector<1x4xf32> to vector<256x4xf32>
    %56 = arith.addf %53, %55 : vector<256x4xf32>
    %57 = vector.shape_cast %56 : vector<256x4xf32> to vector<1x256x4xf32>
    %cst_23 = arith.constant dense<0.000000e+00> : vector<1xf32>
    %58 = vector.multi_reduction <add>, %57, %cst_23 [1, 2] : vector<1x256x4xf32> to vector<1xf32>
    %59 = vector.shape_cast %58 : vector<1xf32> to vector<1x1x1xf32>
    %60 = vector.extract %59[0, 0, 0] : f32 from vector<1x1x1xf32>
    %61 = vector.broadcast %60 : f32 to vector<1x1xf32>
    %cst_24 = arith.constant 9.765625E-4 : f32
    %62 = vector.broadcast %cst_24 : f32 to vector<1x1xf32>
    %63 = arith.mulf %61, %62 : vector<1x1xf32>
    %64 = vector.broadcast %63 : vector<1x1xf32> to vector<256x4xf32>
    %65 = arith.subf %56, %64 : vector<256x4xf32>
    %66 = arith.mulf %65, %65 : vector<256x4xf32>
    %67 = vector.shape_cast %66 : vector<256x4xf32> to vector<1x256x4xf32>
    %cst_25 = arith.constant dense<0.000000e+00> : vector<1xf32>
    %68 = vector.multi_reduction <add>, %67, %cst_25 [1, 2] : vector<1x256x4xf32> to vector<1xf32>
    %69 = vector.shape_cast %68 : vector<1xf32> to vector<1x1x1xf32>
    %70 = vector.extract %69[0, 0, 0] : f32 from vector<1x1x1xf32>
    %71 = vector.broadcast %70 : f32 to vector<1x1xf32>
    %cst_26 = arith.constant 9.765625E-4 : f32
    %72 = vector.broadcast %cst_26 : f32 to vector<1x1xf32>
    %73 = arith.mulf %71, %72 : vector<1x1xf32>
    %cst_27 = arith.constant 9.99999974E-6 : f32
    %74 = vector.broadcast %cst_27 : f32 to vector<1x1xf32>
    %75 = arith.addf %73, %74 : vector<1x1xf32>
    %76 = math.rsqrt %75 : vector<1x1xf32>
    %77 = vector.broadcast %76 : vector<1x1xf32> to vector<256x4xf32>
    %78 = arith.mulf %65, %77 : vector<256x4xf32>
    %c161 = arith.constant 161 : index
    %c0_28 = arith.constant 0 : index
    %79 = vector.load %arg2[%c161, %c0_28] : memref<176x4xf32, #tpu.memory_space<vmem>>, vector<1x4xf32>
    %80 = vector.broadcast %79 : vector<1x4xf32> to vector<256x4xf32>
    %81 = arith.mulf %78, %80 : vector<256x4xf32>
    %c162 = arith.constant 162 : index
    %c0_29 = arith.constant 0 : index
    %82 = vector.load %arg2[%c162, %c0_29] : memref<176x4xf32, #tpu.memory_space<vmem>>, vector<1x4xf32>
    %83 = vector.broadcast %82 : vector<1x4xf32> to vector<256x4xf32>
    %84 = arith.addf %81, %83 : vector<256x4xf32>
    %cst_30 = arith.constant 0.000000e+00 : f32
    %85 = vector.broadcast %cst_30 : f32 to vector<256x4xf32>
    %86 = arith.maximumf %84, %85 : vector<256x4xf32>
    %c144 = arith.constant 144 : index
    %c0_31 = arith.constant 0 : index
    %87 = vector.load %arg2[%c144, %c0_31] : memref<176x4xf32, #tpu.memory_space<vmem>>, vector<4x4xf32>
    %cst_32 = arith.constant dense<0.000000e+00> : vector<256x4xf32>
    %88 = tpu.matmul %86, %87, %cst_32 {dimension_numbers = #tpu.dot_dimension_numbers<[1], [0], [0], [1], [0, 0, 1, 1], [], []>} : vector<256x4xf32>, vector<4x4xf32>, vector<256x4xf32> -> vector<256x4xf32>
    %c163 = arith.constant 163 : index
    %c0_33 = arith.constant 0 : index
    %89 = vector.load %arg2[%c163, %c0_33] : memref<176x4xf32, #tpu.memory_space<vmem>>, vector<1x4xf32>
    %90 = vector.broadcast %89 : vector<1x4xf32> to vector<256x4xf32>
    %91 = arith.addf %88, %90 : vector<256x4xf32>
    %92 = vector.shape_cast %91 : vector<256x4xf32> to vector<1x256x4xf32>
    %cst_34 = arith.constant dense<0.000000e+00> : vector<1xf32>
    %93 = vector.multi_reduction <add>, %92, %cst_34 [1, 2] : vector<1x256x4xf32> to vector<1xf32>
    %94 = vector.shape_cast %93 : vector<1xf32> to vector<1x1x1xf32>
    %95 = vector.extract %94[0, 0, 0] : f32 from vector<1x1x1xf32>
    %96 = vector.broadcast %95 : f32 to vector<1x1xf32>
    %cst_35 = arith.constant 9.765625E-4 : f32
    %97 = vector.broadcast %cst_35 : f32 to vector<1x1xf32>
    %98 = arith.mulf %96, %97 : vector<1x1xf32>
    %99 = vector.broadcast %98 : vector<1x1xf32> to vector<256x4xf32>
    %100 = arith.subf %91, %99 : vector<256x4xf32>
    %101 = arith.mulf %100, %100 : vector<256x4xf32>
    %102 = vector.shape_cast %101 : vector<256x4xf32> to vector<1x256x4xf32>
    %cst_36 = arith.constant dense<0.000000e+00> : vector<1xf32>
    %103 = vector.multi_reduction <add>, %102, %cst_36 [1, 2] : vector<1x256x4xf32> to vector<1xf32>
    %104 = vector.shape_cast %103 : vector<1xf32> to vector<1x1x1xf32>
    %105 = vector.extract %104[0, 0, 0] : f32 from vector<1x1x1xf32>
    %106 = vector.broadcast %105 : f32 to vector<1x1xf32>
    %cst_37 = arith.constant 9.765625E-4 : f32
    %107 = vector.broadcast %cst_37 : f32 to vector<1x1xf32>
    %108 = arith.mulf %106, %107 : vector<1x1xf32>
    %cst_38 = arith.constant 9.99999974E-6 : f32
    %109 = vector.broadcast %cst_38 : f32 to vector<1x1xf32>
    %110 = arith.addf %108, %109 : vector<1x1xf32>
    %111 = math.rsqrt %110 : vector<1x1xf32>
    %112 = vector.broadcast %111 : vector<1x1xf32> to vector<256x4xf32>
    %113 = arith.mulf %100, %112 : vector<256x4xf32>
    %c164 = arith.constant 164 : index
    %c0_39 = arith.constant 0 : index
    %114 = vector.load %arg2[%c164, %c0_39] : memref<176x4xf32, #tpu.memory_space<vmem>>, vector<1x4xf32>
    %115 = vector.broadcast %114 : vector<1x4xf32> to vector<256x4xf32>
    %116 = arith.mulf %113, %115 : vector<256x4xf32>
    %c165 = arith.constant 165 : index
    %c0_40 = arith.constant 0 : index
    %117 = vector.load %arg2[%c165, %c0_40] : memref<176x4xf32, #tpu.memory_space<vmem>>, vector<1x4xf32>
    %118 = vector.broadcast %117 : vector<1x4xf32> to vector<256x4xf32>
    %119 = arith.addf %116, %118 : vector<256x4xf32>
    %cst_41 = arith.constant 0.000000e+00 : f32
    %120 = vector.broadcast %cst_41 : f32 to vector<256x4xf32>
    %121 = arith.maximumf %119, %120 : vector<256x4xf32>
    %c152 = arith.constant 152 : index
    %c0_42 = arith.constant 0 : index
    %122 = vector.load %arg2[%c152, %c0_42] : memref<176x4xf32, #tpu.memory_space<vmem>>, vector<4x4xf32>
    %cst_43 = arith.constant dense<0.000000e+00> : vector<256x4xf32>
    %123 = tpu.matmul %121, %122, %cst_43 {dimension_numbers = #tpu.dot_dimension_numbers<[1], [0], [0], [1], [0, 0, 1, 1], [], []>} : vector<256x4xf32>, vector<4x4xf32>, vector<256x4xf32> -> vector<256x4xf32>
    %c166 = arith.constant 166 : index
    %c0_44 = arith.constant 0 : index
    %124 = vector.load %arg2[%c166, %c0_44] : memref<176x4xf32, #tpu.memory_space<vmem>>, vector<1x4xf32>
    %125 = vector.broadcast %124 : vector<1x4xf32> to vector<256x4xf32>
    %126 = arith.addf %123, %125 : vector<256x4xf32>
    %127 = vector.shape_cast %126 : vector<256x4xf32> to vector<1x256x4xf32>
    %cst_45 = arith.constant dense<0.000000e+00> : vector<1xf32>
    %128 = vector.multi_reduction <add>, %127, %cst_45 [1, 2] : vector<1x256x4xf32> to vector<1xf32>
    %129 = vector.shape_cast %128 : vector<1xf32> to vector<1x1x1xf32>
    %130 = vector.extract %129[0, 0, 0] : f32 from vector<1x1x1xf32>
    %131 = vector.broadcast %130 : f32 to vector<1x1xf32>
    %cst_46 = arith.constant 9.765625E-4 : f32
    %132 = vector.broadcast %cst_46 : f32 to vector<1x1xf32>
    %133 = arith.mulf %131, %132 : vector<1x1xf32>
    %134 = vector.broadcast %133 : vector<1x1xf32> to vector<256x4xf32>
    %135 = arith.subf %126, %134 : vector<256x4xf32>
    %136 = arith.mulf %135, %135 : vector<256x4xf32>
    %137 = vector.shape_cast %136 : vector<256x4xf32> to vector<1x256x4xf32>
    %cst_47 = arith.constant dense<0.000000e+00> : vector<1xf32>
    %138 = vector.multi_reduction <add>, %137, %cst_47 [1, 2] : vector<1x256x4xf32> to vector<1xf32>
    %139 = vector.shape_cast %138 : vector<1xf32> to vector<1x1x1xf32>
    %140 = vector.extract %139[0, 0, 0] : f32 from vector<1x1x1xf32>
    %141 = vector.broadcast %140 : f32 to vector<1x1xf32>
    %cst_48 = arith.constant 9.765625E-4 : f32
    %142 = vector.broadcast %cst_48 : f32 to vector<1x1xf32>
    %143 = arith.mulf %141, %142 : vector<1x1xf32>
    %cst_49 = arith.constant 9.99999974E-6 : f32
    %144 = vector.broadcast %cst_49 : f32 to vector<1x1xf32>
    %145 = arith.addf %143, %144 : vector<1x1xf32>
    %146 = math.rsqrt %145 : vector<1x1xf32>
    %147 = vector.broadcast %146 : vector<1x1xf32> to vector<256x4xf32>
    %148 = arith.mulf %135, %147 : vector<256x4xf32>
    %c167 = arith.constant 167 : index
    %c0_50 = arith.constant 0 : index
    %149 = vector.load %arg2[%c167, %c0_50] : memref<176x4xf32, #tpu.memory_space<vmem>>, vector<1x4xf32>
    %150 = vector.broadcast %149 : vector<1x4xf32> to vector<256x4xf32>
    %151 = arith.mulf %148, %150 : vector<256x4xf32>
    %c168 = arith.constant 168 : index
    %c0_51 = arith.constant 0 : index
    %152 = vector.load %arg2[%c168, %c0_51] : memref<176x4xf32, #tpu.memory_space<vmem>>, vector<1x4xf32>
    %153 = vector.broadcast %152 : vector<1x4xf32> to vector<256x4xf32>
    %154 = arith.addf %151, %153 : vector<256x4xf32>
    %155 = arith.addf %154, %86 : vector<256x4xf32>
    %cst_52 = arith.constant 0.000000e+00 : f32
    %156 = vector.broadcast %cst_52 : f32 to vector<256x4xf32>
    %157 = arith.maximumf %155, %156 : vector<256x4xf32>
    %c169 = arith.constant 169 : index
    %c0_53 = arith.constant 0 : index
    %158 = vector.load %arg2[%c169, %c0_53] : memref<176x4xf32, #tpu.memory_space<vmem>>, vector<1x4xf32>
    %159 = vector.broadcast %158 : vector<1x4xf32> to vector<256x4xf32>
    %160 = arith.mulf %157, %159 : vector<256x4xf32>
    %cst_54 = arith.constant dense<0.000000e+00> : vector<256xf32>
    %161 = vector.multi_reduction <add>, %160, %cst_54 [1] : vector<256x4xf32> to vector<256xf32>
    %162 = vector.shape_cast %161 : vector<256xf32> to vector<256x1xf32>
    %c170 = arith.constant 170 : index
    %c0_55 = arith.constant 0 : index
    %163 = vector.load %arg2[%c170, %c0_55] : memref<176x4xf32, #tpu.memory_space<vmem>>, vector<1x1xf32>
    %164 = vector.broadcast %163 : vector<1x1xf32> to vector<256x1xf32>
    %165 = arith.addf %162, %164 : vector<256x1xf32>
    %166 = arith.negf %165 : vector<256x1xf32>
    %167 = math.exp %166 : vector<256x1xf32>
    %cst_56 = arith.constant 1.000000e+00 : f32
    %168 = vector.broadcast %cst_56 : f32 to vector<256x1xf32>
    %169 = arith.addf %168, %167 : vector<256x1xf32>
    %170 = arith.divf %168, %169 : vector<256x1xf32>
    %c0_57 = arith.constant 0 : index
    %c0_58 = arith.constant 0 : index
    %c0_59 = arith.constant 0 : index
    %171 = vector.load %arg3[%c0_57, %c0_58, %c0_59] : memref<1x256x1xf32, #tpu.memory_space<vmem>>, vector<1x256x1xf32>
    %172 = vector.shape_cast %171 : vector<1x256x1xf32> to vector<256x1xf32>
    %173 = vector.shape_cast %170 : vector<256x1xf32> to vector<1x256x1xf32>
    tpu.vector_store %arg3[%c0_57, %c0_58, %c0_59], %173 {strides = array<i32>} : memref<1x256x1xf32, #tpu.memory_space<vmem>>, vector<1x256x1xf32>,
    return
  }
  func.func @transform_0(%arg0: i32) -> (i32, i32, i32, i32) {
    %c0_i32 = arith.constant 0 : i32
    %c0_i32_0 = arith.constant 0 : i32
    %c0_i32_1 = arith.constant 0 : i32
    %c0_i32_2 = arith.constant 0 : i32
    return %arg0, %c0_i32, %c0_i32_0, %c0_i32_1 : i32, i32, i32, i32
  }
  func.func @transform_1(%arg0: i32) -> (i32, i32) {
    %c0_i32 = arith.constant 0 : i32
    %c0_i32_0 = arith.constant 0 : i32
    %c0_i32_1 = arith.constant 0 : i32
    return %c0_i32, %c0_i32_0 : i32, i32
  }
  func.func @transform_2(%arg0: i32) -> (i32, i32, i32) {
    %c0_i32 = arith.constant 0 : i32
    %c0_i32_0 = arith.constant 0 : i32
    %c0_i32_1 = arith.constant 0 : i32
    return %arg0, %c0_i32, %c0_i32_0 : i32, i32, i32
  }
}

</mosaic_0001>

<llo_original>
// kernel: tpu_custom_call.1
$region0: #{tpu_custom_call.1}
  #allocation0 [shape = 'u32[]', space=smem, size = 0x4, offset = 0x4, fixed_abs, tag = 'smem constant byte address 0x4 - core index']
  #allocation1 [shape = 'u32[72,128]{1,0:T(1,128)}', space=vmem, size = 0x9000, scoped, tag = 'internal scratch']
  %s0 = inlined_call_operand.vmem [shape: bf16[2,18,18,16], index: 0, kind: input, shape index: {}]
  %s1 = inlined_call_operand.vmem [shape: f32[176,4], index: 1, kind: input, shape index: {}]
  %s2 = inlined_call_operand.vmem [shape: f32[2,256,1], index: 2, kind: output, shape index: {}]
  %s3 = sld [smem:[#allocation0]]
  $region41: #{tpu_custom_call.1} parent=0
    _
  %s5 = ssub.s32 1, %s3
  %s6 = scalar_select 0, %s5, %s3
  loop: start=0, step=1, limit=4
  $region2: #{tpu_custom_call.1} parent=0 // loop_pre_header
    _
  $region3: #{tpu_custom_call.1} parent=0 // loop_header
    %s8 = sphi 0, %s12
    %p9 = scmp.ge.s32.totalorder %s8, 4
    %s18 = sphi 0, %s20
    %s21 = sphi 0, %s18
    %s22 = sphi 0, %s21
    %s38 = sphi 0, %s22
    %s42 = sphi 0, %s42
    %s44 = sphi 0, %s42
    %s45 = sphi 0, %s44
    %s59 = sphi 0, %s45
    %s65 = sphi 0, %s67
    %s68 = sphi 0, %s65
    %s69 = sphi 0, %s68
    %s85 = sphi 0, %s69
  $region4: #{tpu_custom_call.1} parent=0 // loop_header_branch
    %11 = sbr.rel (%p9) target = $region8
  $region5: #{tpu_custom_call.1} parent=0 // loop_body
    %s13 = ssub.s32 %s8, 1
    %s14 = ssub.s32 %s8, 2
    %s15 = sadd.s32 %s8, 1
    %s16 = ssub.s32 %s8, %s15
    %p17 = scmp.eq.s32.totalorder %s16, 0
    %s19 = sadd.s32 %s18, 1
    %s20 = scalar_select %p17, %s18, %s19
    %p23 = pneg %p17
    %p24 = scmp.eq.s32.totalorder %s8, 1
    %p25 = por %p23, %p24
    %p26 = scmp.ne.s32.totalorder %s18, %s21
    %p27 = scmp.eq.s32.totalorder %s8, 0
    %p28 = por %p26, %p27
    %p29 = scmp.ne.s32.totalorder %s18, %s21
    %p30 = scmp.eq.s32.totalorder %s13, 1
    %p31 = por %p29, %p30
    %p32 = scmp.ne.s32.totalorder %s21, %s22
    %p33 = scmp.eq.s32.totalorder %s13, 0
    %p34 = por %p32, %p33
    %p35 = scmp.ne.s32.totalorder %s21, %s22
    %p36 = scmp.eq.s32.totalorder %s14, 1
    %p37 = por %p35, %p36
    %p39 = scmp.ne.s32.totalorder %s22, %s38
    %p40 = scmp.eq.s32.totalorder %s14, 0
    %p41 = por %p39, %p40
    %s43 = sadd.s32 %s42, 1
    %p46 = scmp.eq.s32.totalorder %s8, 1
    %p47 = scmp.ne.s32.totalorder %s42, %s44
    %p48 = scmp.eq.s32.totalorder %s8, 0
    %p49 = por %p47, %p48
    %p50 = scmp.ne.s32.totalorder %s42, %s44
    %p51 = scmp.eq.s32.totalorder %s13, 1
    %p52 = por %p50, %p51
    %p53 = scmp.ne.s32.totalorder %s44, %s45
    %p54 = scmp.eq.s32.totalorder %s13, 0
    %p55 = por %p53, %p54
    %p56 = scmp.ne.s32.totalorder %s44, %s45
    %p57 = scmp.eq.s32.totalorder %s14, 1
    %p58 = por %p56, %p57
    %p60 = scmp.ne.s32.totalorder %s45, %s59
    %p61 = scmp.eq.s32.totalorder %s14, 0
    %p62 = por %p60, %p61
    %s63 = ssub.s32 %s8, %s15
    %p64 = scmp.eq.s32.totalorder %s63, 0
    %s66 = sadd.s32 %s65, 1
    %s67 = scalar_select %p64, %s65, %s66
    %p70 = pneg %p64
    %p71 = scmp.eq.s32.totalorder %s8, 1
    %p72 = por %p70, %p71
    %p73 = scmp.ne.s32.totalorder %s65, %s68
    %p74 = scmp.eq.s32.totalorder %s8, 0
    %p75 = por %p73, %p74
    %p76 = scmp.ne.s32.totalorder %s65, %s68
    %p77 = scmp.eq.s32.totalorder %s13, 1
    %p78 = por %p76, %p77
    %p79 = scmp.ne.s32.totalorder %s68, %s69
    %p80 = scmp.eq.s32.totalorder %s13, 0
    %p81 = por %p79, %p80
    %p82 = scmp.ne.s32.totalorder %s68, %s69
    %p83 = scmp.eq.s32.totalorder %s14, 1
    %p84 = por %p82, %p83
    %p86 = scmp.ne.s32.totalorder %s69, %s85
    %p87 = scmp.eq.s32.totalorder %s14, 0
    %p88 = por %p86, %p87
    %p89 = scmp.le.s32.totalorder 1, %s8
    %p90 = scmp.lt.s32.totalorder %s8, 3
    %p91 = pnand %p89, %p90
    %p92 = pneg %p91
    // Predicated region
    $region9: #{tpu_custom_call.1} parent=5 // pred_check
      _
    $region10: #{tpu_custom_call.1} parent=5 // pred_check_branch
      %94 = sbr.rel (%p91) target = $region12
    $region11: #{tpu_custom_call.1} parent=5 // pred_region
      %s95 = ssub.s32 %s8, 1
      // Predicated region
      $region13: #{tpu_custom_call.1} parent=11 // pred_check
        %p96 = pneg %p55
      $region14: #{tpu_custom_call.1} parent=11 // pred_check_branch
        %98 = sbr.rel (%p96) target = $region16
      $region15: #{tpu_custom_call.1} parent=11 // pred_region
        _
      $region16: #{tpu_custom_call.1} parent=11 // pred_fallthru
        _
    $region12: #{tpu_custom_call.1} parent=5 // pred_fallthru
      _
    %p99 = scmp.lt.s32.totalorder %s8, 2
    // Predicated region
    $region17: #{tpu_custom_call.1} parent=5 // pred_check
      %p100 = pneg %p99
    $region18: #{tpu_custom_call.1} parent=5 // pred_check_branch
      %102 = sbr.rel (%p100) target = $region20
    $region19: #{tpu_custom_call.1} parent=5 // pred_region
      // Predicated region
      $region21: #{tpu_custom_call.1} parent=19 // pred_check
        %p103 = pneg %p28
      $region22: #{tpu_custom_call.1} parent=19 // pred_check_branch
        %105 = sbr.rel (%p103) target = $region24
      $region23: #{tpu_custom_call.1} parent=19 // pred_region
        %p106 = scmp.lt.s32.totalorder %s8, 1
        %s107 = scalar_select %p106, %s8, 1
        %s108 = smul.addr %s107, 54
        %s109 = smul.addr %s108, 4
        %s110 = scalar_lea.vmem %s0, %s109
      $region24: #{tpu_custom_call.1} parent=19 // pred_fallthru
        _
    $region20: #{tpu_custom_call.1} parent=5 // pred_fallthru
      _
    %p111 = scmp.le.s32.totalorder 1, %s8
    %p112 = scmp.lt.s32.totalorder %s8, 3
    %p113 = pnand %p111, %p112
    %p114 = pneg %p113
    // Predicated region
    $region25: #{tpu_custom_call.1} parent=5 // pred_check
      _
    $region26: #{tpu_custom_call.1} parent=5 // pred_check_branch
      %116 = sbr.rel (%p113) target = $region28
    $region27: #{tpu_custom_call.1} parent=5 // pred_region
      %s117 = ssub.s32 %s8, 1
      %p118 = scmp.lt.s32.totalorder %s13, 1
      %s119 = scalar_select %p118, %s13, 1
      %s120 = smul.addr %s119, 54
      %s121 = smul.addr %s120, 4
      %s122 = scalar_lea.vmem %s0, %s121
      %p123 = pneg %p34
      %p124 = pneg %p31
      %p125 = pneg %p55
      %p126 = pneg %p52
      %p127 = pneg %p81
      %p128 = pneg %p78
      %p129 = scmp.lt.s32.totalorder %s13, 1
      %s130 = scalar_select %p129, %s13, 1
      %s131 = smul.addr %s130, 32
      %s132 = smul.addr %s131, 8
      %s133 = scalar_lea.vmem %s2, %s132
      %p134 = scmp.lt.s32.totalorder %s13, 1
      %s135 = scalar_select %p134, %s13, 1
      %s136 = smul.addr %s135, 54
      %s137 = smul.addr %s136, 4
      %s138 = scalar_lea.vmem %s0, %s137
      %p139 = scmp.lt.s32.totalorder %s13, 1
      %s140 = scalar_select %p139, %s13, 1
      %s141 = smul.addr %s140, 32
      %s142 = smul.addr %s141, 8
      %s143 = scalar_lea.vmem %s2, %s142
      %v145 = vld [vmem:[%s138] sm:$0xf]
      %v146 = vld [vmem:[%s138 + $0x4] sm:$0xf]
      %v147 = vld [vmem:[%s138 + $0x8] sm:$0x1]
      %v148 = vld [vmem:[%s138 + $0xc] sm:$0xf]
      %v149 = vld [vmem:[%s138 + $0x10] sm:$0xf]
      %v150 = vld [vmem:[%s138 + $0x14] sm:$0x1]
      %v151 = vld [vmem:[%s138 + $0x18] sm:$0xf]
      %v152 = vld [vmem:[%s138 + $0x1c] sm:$0xf]
      %v153 = vld [vmem:[%s138 + $0x20] sm:$0x1]
      %v154 = vld [vmem:[%s138 + $0x24] sm:$0xf]
      %v155 = vld [vmem:[%s138 + $0x28] sm:$0xf]
      %v156 = vld [vmem:[%s138 + $0x2c] sm:$0x1]
      %v157 = vld [vmem:[%s138 + $0x30] sm:$0xf]
      %v158 = vld [vmem:[%s138 + $0x34] sm:$0xf]
      %v159 = vld [vmem:[%s138 + $0x38] sm:$0x1]
      %v160 = vld [vmem:[%s138 + $0x3c] sm:$0xf]
      %v161 = vld [vmem:[%s138 + $0x40] sm:$0xf]
      %v162 = vld [vmem:[%s138 + $0x44] sm:$0x1]
      %v163 = vld [vmem:[%s138 + $0x48] sm:$0xf]
      %v164 = vld [vmem:[%s138 + $0x4c] sm:$0xf]
      %v165 = vld [vmem:[%s138 + $0x50] sm:$0x1]
      %v166 = vld [vmem:[%s138 + $0x54] sm:$0xf]
      %v167 = vld [vmem:[%s138 + $0x58] sm:$0xf]
      %v168 = vld [vmem:[%s138 + $0x5c] sm:$0x1]
      %v169 = vld [vmem:[%s138 + $0x60] sm:$0xf]
      %v170 = vld [vmem:[%s138 + $0x64] sm:$0xf]
      %v171 = vld [vmem:[%s138 + $0x68] sm:$0x1]
      %v172 = vld [vmem:[%s138 + $0x6c] sm:$0xf]
      %v173 = vld [vmem:[%s138 + $0x70] sm:$0xf]
      %v174 = vld [vmem:[%s138 + $0x74] sm:$0x1]
      %v175 = vld [vmem:[%s138 + $0x78] sm:$0xf]
      %v176 = vld [vmem:[%s138 + $0x7c] sm:$0xf]
      %v177 = vld [vmem:[%s138 + $0x80] sm:$0x1]
      %v178 = vld [vmem:[%s138 + $0x84] sm:$0xf]
      %v179 = vld [vmem:[%s138 + $0x88] sm:$0xf]
      %v180 = vld [vmem:[%s138 + $0x8c] sm:$0x1]
      %v181 = vld [vmem:[%s138 + $0x90] sm:$0xf]
      %v182 = vld [vmem:[%s138 + $0x94] sm:$0xf]
      %v183 = vld [vmem:[%s138 + $0x98] sm:$0x1]
      %v184 = vld [vmem:[%s138 + $0x9c] sm:$0xf]
      %v185 = vld [vmem:[%s138 + $0xa0] sm:$0xf]
      %v186 = vld [vmem:[%s138 + $0xa4] sm:$0x1]
      %v187 = vld [vmem:[%s138 + $0xa8] sm:$0xf]
      %v188 = vld [vmem:[%s138 + $0xac] sm:$0xf]
      %v189 = vld [vmem:[%s138 + $0xb0] sm:$0x1]
      %v190 = vld [vmem:[%s138 + $0xb4] sm:$0xf]
      %v191 = vld [vmem:[%s138 + $0xb8] sm:$0xf]
      %v192 = vld [vmem:[%s138 + $0xbc] sm:$0x1]
      %v193 = vld [vmem:[%s138 + $0xc0] sm:$0xf]
      %v194 = vld [vmem:[%s138 + $0xc4] sm:$0xf]
      %v195 = vld [vmem:[%s138 + $0xc8] sm:$0x1]
      %v196 = vld [vmem:[%s138 + $0xcc] sm:$0xf]
      %v197 = vld [vmem:[%s138 + $0xd0] sm:$0xf]
      %v198 = vld [vmem:[%s138 + $0xd4] sm:$0x1]
      %vm199 = vsmask.f32 3328
      %vm200 = vsmask.f32 7440
      %vm201 = vmor %vm199, %vm200
      %v203 = vshrl.u32 %v145, 16
      %v205 = vrot.slane %v203, 4
      %v206 = vshll.u32 %v145, 16
      %v208 = vrot.slane %v206, 5
      %v209 = vor.u32 %v205, %v208
      %v210 = vrot.slane %v209, 4
      %v212 = vshll.u32 %v146, 16
      %v214 = vrot.slane %v212, 5
      %v215 = vsel %vm201, %v210, %v214
      %v216 = vshrl.u32 %v146, 16
      %v218 = vrot.slane %v216, 4
      %v219 = vor.u32 %v218, %v214
      %v220 = vrot.slane %v219, 4
      %v222 = vshll.u32 %v147, 16
      %v224 = vrot.slane %v222, 5
      %v225 = vsel %vm201, %v220, %v224
      %v227 = vshrl.u32 %v148, 16
      %v229 = vrot.slane %v227, 4
      %v230 = vshll.u32 %v148, 16
      %v232 = vrot.slane %v230, 5
      %v233 = vor.u32 %v229, %v232
      %v234 = vrot.slane %v233, 4
      %v236 = vshll.u32 %v149, 16
      %v238 = vrot.slane %v236, 5
      %v239 = vsel %vm201, %v234, %v238
      %v240 = vshrl.u32 %v149, 16
      %v242 = vrot.slane %v240, 4
      %v243 = vor.u32 %v242, %v238
      %v244 = vrot.slane %v243, 4
      %v246 = vshll.u32 %v150, 16
      %v248 = vrot.slane %v246, 5
      %v249 = vsel %vm201, %v244, %v248
      %v251 = vshrl.u32 %v151, 16
      %v253 = vrot.slane %v251, 4
      %v254 = vshll.u32 %v151, 16
      %v256 = vrot.slane %v254, 5
      %v257 = vor.u32 %v253, %v256
      %v258 = vrot.slane %v257, 4
      %v260 = vshll.u32 %v152, 16
      %v262 = vrot.slane %v260, 5
      %v263 = vsel %vm201, %v258, %v262
      %v264 = vshrl.u32 %v152, 16
      %v266 = vrot.slane %v264, 4
      %v267 = vor.u32 %v266, %v262
      %v268 = vrot.slane %v267, 4
      %v270 = vshll.u32 %v153, 16
      %v272 = vrot.slane %v270, 5
      %v273 = vsel %vm201, %v268, %v272
      %v275 = vshrl.u32 %v154, 16
      %v277 = vrot.slane %v275, 4
      %v278 = vshll.u32 %v154, 16
      %v280 = vrot.slane %v278, 5
      %v281 = vor.u32 %v277, %v280
      %v282 = vrot.slane %v281, 4
      %v284 = vshll.u32 %v155, 16
      %v286 = vrot.slane %v284, 5
      %v287 = vsel %vm201, %v282, %v286
      %v288 = vshrl.u32 %v155, 16
      %v290 = vrot.slane %v288, 4
      %v291 = vor.u32 %v290, %v286
      %v292 = vrot.slane %v291, 4
      %v294 = vshll.u32 %v156, 16
      %v296 = vrot.slane %v294, 5
      %v297 = vsel %vm201, %v292, %v296
      %v299 = vshrl.u32 %v157, 16
      %v301 = vrot.slane %v299, 4
      %v302 = vshll.u32 %v157, 16
      %v304 = vrot.slane %v302, 5
      %v305 = vor.u32 %v301, %v304
      %v306 = vrot.slane %v305, 4
      %v308 = vshll.u32 %v158, 16
      %v310 = vrot.slane %v308, 5
      %v311 = vsel %vm201, %v306, %v310
      %v312 = vshrl.u32 %v158, 16
      %v314 = vrot.slane %v312, 4
      %v315 = vor.u32 %v314, %v310
      %v316 = vrot.slane %v315, 4
      %v318 = vshll.u32 %v159, 16
      %v320 = vrot.slane %v318, 5
      %v321 = vsel %vm201, %v316, %v320
      %v323 = vshrl.u32 %v160, 16
      %v325 = vrot.slane %v323, 4
      %v326 = vshll.u32 %v160, 16
      %v328 = vrot.slane %v326, 5
      %v329 = vor.u32 %v325, %v328
      %v330 = vrot.slane %v329, 4
      %v332 = vshll.u32 %v161, 16
      %v334 = vrot.slane %v332, 5
      %v335 = vsel %vm201, %v330, %v334
      %v336 = vshrl.u32 %v161, 16
      %v338 = vrot.slane %v336, 4
      %v339 = vor.u32 %v338, %v334
      %v340 = vrot.slane %v339, 4
      %v342 = vshll.u32 %v162, 16
      %v344 = vrot.slane %v342, 5
      %v345 = vsel %vm201, %v340, %v344
      %v347 = vshrl.u32 %v163, 16
      %v349 = vrot.slane %v347, 4
      %v350 = vshll.u32 %v163, 16
      %v352 = vrot.slane %v350, 5
      %v353 = vor.u32 %v349, %v352
      %v354 = vrot.slane %v353, 4
      %v356 = vshll.u32 %v164, 16
      %v358 = vrot.slane %v356, 5
      %v359 = vsel %vm201, %v354, %v358
      %v360 = vshrl.u32 %v164, 16
      %v362 = vrot.slane %v360, 4
      %v363 = vor.u32 %v362, %v358
      %v364 = vrot.slane %v363, 4
      %v366 = vshll.u32 %v165, 16
      %v368 = vrot.slane %v366, 5
      %v369 = vsel %vm201, %v364, %v368
      %v371 = vshrl.u32 %v166, 16
      %v373 = vrot.slane %v371, 4
      %v374 = vshll.u32 %v166, 16
      %v376 = vrot.slane %v374, 5
      %v377 = vor.u32 %v373, %v376
      %v378 = vrot.slane %v377, 4
      %v380 = vshll.u32 %v167, 16
      %v382 = vrot.slane %v380, 5
      %v383 = vsel %vm201, %v378, %v382
      %v384 = vshrl.u32 %v167, 16
      %v386 = vrot.slane %v384, 4
      %v387 = vor.u32 %v386, %v382
      %v388 = vrot.slane %v387, 4
      %v390 = vshll.u32 %v168, 16
      %v392 = vrot.slane %v390, 5
      %v393 = vsel %vm201, %v388, %v392
      %v395 = vshrl.u32 %v169, 16
      %v397 = vrot.slane %v395, 4
      %v398 = vshll.u32 %v169, 16
      %v400 = vrot.slane %v398, 5
      %v401 = vor.u32 %v397, %v400
      %v402 = vrot.slane %v401, 4
      %v404 = vshll.u32 %v170, 16
      %v406 = vrot.slane %v404, 5
      %v407 = vsel %vm201, %v402, %v406
      %v408 = vshrl.u32 %v170, 16
      %v410 = vrot.slane %v408, 4
      %v411 = vor.u32 %v410, %v406
      %v412 = vrot.slane %v411, 4
      %v414 = vshll.u32 %v171, 16
      %v416 = vrot.slane %v414, 5
      %v417 = vsel %vm201, %v412, %v416
      %v419 = vshrl.u32 %v172, 16
      %v421 = vrot.slane %v419, 4
      %v422 = vshll.u32 %v172, 16
      %v424 = vrot.slane %v422, 5
      %v425 = vor.u32 %v421, %v424
      %v426 = vrot.slane %v425, 4
      %v428 = vshll.u32 %v173, 16
      %v430 = vrot.slane %v428, 5
      %v431 = vsel %vm201, %v426, %v430
      %v432 = vshrl.u32 %v173, 16
      %v434 = vrot.slane %v432, 4
      %v435 = vor.u32 %v434, %v430
      %v436 = vrot.slane %v435, 4
      %v438 = vshll.u32 %v174, 16
      %v440 = vrot.slane %v438, 5
      %v441 = vsel %vm201, %v436, %v440
      %v443 = vshrl.u32 %v175, 16
      %v445 = vrot.slane %v443, 4
      %v446 = vshll.u32 %v175, 16
      %v448 = vrot.slane %v446, 5
      %v449 = vor.u32 %v445, %v448
      %v450 = vrot.slane %v449, 4
      %v452 = vshll.u32 %v176, 16
      %v454 = vrot.slane %v452, 5
      %v455 = vsel %vm201, %v450, %v454
      %v456 = vshrl.u32 %v176, 16
      %v458 = vrot.slane %v456, 4
      %v459 = vor.u32 %v458, %v454
      %v460 = vrot.slane %v459, 4
      %v462 = vshll.u32 %v177, 16
      %v464 = vrot.slane %v462, 5
      %v465 = vsel %vm201, %v460, %v464
      %v467 = vshrl.u32 %v178, 16
      %v469 = vrot.slane %v467, 4
      %v470 = vshll.u32 %v178, 16
      %v472 = vrot.slane %v470, 5
      %v473 = vor.u32 %v469, %v472
      %v474 = vrot.slane %v473, 4
      %v476 = vshll.u32 %v179, 16
      %v478 = vrot.slane %v476, 5
      %v479 = vsel %vm201, %v474, %v478
      %v480 = vshrl.u32 %v179, 16
      %v482 = vrot.slane %v480, 4
      %v483 = vor.u32 %v482, %v478
      %v484 = vrot.slane %v483, 4
      %v486 = vshll.u32 %v180, 16
      %v488 = vrot.slane %v486, 5
      %v489 = vsel %vm201, %v484, %v488
      %v491 = vshrl.u32 %v181, 16
      %v493 = vrot.slane %v491, 4
      %v494 = vshll.u32 %v181, 16
      %v496 = vrot.slane %v494, 5
      %v497 = vor.u32 %v493, %v496
      %v498 = vrot.slane %v497, 4
      %v500 = vshll.u32 %v182, 16
      %v502 = vrot.slane %v500, 5
      %v503 = vsel %vm201, %v498, %v502
      %v504 = vshrl.u32 %v182, 16
      %v506 = vrot.slane %v504, 4
      %v507 = vor.u32 %v506, %v502
      %v508 = vrot.slane %v507, 4
      %v510 = vshll.u32 %v183, 16
      %v512 = vrot.slane %v510, 5
      %v513 = vsel %vm201, %v508, %v512
      %v515 = vshrl.u32 %v184, 16
      %v517 = vrot.slane %v515, 4
      %v518 = vshll.u32 %v184, 16
      %v520 = vrot.slane %v518, 5
      %v521 = vor.u32 %v517, %v520
      %v522 = vrot.slane %v521, 4
      %v524 = vshll.u32 %v185, 16
      %v526 = vrot.slane %v524, 5
      %v527 = vsel %vm201, %v522, %v526
      %v528 = vshrl.u32 %v185, 16
      %v530 = vrot.slane %v528, 4
      %v531 = vor.u32 %v530, %v526
      %v532 = vrot.slane %v531, 4
      %v534 = vshll.u32 %v186, 16
      %v536 = vrot.slane %v534, 5
      %v537 = vsel %vm201, %v532, %v536
      %v539 = vshrl.u32 %v187, 16
      %v541 = vrot.slane %v539, 4
      %v542 = vshll.u32 %v187, 16
      %v544 = vrot.slane %v542, 5
      %v545 = vor.u32 %v541, %v544
      %v546 = vrot.slane %v545, 4
      %v548 = vshll.u32 %v188, 16
      %v550 = vrot.slane %v548, 5
      %v551 = vsel %vm201, %v546, %v550
      %v552 = vshrl.u32 %v188, 16
      %v554 = vrot.slane %v552, 4
      %v555 = vor.u32 %v554, %v550
      %v556 = vrot.slane %v555, 4
      %v558 = vshll.u32 %v189, 16
      %v560 = vrot.slane %v558, 5
      %v561 = vsel %vm201, %v556, %v560
      %v563 = vshrl.u32 %v190, 16
      %v565 = vrot.slane %v563, 4
      %v566 = vshll.u32 %v190, 16
      %v568 = vrot.slane %v566, 5
      %v569 = vor.u32 %v565, %v568
      %v570 = vrot.slane %v569, 4
      %v572 = vshll.u32 %v191, 16
      %v574 = vrot.slane %v572, 5
      %v575 = vsel %vm201, %v570, %v574
      %v576 = vshrl.u32 %v191, 16
      %v578 = vrot.slane %v576, 4
      %v579 = vor.u32 %v578, %v574
      %v580 = vrot.slane %v579, 4
      %v582 = vshll.u32 %v192, 16
      %v584 = vrot.slane %v582, 5
      %v585 = vsel %vm201, %v580, %v584
      %v587 = vshrl.u32 %v193, 16
      %v589 = vrot.slane %v587, 4
      %v590 = vshll.u32 %v193, 16
      %v592 = vrot.slane %v590, 5
      %v593 = vor.u32 %v589, %v592
      %v594 = vrot.slane %v593, 4
      %v596 = vshll.u32 %v194, 16
      %v598 = vrot.slane %v596, 5
      %v599 = vsel %vm201, %v594, %v598
      %v600 = vshrl.u32 %v194, 16
      %v602 = vrot.slane %v600, 4
      %v603 = vor.u32 %v602, %v598
      %v604 = vrot.slane %v603, 4
      %v606 = vshll.u32 %v195, 16
      %v608 = vrot.slane %v606, 5
      %v609 = vsel %vm201, %v604, %v608
      %v611 = vshrl.u32 %v196, 16
      %v613 = vrot.slane %v611, 4
      %v614 = vshll.u32 %v196, 16
      %v616 = vrot.slane %v614, 5
      %v617 = vor.u32 %v613, %v616
      %v618 = vrot.slane %v617, 4
      %v620 = vshll.u32 %v197, 16
      %v622 = vrot.slane %v620, 5
      %v623 = vsel %vm201, %v618, %v622
      %v624 = vshrl.u32 %v197, 16
      %v626 = vrot.slane %v624, 4
      %v627 = vor.u32 %v626, %v622
      %v628 = vrot.slane %v627, 4
      %v630 = vshll.u32 %v198, 16
      %v632 = vrot.slane %v630, 5
      %v633 = vsel %vm201, %v628, %v632
      %vm688 = vcmask 1042432
      %vm689 = vcmask 1046532
      %vm690 = vmor %vm688, %vm689
      %v691 = vrot.slane %v145, 5
      %v692 = vrot.slane %v691, 4
      %v693 = vrot.slane %v146, 5
      %v694 = vsel %vm690, %v692, %v693
      %v695 = vrot.slane %v693, 4
      %v696 = vrot.slane %v147, 5
      %v697 = vsel %vm690, %v695, %v696
      %v698 = vrot.slane %v148, 5
      %v699 = vrot.slane %v698, 4
      %v700 = vrot.slane %v149, 5
      %v701 = vsel %vm690, %v699, %v700
      %v702 = vrot.slane %v700, 4
      %v703 = vrot.slane %v150, 5
      %v704 = vsel %vm690, %v702, %v703
      %v705 = vrot.slane %v151, 5
      %v706 = vrot.slane %v705, 4
      %v707 = vrot.slane %v152, 5
      %v708 = vsel %vm690, %v706, %v707
      %v709 = vrot.slane %v707, 4
      %v710 = vrot.slane %v153, 5
      %v711 = vsel %vm690, %v709, %v710
      %v712 = vrot.slane %v154, 5
      %v713 = vrot.slane %v712, 4
      %v714 = vrot.slane %v155, 5
      %v715 = vsel %vm690, %v713, %v714
      %v716 = vrot.slane %v714, 4
      %v717 = vrot.slane %v156, 5
      %v718 = vsel %vm690, %v716, %v717
      %v719 = vrot.slane %v157, 5
      %v720 = vrot.slane %v719, 4
      %v721 = vrot.slane %v158, 5
      %v722 = vsel %vm690, %v720, %v721
      %v723 = vrot.slane %v721, 4
      %v724 = vrot.slane %v159, 5
      %v725 = vsel %vm690, %v723, %v724
      %v726 = vrot.slane %v160, 5
      %v727 = vrot.slane %v726, 4
      %v728 = vrot.slane %v161, 5
      %v729 = vsel %vm690, %v727, %v728
      %v730 = vrot.slane %v728, 4
      %v731 = vrot.slane %v162, 5
      %v732 = vsel %vm690, %v730, %v731
      %v733 = vrot.slane %v163, 5
      %v734 = vrot.slane %v733, 4
      %v735 = vrot.slane %v164, 5
      %v736 = vsel %vm690, %v734, %v735
      %v737 = vrot.slane %v735, 4
      %v738 = vrot.slane %v165, 5
      %v739 = vsel %vm690, %v737, %v738
      %v740 = vrot.slane %v166, 5
      %v741 = vrot.slane %v740, 4
      %v742 = vrot.slane %v167, 5
      %v743 = vsel %vm690, %v741, %v742
      %v744 = vrot.slane %v742, 4
      %v745 = vrot.slane %v168, 5
      %v746 = vsel %vm690, %v744, %v745
      %v747 = vrot.slane %v169, 5
      %v748 = vrot.slane %v747, 4
      %v749 = vrot.slane %v170, 5
      %v750 = vsel %vm690, %v748, %v749
      %v751 = vrot.slane %v749, 4
      %v752 = vrot.slane %v171, 5
      %v753 = vsel %vm690, %v751, %v752
      %v754 = vrot.slane %v172, 5
      %v755 = vrot.slane %v754, 4
      %v756 = vrot.slane %v173, 5
      %v757 = vsel %vm690, %v755, %v756
      %v758 = vrot.slane %v756, 4
      %v759 = vrot.slane %v174, 5
      %v760 = vsel %vm690, %v758, %v759
      %v761 = vrot.slane %v175, 5
      %v762 = vrot.slane %v761, 4
      %v763 = vrot.slane %v176, 5
      %v764 = vsel %vm690, %v762, %v763
      %v765 = vrot.slane %v763, 4
      %v766 = vrot.slane %v177, 5
      %v767 = vsel %vm690, %v765, %v766
      %v768 = vrot.slane %v178, 5
      %v769 = vrot.slane %v768, 4
      %v770 = vrot.slane %v179, 5
      %v771 = vsel %vm690, %v769, %v770
      %v772 = vrot.slane %v770, 4
      %v773 = vrot.slane %v180, 5
      %v774 = vsel %vm690, %v772, %v773
      %v775 = vrot.slane %v181, 5
      %v776 = vrot.slane %v775, 4
      %v777 = vrot.slane %v182, 5
      %v778 = vsel %vm690, %v776, %v777
      %v779 = vrot.slane %v777, 4
      %v780 = vrot.slane %v183, 5
      %v781 = vsel %vm690, %v779, %v780
      %v782 = vrot.slane %v184, 5
      %v783 = vrot.slane %v782, 4
      %v784 = vrot.slane %v185, 5
      %v785 = vsel %vm690, %v783, %v784
      %v786 = vrot.slane %v784, 4
      %v787 = vrot.slane %v186, 5
      %v788 = vsel %vm690, %v786, %v787
      %v789 = vrot.slane %v187, 5
      %v790 = vrot.slane %v789, 4
      %v791 = vrot.slane %v188, 5
      %v792 = vsel %vm690, %v790, %v791
      %v793 = vrot.slane %v791, 4
      %v794 = vrot.slane %v189, 5
      %v795 = vsel %vm690, %v793, %v794
      %v796 = vrot.slane %v190, 5
      %v797 = vrot.slane %v796, 4
      %v798 = vrot.slane %v191, 5
      %v799 = vsel %vm690, %v797, %v798
      %v800 = vrot.slane %v798, 4
      %v801 = vrot.slane %v192, 5
      %v802 = vsel %vm690, %v800, %v801
      %v803 = vrot.slane %v193, 5
      %v804 = vrot.slane %v803, 4
      %v805 = vrot.slane %v194, 5
      %v806 = vsel %vm690, %v804, %v805
      %v807 = vrot.slane %v805, 4
      %v808 = vrot.slane %v195, 5
      %v809 = vsel %vm690, %v807, %v808
      %v810 = vrot.slane %v196, 5
      %v811 = vrot.slane %v810, 4
      %v812 = vrot.slane %v197, 5
      %v813 = vsel %vm690, %v811, %v812
      %v814 = vrot.slane %v812, 4
      %v815 = vrot.slane %v198, 5
      %v816 = vsel %vm690, %v814, %v815
      %v817 = vld [vmem:[%s1] sm:$0xff]
      %v818 = vld [vmem:[%s1 + $0x8] sm:$0xff]
      %v819 = vpack.c.bf16 %v818, %v817
      %v820 = vld [vmem:[%s1 + $0x10] sm:$0xff]
      %v821 = vld [vmem:[%s1 + $0x18] sm:$0xff]
      %v822 = vpack.c.bf16 %v821, %v820
      %v823 = vunpack.c.l.b16 %v215
      %v824 = vunpack.c.l.b16 %v225
      %v825 = vunpack.c.l.b16 %v239
      %v826 = vunpack.c.l.b16 %v249
      %v827 = vunpack.c.l.b16 %v263
      %v828 = vunpack.c.l.b16 %v273
      %v829 = vunpack.c.l.b16 %v287
      %v830 = vunpack.c.l.b16 %v297
      %v831 = vunpack.c.l.b16 %v311
      %v832 = vunpack.c.l.b16 %v321
      %v833 = vunpack.c.l.b16 %v335
      %v834 = vunpack.c.l.b16 %v345
      %v835 = vunpack.c.l.b16 %v359
      %v836 = vunpack.c.l.b16 %v369
      %v837 = vunpack.c.l.b16 %v383
      %v838 = vunpack.c.l.b16 %v393
      %v839 = vunpack.c.l.b16 %v407
      %v840 = vunpack.c.l.b16 %v417
      %v841 = vunpack.c.l.b16 %v431
      %v842 = vunpack.c.l.b16 %v441
      %v843 = vunpack.c.l.b16 %v455
      %v844 = vunpack.c.l.b16 %v465
      %v845 = vunpack.c.l.b16 %v479
      %v846 = vunpack.c.l.b16 %v489
      %v847 = vunpack.c.l.b16 %v503
      %v848 = vunpack.c.l.b16 %v513
      %v849 = vunpack.c.l.b16 %v527
      %v850 = vunpack.c.l.b16 %v537
      %v851 = vunpack.c.l.b16 %v551
      %v852 = vunpack.c.l.b16 %v561
      %v853 = vunpack.c.l.b16 %v575
      %v854 = vunpack.c.l.b16 %v585
      %v855 = vpack.c.b16 %v824, %v823
      %v856 = vpack.c.b16 %v826, %v825
      %v857 = vpack.c.b16 %v828, %v827
      %v858 = vpack.c.b16 %v830, %v829
      %v859 = vpack.c.b16 %v832, %v831
      %v860 = vpack.c.b16 %v834, %v833
      %v861 = vpack.c.b16 %v836, %v835
      %v862 = vpack.c.b16 %v838, %v837
      %v863 = vpack.c.b16 %v840, %v839
      %v864 = vpack.c.b16 %v842, %v841
      %v865 = vpack.c.b16 %v844, %v843
      %v866 = vpack.c.b16 %v846, %v845
      %v867 = vpack.c.b16 %v848, %v847
      %v868 = vpack.c.b16 %v850, %v849
      %v869 = vpack.c.b16 %v852, %v851
      %v870 = vpack.c.b16 %v854, %v853
      %vm871 = vcmask 130048
      %v873 = vsel %vm871, %v855, 0
      %v876 = vsel %vm871, %v856, 0
      %v879 = vsel %vm871, %v857, 0
      %v882 = vsel %vm871, %v858, 0
      %v885 = vsel %vm871, %v859, 0
      %v888 = vsel %vm871, %v860, 0
      %v891 = vsel %vm871, %v861, 0
      %v894 = vsel %vm871, %v862, 0
      %v897 = vsel %vm871, %v863, 0
      %v900 = vsel %vm871, %v864, 0
      %v903 = vsel %vm871, %v865, 0
      %v906 = vsel %vm871, %v866, 0
      %v909 = vsel %vm871, %v867, 0
      %v912 = vsel %vm871, %v868, 0
      %v915 = vsel %vm871, %v869, 0
      %v918 = vsel %vm871, %v870, 0
      %920 = vmatpush.bf16.msra.mxu0 0
      %921 = vmatpush.bf16.msra.mxu0 0
      %922 = vmatpush.bf16.msra.mxu0 0
      %923 = vmatpush.bf16.msra.mxu0 0
      %924 = vmatpush.bf16.msra.mxu0 0
      %925 = vmatpush.bf16.msra.mxu0 0
      %926 = vmatpush.bf16.msra.mxu0 0
      %927 = vmatpush.bf16.msra.mxu0 %v822
      %928 = vmatmul.bf16.gmra.mxu0 %v873
      %v929 = vpop.f32.mrf.mxu0
      %v930 = vadd.f32 0.0, %v929
      %v931 = vpop.f32.mrf.mxu0
      %v932 = vadd.f32 0.0, %v931
      %933 = vmatmul.bf16.gmra.mxu0 %v876
      %v934 = vpop.f32.mrf.mxu0
      %v935 = vadd.f32 0.0, %v934
      %v936 = vpop.f32.mrf.mxu0
      %v937 = vadd.f32 0.0, %v936
      %938 = vmatmul.bf16.gmra.mxu0 %v879
      %v939 = vpop.f32.mrf.mxu0
      %v940 = vadd.f32 0.0, %v939
      %v941 = vpop.f32.mrf.mxu0
      %v942 = vadd.f32 0.0, %v941
      %943 = vmatmul.bf16.gmra.mxu0 %v882
      %v944 = vpop.f32.mrf.mxu0
      %v945 = vadd.f32 0.0, %v944
      %v946 = vpop.f32.mrf.mxu0
      %v947 = vadd.f32 0.0, %v946
      %948 = vmatmul.bf16.gmra.mxu0 %v885
      %v949 = vpop.f32.mrf.mxu0
      %v950 = vadd.f32 0.0, %v949
      %v951 = vpop.f32.mrf.mxu0
      %v952 = vadd.f32 0.0, %v951
      %953 = vmatmul.bf16.gmra.mxu0 %v888
      %v954 = vpop.f32.mrf.mxu0
      %v955 = vadd.f32 0.0, %v954
      %v956 = vpop.f32.mrf.mxu0
      %v957 = vadd.f32 0.0, %v956
      %958 = vmatmul.bf16.gmra.mxu0 %v891
      %v959 = vpop.f32.mrf.mxu0
      %v960 = vadd.f32 0.0, %v959
      %v961 = vpop.f32.mrf.mxu0
      %v962 = vadd.f32 0.0, %v961
      %963 = vmatmul.bf16.gmra.mxu0 %v894
      %v964 = vpop.f32.mrf.mxu0
      %v965 = vadd.f32 0.0, %v964
      %v966 = vpop.f32.mrf.mxu0
      %v967 = vadd.f32 0.0, %v966
      %968 = vmatmul.bf16.gmra.mxu0 %v897
      %v969 = vpop.f32.mrf.mxu0
      %v970 = vadd.f32 0.0, %v969
      %v971 = vpop.f32.mrf.mxu0
      %v972 = vadd.f32 0.0, %v971
      %973 = vmatmul.bf16.gmra.mxu0 %v900
      %v974 = vpop.f32.mrf.mxu0
      %v975 = vadd.f32 0.0, %v974
      %v976 = vpop.f32.mrf.mxu0
      %v977 = vadd.f32 0.0, %v976
      %978 = vmatmul.bf16.gmra.mxu0 %v903
      %v979 = vpop.f32.mrf.mxu0
      %v980 = vadd.f32 0.0, %v979
      %v981 = vpop.f32.mrf.mxu0
      %v982 = vadd.f32 0.0, %v981
      %983 = vmatmul.bf16.gmra.mxu0 %v906
      %v984 = vpop.f32.mrf.mxu0
      %v985 = vadd.f32 0.0, %v984
      %v986 = vpop.f32.mrf.mxu0
      %v987 = vadd.f32 0.0, %v986
      %988 = vmatmul.bf16.gmra.mxu0 %v909
      %v989 = vpop.f32.mrf.mxu0
      %v990 = vadd.f32 0.0, %v989
      %v991 = vpop.f32.mrf.mxu0
      %v992 = vadd.f32 0.0, %v991
      %993 = vmatmul.bf16.gmra.mxu0 %v912
      %v994 = vpop.f32.mrf.mxu0
      %v995 = vadd.f32 0.0, %v994
      %v996 = vpop.f32.mrf.mxu0
      %v997 = vadd.f32 0.0, %v996
      %998 = vmatmul.bf16.gmra.mxu0 %v915
      %v999 = vpop.f32.mrf.mxu0
      %v1000 = vadd.f32 0.0, %v999
      %v1001 = vpop.f32.mrf.mxu0
      %v1002 = vadd.f32 0.0, %v1001
      %1003 = vmatmul.bf16.gmra.mxu0 %v918
      %v1004 = vpop.f32.mrf.mxu0
      %v1005 = vadd.f32 0.0, %v1004
      %v1006 = vpop.f32.mrf.mxu0
      %v1007 = vadd.f32 0.0, %v1006
      %1008 = vdwg.mxu0
      %v1009 = vunpack.c.l.b16 %v145
      %v1010 = vunpack.c.l.b16 %v146
      %v1011 = vunpack.c.l.b16 %v148
      %v1012 = vunpack.c.l.b16 %v149
      %v1013 = vunpack.c.l.b16 %v151
      %v1014 = vunpack.c.l.b16 %v152
      %v1015 = vunpack.c.l.b16 %v154
      %v1016 = vunpack.c.l.b16 %v155
      %v1017 = vunpack.c.l.b16 %v157
      %v1018 = vunpack.c.l.b16 %v158
      %v1019 = vunpack.c.l.b16 %v160
      %v1020 = vunpack.c.l.b16 %v161
      %v1021 = vunpack.c.l.b16 %v163
      %v1022 = vunpack.c.l.b16 %v164
      %v1023 = vunpack.c.l.b16 %v166
      %v1024 = vunpack.c.l.b16 %v167
      %v1025 = vunpack.c.l.b16 %v169
      %v1026 = vunpack.c.l.b16 %v170
      %v1027 = vunpack.c.l.b16 %v172
      %v1028 = vunpack.c.l.b16 %v173
      %v1029 = vunpack.c.l.b16 %v175
      %v1030 = vunpack.c.l.b16 %v176
      %v1031 = vunpack.c.l.b16 %v178
      %v1032 = vunpack.c.l.b16 %v179
      %v1033 = vunpack.c.l.b16 %v181
      %v1034 = vunpack.c.l.b16 %v182
      %v1035 = vunpack.c.l.b16 %v184
      %v1036 = vunpack.c.l.b16 %v185
      %v1037 = vunpack.c.l.b16 %v187
      %v1038 = vunpack.c.l.b16 %v188
      %v1039 = vunpack.c.l.b16 %v190
      %v1040 = vunpack.c.l.b16 %v191
      %v1041 = vpack.c.b16 %v1010, %v1009
      %v1042 = vpack.c.b16 %v1012, %v1011
      %v1043 = vpack.c.b16 %v1014, %v1013
      %v1044 = vpack.c.b16 %v1016, %v1015
      %v1045 = vpack.c.b16 %v1018, %v1017
      %v1046 = vpack.c.b16 %v1020, %v1019
      %v1047 = vpack.c.b16 %v1022, %v1021
      %v1048 = vpack.c.b16 %v1024, %v1023
      %v1049 = vpack.c.b16 %v1026, %v1025
      %v1050 = vpack.c.b16 %v1028, %v1027
      %v1051 = vpack.c.b16 %v1030, %v1029
      %v1052 = vpack.c.b16 %v1032, %v1031
      %v1053 = vpack.c.b16 %v1034, %v1033
      %v1054 = vpack.c.b16 %v1036, %v1035
      %v1055 = vpack.c.b16 %v1038, %v1037
      %v1056 = vpack.c.b16 %v1040, %v1039
      %v1058 = vsel %vm871, %v1041, 0
      %v1061 = vsel %vm871, %v1042, 0
      %v1064 = vsel %vm871, %v1043, 0
      %v1067 = vsel %vm871, %v1044, 0
      %v1070 = vsel %vm871, %v1045, 0
      %v1073 = vsel %vm871, %v1046, 0
      %v1076 = vsel %vm871, %v1047, 0
      %v1079 = vsel %vm871, %v1048, 0
      %v1082 = vsel %vm871, %v1049, 0
      %v1085 = vsel %vm871, %v1050, 0
      %v1088 = vsel %vm871, %v1051, 0
      %v1091 = vsel %vm871, %v1052, 0
      %v1094 = vsel %vm871, %v1053, 0
      %v1097 = vsel %vm871, %v1054, 0
      %v1100 = vsel %vm871, %v1055, 0
      %v1103 = vsel %vm871, %v1056, 0
      %1105 = vmatpush.bf16.msra.mxu0 0
      %1106 = vmatpush.bf16.msra.mxu0 0
      %1107 = vmatpush.bf16.msra.mxu0 0
      %1108 = vmatpush.bf16.msra.mxu0 0
      %1109 = vmatpush.bf16.msra.mxu0 0
      %1110 = vmatpush.bf16.msra.mxu0 0
      %1111 = vmatpush.bf16.msra.mxu0 0
      %1112 = vmatpush.bf16.msra.mxu0 %v819
      %1113 = vmatmul.bf16.gmra.mxu0 %v1058
      %v1114 = vpop.f32.mrf.mxu0
      %v1115 = vadd.f32 %v930, %v1114
      %v1116 = vpop.f32.mrf.mxu0
      %v1117 = vadd.f32 %v932, %v1116
      %1118 = vmatmul.bf16.gmra.mxu0 %v1061
      %v1119 = vpop.f32.mrf.mxu0
      %v1120 = vadd.f32 %v935, %v1119
      %v1121 = vpop.f32.mrf.mxu0
      %v1122 = vadd.f32 %v937, %v1121
      %1123 = vmatmul.bf16.gmra.mxu0 %v1064
      %v1124 = vpop.f32.mrf.mxu0
      %v1125 = vadd.f32 %v940, %v1124
      %v1126 = vpop.f32.mrf.mxu0
      %v1127 = vadd.f32 %v942, %v1126
      %1128 = vmatmul.bf16.gmra.mxu0 %v1067
      %v1129 = vpop.f32.mrf.mxu0
      %v1130 = vadd.f32 %v945, %v1129
      %v1131 = vpop.f32.mrf.mxu0
      %v1132 = vadd.f32 %v947, %v1131
      %1133 = vmatmul.bf16.gmra.mxu0 %v1070
      %v1134 = vpop.f32.mrf.mxu0
      %v1135 = vadd.f32 %v950, %v1134
      %v1136 = vpop.f32.mrf.mxu0
      %v1137 = vadd.f32 %v952, %v1136
      %1138 = vmatmul.bf16.gmra.mxu0 %v1073
      %v1139 = vpop.f32.mrf.mxu0
      %v1140 = vadd.f32 %v955, %v1139
      %v1141 = vpop.f32.mrf.mxu0
      %v1142 = vadd.f32 %v957, %v1141
      %1143 = vmatmul.bf16.gmra.mxu0 %v1076
      %v1144 = vpop.f32.mrf.mxu0
      %v1145 = vadd.f32 %v960, %v1144
      %v1146 = vpop.f32.mrf.mxu0
      %v1147 = vadd.f32 %v962, %v1146
      %1148 = vmatmul.bf16.gmra.mxu0 %v1079
      %v1149 = vpop.f32.mrf.mxu0
      %v1150 = vadd.f32 %v965, %v1149
      %v1151 = vpop.f32.mrf.mxu0
      %v1152 = vadd.f32 %v967, %v1151
      %1153 = vmatmul.bf16.gmra.mxu0 %v1082
      %v1154 = vpop.f32.mrf.mxu0
      %v1155 = vadd.f32 %v970, %v1154
      %v1156 = vpop.f32.mrf.mxu0
      %v1157 = vadd.f32 %v972, %v1156
      %1158 = vmatmul.bf16.gmra.mxu0 %v1085
      %v1159 = vpop.f32.mrf.mxu0
      %v1160 = vadd.f32 %v975, %v1159
      %v1161 = vpop.f32.mrf.mxu0
      %v1162 = vadd.f32 %v977, %v1161
      %1163 = vmatmul.bf16.gmra.mxu0 %v1088
      %v1164 = vpop.f32.mrf.mxu0
      %v1165 = vadd.f32 %v980, %v1164
      %v1166 = vpop.f32.mrf.mxu0
      %v1167 = vadd.f32 %v982, %v1166
      %1168 = vmatmul.bf16.gmra.mxu0 %v1091
      %v1169 = vpop.f32.mrf.mxu0
      %v1170 = vadd.f32 %v985, %v1169
      %v1171 = vpop.f32.mrf.mxu0
      %v1172 = vadd.f32 %v987, %v1171
      %1173 = vmatmul.bf16.gmra.mxu0 %v1094
      %v1174 = vpop.f32.mrf.mxu0
      %v1175 = vadd.f32 %v990, %v1174
      %v1176 = vpop.f32.mrf.mxu0
      %v1177 = vadd.f32 %v992, %v1176
      %1178 = vmatmul.bf16.gmra.mxu0 %v1097
      %v1179 = vpop.f32.mrf.mxu0
      %v1180 = vadd.f32 %v995, %v1179
      %v1181 = vpop.f32.mrf.mxu0
      %v1182 = vadd.f32 %v997, %v1181
      %1183 = vmatmul.bf16.gmra.mxu0 %v1100
      %v1184 = vpop.f32.mrf.mxu0
      %v1185 = vadd.f32 %v1000, %v1184
      %v1186 = vpop.f32.mrf.mxu0
      %v1187 = vadd.f32 %v1002, %v1186
      %1188 = vmatmul.bf16.gmra.mxu0 %v1103
      %v1189 = vpop.f32.mrf.mxu0
      %v1190 = vadd.f32 %v1005, %v1189
      %v1191 = vpop.f32.mrf.mxu0
      %v1192 = vadd.f32 %v1007, %v1191
      %1193 = vdwg.mxu0
      %v1194 = vld [vmem:[%s1 + $0x20] sm:$0xff]
      %v1195 = vld [vmem:[%s1 + $0x28] sm:$0xff]
      %v1196 = vpack.c.bf16 %v1195, %v1194
      %v1197 = vunpack.c.l.b16 %v694
      %v1198 = vunpack.c.l.b16 %v697
      %v1199 = vunpack.c.l.b16 %v701
      %v1200 = vunpack.c.l.b16 %v704
      %v1201 = vunpack.c.l.b16 %v708
      %v1202 = vunpack.c.l.b16 %v711
      %v1203 = vunpack.c.l.b16 %v715
      %v1204 = vunpack.c.l.b16 %v718
      %v1205 = vunpack.c.l.b16 %v722
      %v1206 = vunpack.c.l.b16 %v725
      %v1207 = vunpack.c.l.b16 %v729
      %v1208 = vunpack.c.l.b16 %v732
      %v1209 = vunpack.c.l.b16 %v736
      %v1210 = vunpack.c.l.b16 %v739
      %v1211 = vunpack.c.l.b16 %v743
      %v1212 = vunpack.c.l.b16 %v746
      %v1213 = vunpack.c.l.b16 %v750
      %v1214 = vunpack.c.l.b16 %v753
      %v1215 = vunpack.c.l.b16 %v757
      %v1216 = vunpack.c.l.b16 %v760
      %v1217 = vunpack.c.l.b16 %v764
      %v1218 = vunpack.c.l.b16 %v767
      %v1219 = vunpack.c.l.b16 %v771
      %v1220 = vunpack.c.l.b16 %v774
      %v1221 = vunpack.c.l.b16 %v778
      %v1222 = vunpack.c.l.b16 %v781
      %v1223 = vunpack.c.l.b16 %v785
      %v1224 = vunpack.c.l.b16 %v788
      %v1225 = vunpack.c.l.b16 %v792
      %v1226 = vunpack.c.l.b16 %v795
      %v1227 = vunpack.c.l.b16 %v799
      %v1228 = vunpack.c.l.b16 %v802
      %v1229 = vpack.c.b16 %v1198, %v1197
      %v1230 = vpack.c.b16 %v1200, %v1199
      %v1231 = vpack.c.b16 %v1202, %v1201
      %v1232 = vpack.c.b16 %v1204, %v1203
      %v1233 = vpack.c.b16 %v1206, %v1205
      %v1234 = vpack.c.b16 %v1208, %v1207
      %v1235 = vpack.c.b16 %v1210, %v1209
      %v1236 = vpack.c.b16 %v1212, %v1211
      %v1237 = vpack.c.b16 %v1214, %v1213
      %v1238 = vpack.c.b16 %v1216, %v1215
      %v1239 = vpack.c.b16 %v1218, %v1217
      %v1240 = vpack.c.b16 %v1220, %v1219
      %v1241 = vpack.c.b16 %v1222, %v1221
      %v1242 = vpack.c.b16 %v1224, %v1223
      %v1243 = vpack.c.b16 %v1226, %v1225
      %v1244 = vpack.c.b16 %v1228, %v1227
      %v1246 = vsel %vm871, %v1229, 0
      %v1249 = vsel %vm871, %v1230, 0
      %v1252 = vsel %vm871, %v1231, 0
      %v1255 = vsel %vm871, %v1232, 0
      %v1258 = vsel %vm871, %v1233, 0
      %v1261 = vsel %vm871, %v1234, 0
      %v1264 = vsel %vm871, %v1235, 0
      %v1267 = vsel %vm871, %v1236, 0
      %v1270 = vsel %vm871, %v1237, 0
      %v1273 = vsel %vm871, %v1238, 0
      %v1276 = vsel %vm871, %v1239, 0
      %v1279 = vsel %vm871, %v1240, 0
      %v1282 = vsel %vm871, %v1241, 0
      %v1285 = vsel %vm871, %v1242, 0
      %v1288 = vsel %vm871, %v1243, 0
      %v1291 = vsel %vm871, %v1244, 0
      %1293 = vmatpush.bf16.msra.mxu0 0
      %1294 = vmatpush.bf16.msra.mxu0 0
      %1295 = vmatpush.bf16.msra.mxu0 0
      %1296 = vmatpush.bf16.msra.mxu0 0
      %1297 = vmatpush.bf16.msra.mxu0 0
      %1298 = vmatpush.bf16.msra.mxu0 0
      %1299 = vmatpush.bf16.msra.mxu0 0
      %1300 = vmatpush.bf16.msra.mxu0 %v1196
      %1301 = vmatmul.bf16.gmra.mxu0 %v1246
      %v1302 = vpop.f32.mrf.mxu0
      %v1303 = vadd.f32 0.0, %v1302
      %v1304 = vpop.f32.mrf.mxu0
      %v1305 = vadd.f32 0.0, %v1304
      %1306 = vmatmul.bf16.gmra.mxu0 %v1249
      %v1307 = vpop.f32.mrf.mxu0
      %v1308 = vadd.f32 0.0, %v1307
      %v1309 = vpop.f32.mrf.mxu0
      %v1310 = vadd.f32 0.0, %v1309
      %1311 = vmatmul.bf16.gmra.mxu0 %v1252
      %v1312 = vpop.f32.mrf.mxu0
      %v1313 = vadd.f32 0.0, %v1312
      %v1314 = vpop.f32.mrf.mxu0
      %v1315 = vadd.f32 0.0, %v1314
      %1316 = vmatmul.bf16.gmra.mxu0 %v1255
      %v1317 = vpop.f32.mrf.mxu0
      %v1318 = vadd.f32 0.0, %v1317
      %v1319 = vpop.f32.mrf.mxu0
      %v1320 = vadd.f32 0.0, %v1319
      %1321 = vmatmul.bf16.gmra.mxu0 %v1258
      %v1322 = vpop.f32.mrf.mxu0
      %v1323 = vadd.f32 0.0, %v1322
      %v1324 = vpop.f32.mrf.mxu0
      %v1325 = vadd.f32 0.0, %v1324
      %1326 = vmatmul.bf16.gmra.mxu0 %v1261
      %v1327 = vpop.f32.mrf.mxu0
      %v1328 = vadd.f32 0.0, %v1327
      %v1329 = vpop.f32.mrf.mxu0
      %v1330 = vadd.f32 0.0, %v1329
      %1331 = vmatmul.bf16.gmra.mxu0 %v1264
      %v1332 = vpop.f32.mrf.mxu0
      %v1333 = vadd.f32 0.0, %v1332
      %v1334 = vpop.f32.mrf.mxu0
      %v1335 = vadd.f32 0.0, %v1334
      %1336 = vmatmul.bf16.gmra.mxu0 %v1267
      %v1337 = vpop.f32.mrf.mxu0
      %v1338 = vadd.f32 0.0, %v1337
      %v1339 = vpop.f32.mrf.mxu0
      %v1340 = vadd.f32 0.0, %v1339
      %1341 = vmatmul.bf16.gmra.mxu0 %v1270
      %v1342 = vpop.f32.mrf.mxu0
      %v1343 = vadd.f32 0.0, %v1342
      %v1344 = vpop.f32.mrf.mxu0
      %v1345 = vadd.f32 0.0, %v1344
      %1346 = vmatmul.bf16.gmra.mxu0 %v1273
      %v1347 = vpop.f32.mrf.mxu0
      %v1348 = vadd.f32 0.0, %v1347
      %v1349 = vpop.f32.mrf.mxu0
      %v1350 = vadd.f32 0.0, %v1349
      %1351 = vmatmul.bf16.gmra.mxu0 %v1276
      %v1352 = vpop.f32.mrf.mxu0
      %v1353 = vadd.f32 0.0, %v1352
      %v1354 = vpop.f32.mrf.mxu0
      %v1355 = vadd.f32 0.0, %v1354
      %1356 = vmatmul.bf16.gmra.mxu0 %v1279
      %v1357 = vpop.f32.mrf.mxu0
      %v1358 = vadd.f32 0.0, %v1357
      %v1359 = vpop.f32.mrf.mxu0
      %v1360 = vadd.f32 0.0, %v1359
      %1361 = vmatmul.bf16.gmra.mxu0 %v1282
      %v1362 = vpop.f32.mrf.mxu0
      %v1363 = vadd.f32 0.0, %v1362
      %v1364 = vpop.f32.mrf.mxu0
      %v1365 = vadd.f32 0.0, %v1364
      %1366 = vmatmul.bf16.gmra.mxu0 %v1285
      %v1367 = vpop.f32.mrf.mxu0
      %v1368 = vadd.f32 0.0, %v1367
      %v1369 = vpop.f32.mrf.mxu0
      %v1370 = vadd.f32 0.0, %v1369
      %1371 = vmatmul.bf16.gmra.mxu0 %v1288
      %v1372 = vpop.f32.mrf.mxu0
      %v1373 = vadd.f32 0.0, %v1372
      %v1374 = vpop.f32.mrf.mxu0
      %v1375 = vadd.f32 0.0, %v1374
      %1376 = vmatmul.bf16.gmra.mxu0 %v1291
      %v1377 = vpop.f32.mrf.mxu0
      %v1378 = vadd.f32 0.0, %v1377
      %v1379 = vpop.f32.mrf.mxu0
      %v1380 = vadd.f32 0.0, %v1379
      %1381 = vdwg.mxu0
      %v1382 = vadd.f32 %v1115, %v1303
      %v1383 = vadd.f32 %v1117, %v1305
      %v1384 = vadd.f32 %v1120, %v1308
      %v1385 = vadd.f32 %v1122, %v1310
      %v1386 = vadd.f32 %v1125, %v1313
      %v1387 = vadd.f32 %v1127, %v1315
      %v1388 = vadd.f32 %v1130, %v1318
      %v1389 = vadd.f32 %v1132, %v1320
      %v1390 = vadd.f32 %v1135, %v1323
      %v1391 = vadd.f32 %v1137, %v1325
      %v1392 = vadd.f32 %v1140, %v1328
      %v1393 = vadd.f32 %v1142, %v1330
      %v1394 = vadd.f32 %v1145, %v1333
      %v1395 = vadd.f32 %v1147, %v1335
      %v1396 = vadd.f32 %v1150, %v1338
      %v1397 = vadd.f32 %v1152, %v1340
      %v1398 = vadd.f32 %v1155, %v1343
      %v1399 = vadd.f32 %v1157, %v1345
      %v1400 = vadd.f32 %v1160, %v1348
      %v1401 = vadd.f32 %v1162, %v1350
      %v1402 = vadd.f32 %v1165, %v1353
      %v1403 = vadd.f32 %v1167, %v1355
      %v1404 = vadd.f32 %v1170, %v1358
      %v1405 = vadd.f32 %v1172, %v1360
      %v1406 = vadd.f32 %v1175, %v1363
      %v1407 = vadd.f32 %v1177, %v1365
      %v1408 = vadd.f32 %v1180, %v1368
      %v1409 = vadd.f32 %v1182, %v1370
      %v1410 = vadd.f32 %v1185, %v1373
      %v1411 = vadd.f32 %v1187, %v1375
      %v1412 = vadd.f32 %v1190, %v1378
      %v1413 = vadd.f32 %v1192, %v1380
      %v1414 = vld [vmem:[%s1 + $0x30] sm:$0xff]
      %v1415 = vld [vmem:[%s1 + $0x38] sm:$0xff]
      %v1416 = vpack.c.bf16 %v1415, %v1414
      %v1417 = vunpack.c.l.b16 %v193
      %v1418 = vunpack.c.l.b16 %v194
      %v1419 = vpack.c.b16 %v1418, %v1417
      %v1421 = vsel %vm871, %v1419, 0
      %1423 = vmatpush.bf16.msra.mxu0 0
      %1424 = vmatpush.bf16.msra.mxu0 0
      %1425 = vmatpush.bf16.msra.mxu0 0
      %1426 = vmatpush.bf16.msra.mxu0 0
      %1427 = vmatpush.bf16.msra.mxu0 0
      %1428 = vmatpush.bf16.msra.mxu0 0
      %1429 = vmatpush.bf16.msra.mxu0 0
      %1430 = vmatpush.bf16.msra.mxu0 %v1416
      %1431 = vmatmul.bf16.gmra.mxu0 %v1061
      %v1432 = vpop.f32.mrf.mxu0
      %v1433 = vadd.f32 0.0, %v1432
      %v1434 = vpop.f32.mrf.mxu0
      %v1435 = vadd.f32 0.0, %v1434
      %1436 = vmatmul.bf16.gmra.mxu0 %v1064
      %v1437 = vpop.f32.mrf.mxu0
      %v1438 = vadd.f32 0.0, %v1437
      %v1439 = vpop.f32.mrf.mxu0
      %v1440 = vadd.f32 0.0, %v1439
      %1441 = vmatmul.bf16.gmra.mxu0 %v1067
      %v1442 = vpop.f32.mrf.mxu0
      %v1443 = vadd.f32 0.0, %v1442
      %v1444 = vpop.f32.mrf.mxu0
      %v1445 = vadd.f32 0.0, %v1444
      %1446 = vmatmul.bf16.gmra.mxu0 %v1070
      %v1447 = vpop.f32.mrf.mxu0
      %v1448 = vadd.f32 0.0, %v1447
      %v1449 = vpop.f32.mrf.mxu0
      %v1450 = vadd.f32 0.0, %v1449
      %1451 = vmatmul.bf16.gmra.mxu0 %v1073
      %v1452 = vpop.f32.mrf.mxu0
      %v1453 = vadd.f32 0.0, %v1452
      %v1454 = vpop.f32.mrf.mxu0
      %v1455 = vadd.f32 0.0, %v1454
      %1456 = vmatmul.bf16.gmra.mxu0 %v1076
      %v1457 = vpop.f32.mrf.mxu0
      %v1458 = vadd.f32 0.0, %v1457
      %v1459 = vpop.f32.mrf.mxu0
      %v1460 = vadd.f32 0.0, %v1459
      %1461 = vmatmul.bf16.gmra.mxu0 %v1079
      %v1462 = vpop.f32.mrf.mxu0
      %v1463 = vadd.f32 0.0, %v1462
      %v1464 = vpop.f32.mrf.mxu0
      %v1465 = vadd.f32 0.0, %v1464
      %1466 = vmatmul.bf16.gmra.mxu0 %v1082
      %v1467 = vpop.f32.mrf.mxu0
      %v1468 = vadd.f32 0.0, %v1467
      %v1469 = vpop.f32.mrf.mxu0
      %v1470 = vadd.f32 0.0, %v1469
      %1471 = vmatmul.bf16.gmra.mxu0 %v1085
      %v1472 = vpop.f32.mrf.mxu0
      %v1473 = vadd.f32 0.0, %v1472
      %v1474 = vpop.f32.mrf.mxu0
      %v1475 = vadd.f32 0.0, %v1474
      %1476 = vmatmul.bf16.gmra.mxu0 %v1088
      %v1477 = vpop.f32.mrf.mxu0
      %v1478 = vadd.f32 0.0, %v1477
      %v1479 = vpop.f32.mrf.mxu0
      %v1480 = vadd.f32 0.0, %v1479
      %1481 = vmatmul.bf16.gmra.mxu0 %v1091
      %v1482 = vpop.f32.mrf.mxu0
      %v1483 = vadd.f32 0.0, %v1482
      %v1484 = vpop.f32.mrf.mxu0
      %v1485 = vadd.f32 0.0, %v1484
      %1486 = vmatmul.bf16.gmra.mxu0 %v1094
      %v1487 = vpop.f32.mrf.mxu0
      %v1488 = vadd.f32 0.0, %v1487
      %v1489 = vpop.f32.mrf.mxu0
      %v1490 = vadd.f32 0.0, %v1489
      %1491 = vmatmul.bf16.gmra.mxu0 %v1097
      %v1492 = vpop.f32.mrf.mxu0
      %v1493 = vadd.f32 0.0, %v1492
      %v1494 = vpop.f32.mrf.mxu0
      %v1495 = vadd.f32 0.0, %v1494
      %1496 = vmatmul.bf16.gmra.mxu0 %v1100
      %v1497 = vpop.f32.mrf.mxu0
      %v1498 = vadd.f32 0.0, %v1497
      %v1499 = vpop.f32.mrf.mxu0
      %v1500 = vadd.f32 0.0, %v1499
      %1501 = vmatmul.bf16.gmra.mxu0 %v1103
      %v1502 = vpop.f32.mrf.mxu0
      %v1503 = vadd.f32 0.0, %v1502
      %v1504 = vpop.f32.mrf.mxu0
      %v1505 = vadd.f32 0.0, %v1504
      %1506 = vmatmul.bf16.gmra.mxu0 %v1421
      %v1507 = vpop.f32.mrf.mxu0
      %v1508 = vadd.f32 0.0, %v1507
      %v1509 = vpop.f32.mrf.mxu0
      %v1510 = vadd.f32 0.0, %v1509
      %1511 = vdwg.mxu0
      %v1512 = vadd.f32 %v1382, %v1433
      %v1513 = vadd.f32 %v1383, %v1435
      %v1514 = vadd.f32 %v1384, %v1438
      %v1515 = vadd.f32 %v1385, %v1440
      %v1516 = vadd.f32 %v1386, %v1443
      %v1517 = vadd.f32 %v1387, %v1445
      %v1518 = vadd.f32 %v1388, %v1448
      %v1519 = vadd.f32 %v1389, %v1450
      %v1520 = vadd.f32 %v1390, %v1453
      %v1521 = vadd.f32 %v1391, %v1455
      %v1522 = vadd.f32 %v1392, %v1458
      %v1523 = vadd.f32 %v1393, %v1460
      %v1524 = vadd.f32 %v1394, %v1463
      %v1525 = vadd.f32 %v1395, %v1465
      %v1526 = vadd.f32 %v1396, %v1468
      %v1527 = vadd.f32 %v1397, %v1470
      %v1528 = vadd.f32 %v1398, %v1473
      %v1529 = vadd.f32 %v1399, %v1475
      %v1530 = vadd.f32 %v1400, %v1478
      %v1531 = vadd.f32 %v1401, %v1480
      %v1532 = vadd.f32 %v1402, %v1483
      %v1533 = vadd.f32 %v1403, %v1485
      %v1534 = vadd.f32 %v1404, %v1488
      %v1535 = vadd.f32 %v1405, %v1490
      %v1536 = vadd.f32 %v1406, %v1493
      %v1537 = vadd.f32 %v1407, %v1495
      %v1538 = vadd.f32 %v1408, %v1498
      %v1539 = vadd.f32 %v1409, %v1500
      %v1540 = vadd.f32 %v1410, %v1503
      %v1541 = vadd.f32 %v1411, %v1505
      %v1542 = vadd.f32 %v1412, %v1508
      %v1543 = vadd.f32 %v1413, %v1510
      %v1544 = vld [vmem:[%s1 + $0x40] sm:$0xff]
      %v1545 = vld [vmem:[%s1 + $0x48] sm:$0xff]
      %v1546 = vpack.c.bf16 %v1545, %v1544
      %v1547 = vunpack.c.l.b16 %v599
      %v1548 = vunpack.c.l.b16 %v609
      %v1549 = vpack.c.b16 %v1548, %v1547
      %v1551 = vsel %vm871, %v1549, 0
      %1553 = vmatpush.bf16.msra.mxu0 0
      %1554 = vmatpush.bf16.msra.mxu0 0
      %1555 = vmatpush.bf16.msra.mxu0 0
      %1556 = vmatpush.bf16.msra.mxu0 0
      %1557 = vmatpush.bf16.msra.mxu0 0
      %1558 = vmatpush.bf16.msra.mxu0 0
      %1559 = vmatpush.bf16.msra.mxu0 0
      %1560 = vmatpush.bf16.msra.mxu0 %v1546
      %1561 = vmatmul.bf16.gmra.mxu0 %v876
      %v1562 = vpop.f32.mrf.mxu0
      %v1563 = vadd.f32 0.0, %v1562
      %v1564 = vpop.f32.mrf.mxu0
      %v1565 = vadd.f32 0.0, %v1564
      %1566 = vmatmul.bf16.gmra.mxu0 %v879
      %v1567 = vpop.f32.mrf.mxu0
      %v1568 = vadd.f32 0.0, %v1567
      %v1569 = vpop.f32.mrf.mxu0
      %v1570 = vadd.f32 0.0, %v1569
      %1571 = vmatmul.bf16.gmra.mxu0 %v882
      %v1572 = vpop.f32.mrf.mxu0
      %v1573 = vadd.f32 0.0, %v1572
      %v1574 = vpop.f32.mrf.mxu0
      %v1575 = vadd.f32 0.0, %v1574
      %1576 = vmatmul.bf16.gmra.mxu0 %v885
      %v1577 = vpop.f32.mrf.mxu0
      %v1578 = vadd.f32 0.0, %v1577
      %v1579 = vpop.f32.mrf.mxu0
      %v1580 = vadd.f32 0.0, %v1579
      %1581 = vmatmul.bf16.gmra.mxu0 %v888
      %v1582 = vpop.f32.mrf.mxu0
      %v1583 = vadd.f32 0.0, %v1582
      %v1584 = vpop.f32.mrf.mxu0
      %v1585 = vadd.f32 0.0, %v1584
      %1586 = vmatmul.bf16.gmra.mxu0 %v891
      %v1587 = vpop.f32.mrf.mxu0
      %v1588 = vadd.f32 0.0, %v1587
      %v1589 = vpop.f32.mrf.mxu0
      %v1590 = vadd.f32 0.0, %v1589
      %1591 = vmatmul.bf16.gmra.mxu0 %v894
      %v1592 = vpop.f32.mrf.mxu0
      %v1593 = vadd.f32 0.0, %v1592
      %v1594 = vpop.f32.mrf.mxu0
      %v1595 = vadd.f32 0.0, %v1594
      %1596 = vmatmul.bf16.gmra.mxu0 %v897
      %v1597 = vpop.f32.mrf.mxu0
      %v1598 = vadd.f32 0.0, %v1597
      %v1599 = vpop.f32.mrf.mxu0
      %v1600 = vadd.f32 0.0, %v1599
      %1601 = vmatmul.bf16.gmra.mxu0 %v900
      %v1602 = vpop.f32.mrf.mxu0
      %v1603 = vadd.f32 0.0, %v1602
      %v1604 = vpop.f32.mrf.mxu0
      %v1605 = vadd.f32 0.0, %v1604
      %1606 = vmatmul.bf16.gmra.mxu0 %v903
      %v1607 = vpop.f32.mrf.mxu0
      %v1608 = vadd.f32 0.0, %v1607
      %v1609 = vpop.f32.mrf.mxu0
      %v1610 = vadd.f32 0.0, %v1609
      %1611 = vmatmul.bf16.gmra.mxu0 %v906
      %v1612 = vpop.f32.mrf.mxu0
      %v1613 = vadd.f32 0.0, %v1612
      %v1614 = vpop.f32.mrf.mxu0
      %v1615 = vadd.f32 0.0, %v1614
      %1616 = vmatmul.bf16.gmra.mxu0 %v909
      %v1617 = vpop.f32.mrf.mxu0
      %v1618 = vadd.f32 0.0, %v1617
      %v1619 = vpop.f32.mrf.mxu0
      %v1620 = vadd.f32 0.0, %v1619
      %1621 = vmatmul.bf16.gmra.mxu0 %v912
      %v1622 = vpop.f32.mrf.mxu0
      %v1623 = vadd.f32 0.0, %v1622
      %v1624 = vpop.f32.mrf.mxu0
      %v1625 = vadd.f32 0.0, %v1624
      %1626 = vmatmul.bf16.gmra.mxu0 %v915
      %v1627 = vpop.f32.mrf.mxu0
      %v1628 = vadd.f32 0.0, %v1627
      %v1629 = vpop.f32.mrf.mxu0
      %v1630 = vadd.f32 0.0, %v1629
      %1631 = vmatmul.bf16.gmra.mxu0 %v918
      %v1632 = vpop.f32.mrf.mxu0
      %v1633 = vadd.f32 0.0, %v1632
      %v1634 = vpop.f32.mrf.mxu0
      %v1635 = vadd.f32 0.0, %v1634
      %1636 = vmatmul.bf16.gmra.mxu0 %v1551
      %v1637 = vpop.f32.mrf.mxu0
      %v1638 = vadd.f32 0.0, %v1637
      %v1639 = vpop.f32.mrf.mxu0
      %v1640 = vadd.f32 0.0, %v1639
      %1641 = vdwg.mxu0
      %v1642 = vadd.f32 %v1512, %v1563
      %v1643 = vadd.f32 %v1513, %v1565
      %v1644 = vadd.f32 %v1514, %v1568
      %v1645 = vadd.f32 %v1515, %v1570
      %v1646 = vadd.f32 %v1516, %v1573
      %v1647 = vadd.f32 %v1517, %v1575
      %v1648 = vadd.f32 %v1518, %v1578
      %v1649 = vadd.f32 %v1519, %v1580
      %v1650 = vadd.f32 %v1520, %v1583
      %v1651 = vadd.f32 %v1521, %v1585
      %v1652 = vadd.f32 %v1522, %v1588
      %v1653 = vadd.f32 %v1523, %v1590
      %v1654 = vadd.f32 %v1524, %v1593
      %v1655 = vadd.f32 %v1525, %v1595
      %v1656 = vadd.f32 %v1526, %v1598
      %v1657 = vadd.f32 %v1527, %v1600
      %v1658 = vadd.f32 %v1528, %v1603
      %v1659 = vadd.f32 %v1529, %v1605
      %v1660 = vadd.f32 %v1530, %v1608
      %v1661 = vadd.f32 %v1531, %v1610
      %v1662 = vadd.f32 %v1532, %v1613
      %v1663 = vadd.f32 %v1533, %v1615
      %v1664 = vadd.f32 %v1534, %v1618
      %v1665 = vadd.f32 %v1535, %v1620
      %v1666 = vadd.f32 %v1536, %v1623
      %v1667 = vadd.f32 %v1537, %v1625
      %v1668 = vadd.f32 %v1538, %v1628
      %v1669 = vadd.f32 %v1539, %v1630
      %v1670 = vadd.f32 %v1540, %v1633
      %v1671 = vadd.f32 %v1541, %v1635
      %v1672 = vadd.f32 %v1542, %v1638
      %v1673 = vadd.f32 %v1543, %v1640
      %v1674 = vld [vmem:[%s1 + $0x50] sm:$0xff]
      %v1675 = vld [vmem:[%s1 + $0x58] sm:$0xff]
      %v1676 = vpack.c.bf16 %v1675, %v1674
      %v1677 = vunpack.c.l.b16 %v806
      %v1678 = vunpack.c.l.b16 %v809
      %v1679 = vpack.c.b16 %v1678, %v1677
      %v1681 = vsel %vm871, %v1679, 0
      %1683 = vmatpush.bf16.msra.mxu0 0
      %1684 = vmatpush.bf16.msra.mxu0 0
      %1685 = vmatpush.bf16.msra.mxu0 0
      %1686 = vmatpush.bf16.msra.mxu0 0
      %1687 = vmatpush.bf16.msra.mxu0 0
      %1688 = vmatpush.bf16.msra.mxu0 0
      %1689 = vmatpush.bf16.msra.mxu0 0
      %1690 = vmatpush.bf16.msra.mxu0 %v1676
      %1691 = vmatmul.bf16.gmra.mxu0 %v1249
      %v1692 = vpop.f32.mrf.mxu0
      %v1693 = vadd.f32 0.0, %v1692
      %v1694 = vpop.f32.mrf.mxu0
      %v1695 = vadd.f32 0.0, %v1694
      %1696 = vmatmul.bf16.gmra.mxu0 %v1252
      %v1697 = vpop.f32.mrf.mxu0
      %v1698 = vadd.f32 0.0, %v1697
      %v1699 = vpop.f32.mrf.mxu0
      %v1700 = vadd.f32 0.0, %v1699
      %1701 = vmatmul.bf16.gmra.mxu0 %v1255
      %v1702 = vpop.f32.mrf.mxu0
      %v1703 = vadd.f32 0.0, %v1702
      %v1704 = vpop.f32.mrf.mxu0
      %v1705 = vadd.f32 0.0, %v1704
      %1706 = vmatmul.bf16.gmra.mxu0 %v1258
      %v1707 = vpop.f32.mrf.mxu0
      %v1708 = vadd.f32 0.0, %v1707
      %v1709 = vpop.f32.mrf.mxu0
      %v1710 = vadd.f32 0.0, %v1709
      %1711 = vmatmul.bf16.gmra.mxu0 %v1261
      %v1712 = vpop.f32.mrf.mxu0
      %v1713 = vadd.f32 0.0, %v1712
      %v1714 = vpop.f32.mrf.mxu0
      %v1715 = vadd.f32 0.0, %v1714
      %1716 = vmatmul.bf16.gmra.mxu0 %v1264
      %v1717 = vpop.f32.mrf.mxu0
      %v1718 = vadd.f32 0.0, %v1717
      %v1719 = vpop.f32.mrf.mxu0
      %v1720 = vadd.f32 0.0, %v1719
      %1721 = vmatmul.bf16.gmra.mxu0 %v1267
      %v1722 = vpop.f32.mrf.mxu0
      %v1723 = vadd.f32 0.0, %v1722
      %v1724 = vpop.f32.mrf.mxu0
      %v1725 = vadd.f32 0.0, %v1724
      %1726 = vmatmul.bf16.gmra.mxu0 %v1270
      %v1727 = vpop.f32.mrf.mxu0
      %v1728 = vadd.f32 0.0, %v1727
      %v1729 = vpop.f32.mrf.mxu0
      %v1730 = vadd.f32 0.0, %v1729
      %1731 = vmatmul.bf16.gmra.mxu0 %v1273
      %v1732 = vpop.f32.mrf.mxu0
      %v1733 = vadd.f32 0.0, %v1732
      %v1734 = vpop.f32.mrf.mxu0
      %v1735 = vadd.f32 0.0, %v1734
      %1736 = vmatmul.bf16.gmra.mxu0 %v1276
      %v1737 = vpop.f32.mrf.mxu0
      %v1738 = vadd.f32 0.0, %v1737
      %v1739 = vpop.f32.mrf.mxu0
      %v1740 = vadd.f32 0.0, %v1739
      %1741 = vmatmul.bf16.gmra.mxu0 %v1279
      %v1742 = vpop.f32.mrf.mxu0
      %v1743 = vadd.f32 0.0, %v1742
      %v1744 = vpop.f32.mrf.mxu0
      %v1745 = vadd.f32 0.0, %v1744
      %1746 = vmatmul.bf16.gmra.mxu0 %v1282
      %v1747 = vpop.f32.mrf.mxu0
      %v1748 = vadd.f32 0.0, %v1747
      %v1749 = vpop.f32.mrf.mxu0
      %v1750 = vadd.f32 0.0, %v1749
      %1751 = vmatmul.bf16.gmra.mxu0 %v1285
      %v1752 = vpop.f32.mrf.mxu0
      %v1753 = vadd.f32 0.0, %v1752
      %v1754 = vpop.f32.mrf.mxu0
      %v1755 = vadd.f32 0.0, %v1754
      %1756 = vmatmul.bf16.gmra.mxu0 %v1288
      %v1757 = vpop.f32.mrf.mxu0
      %v1758 = vadd.f32 0.0, %v1757
      %v1759 = vpop.f32.mrf.mxu0
      %v1760 = vadd.f32 0.0, %v1759
      %1761 = vmatmul.bf16.gmra.mxu0 %v1291
      %v1762 = vpop.f32.mrf.mxu0
      %v1763 = vadd.f32 0.0, %v1762
      %v1764 = vpop.f32.mrf.mxu0
      %v1765 = vadd.f32 0.0, %v1764
      %1766 = vmatmul.bf16.gmra.mxu0 %v1681
      %v1767 = vpop.f32.mrf.mxu0
      %v1768 = vadd.f32 0.0, %v1767
      %v1769 = vpop.f32.mrf.mxu0
      %v1770 = vadd.f32 0.0, %v1769
      %1771 = vdwg.mxu0
      %v1772 = vadd.f32 %v1642, %v1693
      %v1773 = vadd.f32 %v1643, %v1695
      %v1774 = vadd.f32 %v1644, %v1698
      %v1775 = vadd.f32 %v1645, %v1700
      %v1776 = vadd.f32 %v1646, %v1703
      %v1777 = vadd.f32 %v1647, %v1705
      %v1778 = vadd.f32 %v1648, %v1708
      %v1779 = vadd.f32 %v1649, %v1710
      %v1780 = vadd.f32 %v1650, %v1713
      %v1781 = vadd.f32 %v1651, %v1715
      %v1782 = vadd.f32 %v1652, %v1718
      %v1783 = vadd.f32 %v1653, %v1720
      %v1784 = vadd.f32 %v1654, %v1723
      %v1785 = vadd.f32 %v1655, %v1725
      %v1786 = vadd.f32 %v1656, %v1728
      %v1787 = vadd.f32 %v1657, %v1730
      %v1788 = vadd.f32 %v1658, %v1733
      %v1789 = vadd.f32 %v1659, %v1735
      %v1790 = vadd.f32 %v1660, %v1738
      %v1791 = vadd.f32 %v1661, %v1740
      %v1792 = vadd.f32 %v1662, %v1743
      %v1793 = vadd.f32 %v1663, %v1745
      %v1794 = vadd.f32 %v1664, %v1748
      %v1795 = vadd.f32 %v1665, %v1750
      %v1796 = vadd.f32 %v1666, %v1753
      %v1797 = vadd.f32 %v1667, %v1755
      %v1798 = vadd.f32 %v1668, %v1758
      %v1799 = vadd.f32 %v1669, %v1760
      %v1800 = vadd.f32 %v1670, %v1763
      %v1801 = vadd.f32 %v1671, %v1765
      %v1802 = vadd.f32 %v1672, %v1768
      %v1803 = vadd.f32 %v1673, %v1770
      %v1804 = vld [vmem:[%s1 + $0x60] sm:$0xff]
      %v1805 = vld [vmem:[%s1 + $0x68] sm:$0xff]
      %v1806 = vpack.c.bf16 %v1805, %v1804
      %v1807 = vunpack.c.l.b16 %v196
      %v1808 = vunpack.c.l.b16 %v197
      %v1809 = vpack.c.b16 %v1808, %v1807
      %v1811 = vsel %vm871, %v1809, 0
      %1813 = vmatpush.bf16.msra.mxu0 0
      %1814 = vmatpush.bf16.msra.mxu0 0
      %1815 = vmatpush.bf16.msra.mxu0 0
      %1816 = vmatpush.bf16.msra.mxu0 0
      %1817 = vmatpush.bf16.msra.mxu0 0
      %1818 = vmatpush.bf16.msra.mxu0 0
      %1819 = vmatpush.bf16.msra.mxu0 0
      %1820 = vmatpush.bf16.msra.mxu0 %v1806
      %1821 = vmatmul.bf16.gmra.mxu0 %v1064
      %v1822 = vpop.f32.mrf.mxu0
      %v1823 = vadd.f32 0.0, %v1822
      %v1824 = vpop.f32.mrf.mxu0
      %v1825 = vadd.f32 0.0, %v1824
      %1826 = vmatmul.bf16.gmra.mxu0 %v1067
      %v1827 = vpop.f32.mrf.mxu0
      %v1828 = vadd.f32 0.0, %v1827
      %v1829 = vpop.f32.mrf.mxu0
      %v1830 = vadd.f32 0.0, %v1829
      %1831 = vmatmul.bf16.gmra.mxu0 %v1070
      %v1832 = vpop.f32.mrf.mxu0
      %v1833 = vadd.f32 0.0, %v1832
      %v1834 = vpop.f32.mrf.mxu0
      %v1835 = vadd.f32 0.0, %v1834
      %1836 = vmatmul.bf16.gmra.mxu0 %v1073
      %v1837 = vpop.f32.mrf.mxu0
      %v1838 = vadd.f32 0.0, %v1837
      %v1839 = vpop.f32.mrf.mxu0
      %v1840 = vadd.f32 0.0, %v1839
      %1841 = vmatmul.bf16.gmra.mxu0 %v1076
      %v1842 = vpop.f32.mrf.mxu0
      %v1843 = vadd.f32 0.0, %v1842
      %v1844 = vpop.f32.mrf.mxu0
      %v1845 = vadd.f32 0.0, %v1844
      %1846 = vmatmul.bf16.gmra.mxu0 %v1079
      %v1847 = vpop.f32.mrf.mxu0
      %v1848 = vadd.f32 0.0, %v1847
      %v1849 = vpop.f32.mrf.mxu0
      %v1850 = vadd.f32 0.0, %v1849
      %1851 = vmatmul.bf16.gmra.mxu0 %v1082
      %v1852 = vpop.f32.mrf.mxu0
      %v1853 = vadd.f32 0.0, %v1852
      %v1854 = vpop.f32.mrf.mxu0
      %v1855 = vadd.f32 0.0, %v1854
      %1856 = vmatmul.bf16.gmra.mxu0 %v1085
      %v1857 = vpop.f32.mrf.mxu0
      %v1858 = vadd.f32 0.0, %v1857
      %v1859 = vpop.f32.mrf.mxu0
      %v1860 = vadd.f32 0.0, %v1859
      %1861 = vmatmul.bf16.gmra.mxu0 %v1088
      %v1862 = vpop.f32.mrf.mxu0
      %v1863 = vadd.f32 0.0, %v1862
      %v1864 = vpop.f32.mrf.mxu0
      %v1865 = vadd.f32 0.0, %v1864
      %1866 = vmatmul.bf16.gmra.mxu0 %v1091
      %v1867 = vpop.f32.mrf.mxu0
      %v1868 = vadd.f32 0.0, %v1867
      %v1869 = vpop.f32.mrf.mxu0
      %v1870 = vadd.f32 0.0, %v1869
      %1871 = vmatmul.bf16.gmra.mxu0 %v1094
      %v1872 = vpop.f32.mrf.mxu0
      %v1873 = vadd.f32 0.0, %v1872
      %v1874 = vpop.f32.mrf.mxu0
      %v1875 = vadd.f32 0.0, %v1874
      %1876 = vmatmul.bf16.gmra.mxu0 %v1097
      %v1877 = vpop.f32.mrf.mxu0
      %v1878 = vadd.f32 0.0, %v1877
      %v1879 = vpop.f32.mrf.mxu0
      %v1880 = vadd.f32 0.0, %v1879
      %1881 = vmatmul.bf16.gmra.mxu0 %v1100
      %v1882 = vpop.f32.mrf.mxu0
      %v1883 = vadd.f32 0.0, %v1882
      %v1884 = vpop.f32.mrf.mxu0
      %v1885 = vadd.f32 0.0, %v1884
      %1886 = vmatmul.bf16.gmra.mxu0 %v1103
      %v1887 = vpop.f32.mrf.mxu0
      %v1888 = vadd.f32 0.0, %v1887
      %v1889 = vpop.f32.mrf.mxu0
      %v1890 = vadd.f32 0.0, %v1889
      %1891 = vmatmul.bf16.gmra.mxu0 %v1421
      %v1892 = vpop.f32.mrf.mxu0
      %v1893 = vadd.f32 0.0, %v1892
      %v1894 = vpop.f32.mrf.mxu0
      %v1895 = vadd.f32 0.0, %v1894
      %1896 = vmatmul.bf16.gmra.mxu0 %v1811
      %v1897 = vpop.f32.mrf.mxu0
      %v1898 = vadd.f32 0.0, %v1897
      %v1899 = vpop.f32.mrf.mxu0
      %v1900 = vadd.f32 0.0, %v1899
      %1901 = vdwg.mxu0
      %v1902 = vadd.f32 %v1772, %v1823
      %v1903 = vadd.f32 %v1773, %v1825
      %v1904 = vadd.f32 %v1774, %v1828
      %v1905 = vadd.f32 %v1775, %v1830
      %v1906 = vadd.f32 %v1776, %v1833
      %v1907 = vadd.f32 %v1777, %v1835
      %v1908 = vadd.f32 %v1778, %v1838
      %v1909 = vadd.f32 %v1779, %v1840
      %v1910 = vadd.f32 %v1780, %v1843
      %v1911 = vadd.f32 %v1781, %v1845
      %v1912 = vadd.f32 %v1782, %v1848
      %v1913 = vadd.f32 %v1783, %v1850
      %v1914 = vadd.f32 %v1784, %v1853
      %v1915 = vadd.f32 %v1785, %v1855
      %v1916 = vadd.f32 %v1786, %v1858
      %v1917 = vadd.f32 %v1787, %v1860
      %v1918 = vadd.f32 %v1788, %v1863
      %v1919 = vadd.f32 %v1789, %v1865
      %v1920 = vadd.f32 %v1790, %v1868
      %v1921 = vadd.f32 %v1791, %v1870
      %v1922 = vadd.f32 %v1792, %v1873
      %v1923 = vadd.f32 %v1793, %v1875
      %v1924 = vadd.f32 %v1794, %v1878
      %v1925 = vadd.f32 %v1795, %v1880
      %v1926 = vadd.f32 %v1796, %v1883
      %v1927 = vadd.f32 %v1797, %v1885
      %v1928 = vadd.f32 %v1798, %v1888
      %v1929 = vadd.f32 %v1799, %v1890
      %v1930 = vadd.f32 %v1800, %v1893
      %v1931 = vadd.f32 %v1801, %v1895
      %v1932 = vadd.f32 %v1802, %v1898
      %v1933 = vadd.f32 %v1803, %v1900
      %v1934 = vld [vmem:[%s1 + $0x70] sm:$0xff]
      %v1935 = vld [vmem:[%s1 + $0x78] sm:$0xff]
      %v1936 = vpack.c.bf16 %v1935, %v1934
      %v1937 = vunpack.c.l.b16 %v623
      %v1938 = vunpack.c.l.b16 %v633
      %v1939 = vpack.c.b16 %v1938, %v1937
      %v1941 = vsel %vm871, %v1939, 0
      %1943 = vmatpush.bf16.msra.mxu0 0
      %1944 = vmatpush.bf16.msra.mxu0 0
      %1945 = vmatpush.bf16.msra.mxu0 0
      %1946 = vmatpush.bf16.msra.mxu0 0
      %1947 = vmatpush.bf16.msra.mxu0 0
      %1948 = vmatpush.bf16.msra.mxu0 0
      %1949 = vmatpush.bf16.msra.mxu0 0
      %1950 = vmatpush.bf16.msra.mxu0 %v1936
      %1951 = vmatmul.bf16.gmra.mxu0 %v879
      %v1952 = vpop.f32.mrf.mxu0
      %v1953 = vadd.f32 0.0, %v1952
      %v1954 = vpop.f32.mrf.mxu0
      %v1955 = vadd.f32 0.0, %v1954
      %1956 = vmatmul.bf16.gmra.mxu0 %v882
      %v1957 = vpop.f32.mrf.mxu0
      %v1958 = vadd.f32 0.0, %v1957
      %v1959 = vpop.f32.mrf.mxu0
      %v1960 = vadd.f32 0.0, %v1959
      %1961 = vmatmul.bf16.gmra.mxu0 %v885
      %v1962 = vpop.f32.mrf.mxu0
      %v1963 = vadd.f32 0.0, %v1962
      %v1964 = vpop.f32.mrf.mxu0
      %v1965 = vadd.f32 0.0, %v1964
      %1966 = vmatmul.bf16.gmra.mxu0 %v888
      %v1967 = vpop.f32.mrf.mxu0
      %v1968 = vadd.f32 0.0, %v1967
      %v1969 = vpop.f32.mrf.mxu0
      %v1970 = vadd.f32 0.0, %v1969
      %1971 = vmatmul.bf16.gmra.mxu0 %v891
      %v1972 = vpop.f32.mrf.mxu0
      %v1973 = vadd.f32 0.0, %v1972
      %v1974 = vpop.f32.mrf.mxu0
      %v1975 = vadd.f32 0.0, %v1974
      %1976 = vmatmul.bf16.gmra.mxu0 %v894
      %v1977 = vpop.f32.mrf.mxu0
      %v1978 = vadd.f32 0.0, %v1977
      %v1979 = vpop.f32.mrf.mxu0
      %v1980 = vadd.f32 0.0, %v1979
      %1981 = vmatmul.bf16.gmra.mxu0 %v897
      %v1982 = vpop.f32.mrf.mxu0
      %v1983 = vadd.f32 0.0, %v1982
      %v1984 = vpop.f32.mrf.mxu0
      %v1985 = vadd.f32 0.0, %v1984
      %1986 = vmatmul.bf16.gmra.mxu0 %v900
      %v1987 = vpop.f32.mrf.mxu0
      %v1988 = vadd.f32 0.0, %v1987
      %v1989 = vpop.f32.mrf.mxu0
      %v1990 = vadd.f32 0.0, %v1989
      %1991 = vmatmul.bf16.gmra.mxu0 %v903
      %v1992 = vpop.f32.mrf.mxu0
      %v1993 = vadd.f32 0.0, %v1992
      %v1994 = vpop.f32.mrf.mxu0
      %v1995 = vadd.f32 0.0, %v1994
      %1996 = vmatmul.bf16.gmra.mxu0 %v906
      %v1997 = vpop.f32.mrf.mxu0
      %v1998 = vadd.f32 0.0, %v1997
      %v1999 = vpop.f32.mrf.mxu0
      %v2000 = vadd.f32 0.0, %v1999
      %2001 = vmatmul.bf16.gmra.mxu0 %v909
      %v2002 = vpop.f32.mrf.mxu0
      %v2003 = vadd.f32 0.0, %v2002
      %v2004 = vpop.f32.mrf.mxu0
      %v2005 = vadd.f32 0.0, %v2004
      %2006 = vmatmul.bf16.gmra.mxu0 %v912
      %v2007 = vpop.f32.mrf.mxu0
      %v2008 = vadd.f32 0.0, %v2007
      %v2009 = vpop.f32.mrf.mxu0
      %v2010 = vadd.f32 0.0, %v2009
      %2011 = vmatmul.bf16.gmra.mxu0 %v915
      %v2012 = vpop.f32.mrf.mxu0
      %v2013 = vadd.f32 0.0, %v2012
      %v2014 = vpop.f32.mrf.mxu0
      %v2015 = vadd.f32 0.0, %v2014
      %2016 = vmatmul.bf16.gmra.mxu0 %v918
      %v2017 = vpop.f32.mrf.mxu0
      %v2018 = vadd.f32 0.0, %v2017
      %v2019 = vpop.f32.mrf.mxu0
      %v2020 = vadd.f32 0.0, %v2019
      %2021 = vmatmul.bf16.gmra.mxu0 %v1551
      %v2022 = vpop.f32.mrf.mxu0
      %v2023 = vadd.f32 0.0, %v2022
      %v2024 = vpop.f32.mrf.mxu0
      %v2025 = vadd.f32 0.0, %v2024
      %2026 = vmatmul.bf16.gmra.mxu0 %v1941
      %v2027 = vpop.f32.mrf.mxu0
      %v2028 = vadd.f32 0.0, %v2027
      %v2029 = vpop.f32.mrf.mxu0
      %v2030 = vadd.f32 0.0, %v2029
      %2031 = vdwg.mxu0
      %v2032 = vadd.f32 %v1902, %v1953
      %v2033 = vadd.f32 %v1903, %v1955
      %v2034 = vadd.f32 %v1904, %v1958
      %v2035 = vadd.f32 %v1905, %v1960
      %v2036 = vadd.f32 %v1906, %v1963
      %v2037 = vadd.f32 %v1907, %v1965
      %v2038 = vadd.f32 %v1908, %v1968
      %v2039 = vadd.f32 %v1909, %v1970
      %v2040 = vadd.f32 %v1910, %v1973
      %v2041 = vadd.f32 %v1911, %v1975
      %v2042 = vadd.f32 %v1912, %v1978
      %v2043 = vadd.f32 %v1913, %v1980
      %v2044 = vadd.f32 %v1914, %v1983
      %v2045 = vadd.f32 %v1915, %v1985
      %v2046 = vadd.f32 %v1916, %v1988
      %v2047 = vadd.f32 %v1917, %v1990
      %v2048 = vadd.f32 %v1918, %v1993
      %v2049 = vadd.f32 %v1919, %v1995
      %v2050 = vadd.f32 %v1920, %v1998
      %v2051 = vadd.f32 %v1921, %v2000
      %v2052 = vadd.f32 %v1922, %v2003
      %v2053 = vadd.f32 %v1923, %v2005
      %v2054 = vadd.f32 %v1924, %v2008
      %v2055 = vadd.f32 %v1925, %v2010
      %v2056 = vadd.f32 %v1926, %v2013
      %v2057 = vadd.f32 %v1927, %v2015
      %v2058 = vadd.f32 %v1928, %v2018
      %v2059 = vadd.f32 %v1929, %v2020
      %v2060 = vadd.f32 %v1930, %v2023
      %v2061 = vadd.f32 %v1931, %v2025
      %v2062 = vadd.f32 %v1932, %v2028
      %v2063 = vadd.f32 %v1933, %v2030
      %v2064 = vld [vmem:[%s1 + $0x80] sm:$0xff]
      %v2065 = vld [vmem:[%s1 + $0x88] sm:$0xff]
      %v2066 = vpack.c.bf16 %v2065, %v2064
      %v2067 = vunpack.c.l.b16 %v813
      %v2068 = vunpack.c.l.b16 %v816
      %v2069 = vpack.c.b16 %v2068, %v2067
      %v2071 = vsel %vm871, %v2069, 0
      %2073 = vmatpush.bf16.msra.mxu0 0
      %2074 = vmatpush.bf16.msra.mxu0 0
      %2075 = vmatpush.bf16.msra.mxu0 0
      %2076 = vmatpush.bf16.msra.mxu0 0
      %2077 = vmatpush.bf16.msra.mxu0 0
      %2078 = vmatpush.bf16.msra.mxu0 0
      %2079 = vmatpush.bf16.msra.mxu0 0
      %2080 = vmatpush.bf16.msra.mxu0 %v2066
      %2081 = vmatmul.bf16.gmra.mxu0 %v1252
      %v2082 = vpop.f32.mrf.mxu0
      %v2083 = vadd.f32 0.0, %v2082
      %v2084 = vpop.f32.mrf.mxu0
      %v2085 = vadd.f32 0.0, %v2084
      %2086 = vmatmul.bf16.gmra.mxu0 %v1255
      %v2087 = vpop.f32.mrf.mxu0
      %v2088 = vadd.f32 0.0, %v2087
      %v2089 = vpop.f32.mrf.mxu0
      %v2090 = vadd.f32 0.0, %v2089
      %2091 = vmatmul.bf16.gmra.mxu0 %v1258
      %v2092 = vpop.f32.mrf.mxu0
      %v2093 = vadd.f32 0.0, %v2092
      %v2094 = vpop.f32.mrf.mxu0
      %v2095 = vadd.f32 0.0, %v2094
      %2096 = vmatmul.bf16.gmra.mxu0 %v1261
      %v2097 = vpop.f32.mrf.mxu0
      %v2098 = vadd.f32 0.0, %v2097
      %v2099 = vpop.f32.mrf.mxu0
      %v2100 = vadd.f32 0.0, %v2099
      %2101 = vmatmul.bf16.gmra.mxu0 %v1264
      %v2102 = vpop.f32.mrf.mxu0
      %v2103 = vadd.f32 0.0, %v2102
      %v2104 = vpop.f32.mrf.mxu0
      %v2105 = vadd.f32 0.0, %v2104
      %2106 = vmatmul.bf16.gmra.mxu0 %v1267
      %v2107 = vpop.f32.mrf.mxu0
      %v2108 = vadd.f32 0.0, %v2107
      %v2109 = vpop.f32.mrf.mxu0
      %v2110 = vadd.f32 0.0, %v2109
      %2111 = vmatmul.bf16.gmra.mxu0 %v1270
      %v2112 = vpop.f32.mrf.mxu0
      %v2113 = vadd.f32 0.0, %v2112
      %v2114 = vpop.f32.mrf.mxu0
      %v2115 = vadd.f32 0.0, %v2114
      %2116 = vmatmul.bf16.gmra.mxu0 %v1273
      %v2117 = vpop.f32.mrf.mxu0
      %v2118 = vadd.f32 0.0, %v2117
      %v2119 = vpop.f32.mrf.mxu0
      %v2120 = vadd.f32 0.0, %v2119
      %2121 = vmatmul.bf16.gmra.mxu0 %v1276
      %v2122 = vpop.f32.mrf.mxu0
      %v2123 = vadd.f32 0.0, %v2122
      %v2124 = vpop.f32.mrf.mxu0
      %v2125 = vadd.f32 0.0, %v2124
      %2126 = vmatmul.bf16.gmra.mxu0 %v1279
      %v2127 = vpop.f32.mrf.mxu0
      %v2128 = vadd.f32 0.0, %v2127
      %v2129 = vpop.f32.mrf.mxu0
      %v2130 = vadd.f32 0.0, %v2129
      %2131 = vmatmul.bf16.gmra.mxu0 %v1282
      %v2132 = vpop.f32.mrf.mxu0
      %v2133 = vadd.f32 0.0, %v2132
      %v2134 = vpop.f32.mrf.mxu0
      %v2135 = vadd.f32 0.0, %v2134
      %2136 = vmatmul.bf16.gmra.mxu0 %v1285
      %v2137 = vpop.f32.mrf.mxu0
      %v2138 = vadd.f32 0.0, %v2137
      %v2139 = vpop.f32.mrf.mxu0
      %v2140 = vadd.f32 0.0, %v2139
      %2141 = vmatmul.bf16.gmra.mxu0 %v1288
      %v2142 = vpop.f32.mrf.mxu0
      %v2143 = vadd.f32 0.0, %v2142
      %v2144 = vpop.f32.mrf.mxu0
      %v2145 = vadd.f32 0.0, %v2144
      %2146 = vmatmul.bf16.gmra.mxu0 %v1291
      %v2147 = vpop.f32.mrf.mxu0
      %v2148 = vadd.f32 0.0, %v2147
      %v2149 = vpop.f32.mrf.mxu0
      %v2150 = vadd.f32 0.0, %v2149
      %2151 = vmatmul.bf16.gmra.mxu0 %v1681
      %v2152 = vpop.f32.mrf.mxu0
      %v2153 = vadd.f32 0.0, %v2152
      %v2154 = vpop.f32.mrf.mxu0
      %v2155 = vadd.f32 0.0, %v2154
      %2156 = vmatmul.bf16.gmra.mxu0 %v2071
      %v2157 = vpop.f32.mrf.mxu0
      %v2158 = vadd.f32 0.0, %v2157
      %v2159 = vpop.f32.mrf.mxu0
      %v2160 = vadd.f32 0.0, %v2159
      %2161 = vdwg.mxu0
      %v2162 = vadd.f32 %v2032, %v2083
      %v2163 = vadd.f32 %v2033, %v2085
      %v2164 = vadd.f32 %v2034, %v2088
      %v2165 = vadd.f32 %v2035, %v2090
      %v2166 = vadd.f32 %v2036, %v2093
      %v2167 = vadd.f32 %v2037, %v2095
      %v2168 = vadd.f32 %v2038, %v2098
      %v2169 = vadd.f32 %v2039, %v2100
      %v2170 = vadd.f32 %v2040, %v2103
      %v2171 = vadd.f32 %v2041, %v2105
      %v2172 = vadd.f32 %v2042, %v2108
      %v2173 = vadd.f32 %v2043, %v2110
      %v2174 = vadd.f32 %v2044, %v2113
      %v2175 = vadd.f32 %v2045, %v2115
      %v2176 = vadd.f32 %v2046, %v2118
      %v2177 = vadd.f32 %v2047, %v2120
      %v2178 = vadd.f32 %v2048, %v2123
      %v2179 = vadd.f32 %v2049, %v2125
      %v2180 = vadd.f32 %v2050, %v2128
      %v2181 = vadd.f32 %v2051, %v2130
      %v2182 = vadd.f32 %v2052, %v2133
      %v2183 = vadd.f32 %v2053, %v2135
      %v2184 = vadd.f32 %v2054, %v2138
      %v2185 = vadd.f32 %v2055, %v2140
      %v2186 = vadd.f32 %v2056, %v2143
      %v2187 = vadd.f32 %v2057, %v2145
      %v2188 = vadd.f32 %v2058, %v2148
      %v2189 = vadd.f32 %v2059, %v2150
      %v2190 = vadd.f32 %v2060, %v2153
      %v2191 = vadd.f32 %v2061, %v2155
      %v2192 = vadd.f32 %v2062, %v2158
      %v2193 = vadd.f32 %v2063, %v2160
      %v2194 = vld [vmem:[%s1 + $0xa0] sm:$0x1]
      %v2195 = vperm.slane %v2194, 0
      %v2196 = vadd.f32 %v2162, %v2195
      %v2197 = vadd.f32 %v2163, %v2195
      %v2198 = vadd.f32 %v2164, %v2195
      %v2199 = vadd.f32 %v2165, %v2195
      %v2200 = vadd.f32 %v2166, %v2195
      %v2201 = vadd.f32 %v2167, %v2195
      %v2202 = vadd.f32 %v2168, %v2195
      %v2203 = vadd.f32 %v2169, %v2195
      %v2204 = vadd.f32 %v2170, %v2195
      %v2205 = vadd.f32 %v2171, %v2195
      %v2206 = vadd.f32 %v2172, %v2195
      %v2207 = vadd.f32 %v2173, %v2195
      %v2208 = vadd.f32 %v2174, %v2195
      %v2209 = vadd.f32 %v2175, %v2195
      %v2210 = vadd.f32 %v2176, %v2195
      %v2211 = vadd.f32 %v2177, %v2195
      %v2212 = vadd.f32 %v2178, %v2195
      %v2213 = vadd.f32 %v2179, %v2195
      %v2214 = vadd.f32 %v2180, %v2195
      %v2215 = vadd.f32 %v2181, %v2195
      %v2216 = vadd.f32 %v2182, %v2195
      %v2217 = vadd.f32 %v2183, %v2195
      %v2218 = vadd.f32 %v2184, %v2195
      %v2219 = vadd.f32 %v2185, %v2195
      %v2220 = vadd.f32 %v2186, %v2195
      %v2221 = vadd.f32 %v2187, %v2195
      %v2222 = vadd.f32 %v2188, %v2195
      %v2223 = vadd.f32 %v2189, %v2195
      %v2224 = vadd.f32 %v2190, %v2195
      %v2225 = vadd.f32 %v2191, %v2195
      %v2226 = vadd.f32 %v2192, %v2195
      %v2227 = vadd.f32 %v2193, %v2195
      %vm2228 = vcmask 31744
      %v2229 = vsel %vm2228, %v2196, 0.0
      %v2230 = vsel %vm2228, %v2197, 0.0
      %v2231 = vadd.f32 %v2229, %v2230
      %v2232 = vsel %vm2228, %v2198, 0.0
      %v2233 = vadd.f32 %v2231, %v2232
      %v2234 = vsel %vm2228, %v2199, 0.0
      %v2235 = vadd.f32 %v2233, %v2234
      %v2236 = vsel %vm2228, %v2200, 0.0
      %v2237 = vadd.f32 %v2235, %v2236
      %v2238 = vsel %vm2228, %v2201, 0.0
      %v2239 = vadd.f32 %v2237, %v2238
      %v2240 = vsel %vm2228, %v2202, 0.0
      %v2241 = vadd.f32 %v2239, %v2240
      %v2242 = vsel %vm2228, %v2203, 0.0
      %v2243 = vadd.f32 %v2241, %v2242
      %v2244 = vsel %vm2228, %v2204, 0.0
      %v2245 = vadd.f32 %v2243, %v2244
      %v2246 = vsel %vm2228, %v2205, 0.0
      %v2247 = vadd.f32 %v2245, %v2246
      %v2248 = vsel %vm2228, %v2206, 0.0
      %v2249 = vadd.f32 %v2247, %v2248
      %v2250 = vsel %vm2228, %v2207, 0.0
      %v2251 = vadd.f32 %v2249, %v2250
      %v2252 = vsel %vm2228, %v2208, 0.0
      %v2253 = vadd.f32 %v2251, %v2252
      %v2254 = vsel %vm2228, %v2209, 0.0
      %v2255 = vadd.f32 %v2253, %v2254
      %v2256 = vsel %vm2228, %v2210, 0.0
      %v2257 = vadd.f32 %v2255, %v2256
      %v2258 = vsel %vm2228, %v2211, 0.0
      %v2259 = vadd.f32 %v2257, %v2258
      %v2260 = vsel %vm2228, %v2212, 0.0
      %v2261 = vadd.f32 %v2259, %v2260
      %v2262 = vsel %vm2228, %v2213, 0.0
      %v2263 = vadd.f32 %v2261, %v2262
      %v2264 = vsel %vm2228, %v2214, 0.0
      %v2265 = vadd.f32 %v2263, %v2264
      %v2266 = vsel %vm2228, %v2215, 0.0
      %v2267 = vadd.f32 %v2265, %v2266
      %v2268 = vsel %vm2228, %v2216, 0.0
      %v2269 = vadd.f32 %v2267, %v2268
      %v2270 = vsel %vm2228, %v2217, 0.0
      %v2271 = vadd.f32 %v2269, %v2270
      %v2272 = vsel %vm2228, %v2218, 0.0
      %v2273 = vadd.f32 %v2271, %v2272
      %v2274 = vsel %vm2228, %v2219, 0.0
      %v2275 = vadd.f32 %v2273, %v2274
      %v2276 = vsel %vm2228, %v2220, 0.0
      %v2277 = vadd.f32 %v2275, %v2276
      %v2278 = vsel %vm2228, %v2221, 0.0
      %v2279 = vadd.f32 %v2277, %v2278
      %v2280 = vsel %vm2228, %v2222, 0.0
      %v2281 = vadd.f32 %v2279, %v2280
      %v2282 = vsel %vm2228, %v2223, 0.0
      %v2283 = vadd.f32 %v2281, %v2282
      %v2284 = vsel %vm2228, %v2224, 0.0
      %v2285 = vadd.f32 %v2283, %v2284
      %v2286 = vsel %vm2228, %v2225, 0.0
      %v2287 = vadd.f32 %v2285, %v2286
      %v2288 = vsel %vm2228, %v2226, 0.0
      %v2289 = vadd.f32 %v2287, %v2288
      %v2290 = vsel %vm2228, %v2227, 0.0
      %v2291 = vadd.f32 %v2289, %v2290
      %2292 = vadd.xlane.f32.xlu0 %v2291
      %v2293 = vpop.xlane.xlu0 %2292
      %v2294 = vrot.slane %v2293, 4
      %v2295 = vadd.f32 %v2293, %v2294
      %v2296 = vrot.slane %v2295, 2
      %v2297 = vadd.f32 %v2295, %v2296
      %v2298 = vrot.slane %v2297, 1
      %v2299 = vadd.f32 %v2297, %v2298
      %s2300 = vtos %v2299
      %v2301 = vstv %s2300
      %v2302 = vmul.f32 %v2301, 0.0009765625
      %v2303 = vsub.f32 %v2196, %v2302
      %v2304 = vsub.f32 %v2197, %v2302
      %v2305 = vsub.f32 %v2198, %v2302
      %v2306 = vsub.f32 %v2199, %v2302
      %v2307 = vsub.f32 %v2200, %v2302
      %v2308 = vsub.f32 %v2201, %v2302
      %v2309 = vsub.f32 %v2202, %v2302
      %v2310 = vsub.f32 %v2203, %v2302
      %v2311 = vsub.f32 %v2204, %v2302
      %v2312 = vsub.f32 %v2205, %v2302
      %v2313 = vsub.f32 %v2206, %v2302
      %v2314 = vsub.f32 %v2207, %v2302
      %v2315 = vsub.f32 %v2208, %v2302
      %v2316 = vsub.f32 %v2209, %v2302
      %v2317 = vsub.f32 %v2210, %v2302
      %v2318 = vsub.f32 %v2211, %v2302
      %v2319 = vsub.f32 %v2212, %v2302
      %v2320 = vsub.f32 %v2213, %v2302
      %v2321 = vsub.f32 %v2214, %v2302
      %v2322 = vsub.f32 %v2215, %v2302
      %v2323 = vsub.f32 %v2216, %v2302
      %v2324 = vsub.f32 %v2217, %v2302
      %v2325 = vsub.f32 %v2218, %v2302
      %v2326 = vsub.f32 %v2219, %v2302
      %v2327 = vsub.f32 %v2220, %v2302
      %v2328 = vsub.f32 %v2221, %v2302
      %v2329 = vsub.f32 %v2222, %v2302
      %v2330 = vsub.f32 %v2223, %v2302
      %v2331 = vsub.f32 %v2224, %v2302
      %v2332 = vsub.f32 %v2225, %v2302
      %v2333 = vsub.f32 %v2226, %v2302
      %v2334 = vsub.f32 %v2227, %v2302
      %v2335 = vmul.f32 %v2303, %v2303
      %v2336 = vmul.f32 %v2304, %v2304
      %v2337 = vmul.f32 %v2305, %v2305
      %v2338 = vmul.f32 %v2306, %v2306
      %v2339 = vmul.f32 %v2307, %v2307
      %v2340 = vmul.f32 %v2308, %v2308
      %v2341 = vmul.f32 %v2309, %v2309
      %v2342 = vmul.f32 %v2310, %v2310
      %v2343 = vmul.f32 %v2311, %v2311
      %v2344 = vmul.f32 %v2312, %v2312
      %v2345 = vmul.f32 %v2313, %v2313
      %v2346 = vmul.f32 %v2314, %v2314
      %v2347 = vmul.f32 %v2315, %v2315
      %v2348 = vmul.f32 %v2316, %v2316
      %v2349 = vmul.f32 %v2317, %v2317
      %v2350 = vmul.f32 %v2318, %v2318
      %v2351 = vmul.f32 %v2319, %v2319
      %v2352 = vmul.f32 %v2320, %v2320
      %v2353 = vmul.f32 %v2321, %v2321
      %v2354 = vmul.f32 %v2322, %v2322
      %v2355 = vmul.f32 %v2323, %v2323
      %v2356 = vmul.f32 %v2324, %v2324
      %v2357 = vmul.f32 %v2325, %v2325
      %v2358 = vmul.f32 %v2326, %v2326
      %v2359 = vmul.f32 %v2327, %v2327
      %v2360 = vmul.f32 %v2328, %v2328
      %v2361 = vmul.f32 %v2329, %v2329
      %v2362 = vmul.f32 %v2330, %v2330
      %v2363 = vmul.f32 %v2331, %v2331
      %v2364 = vmul.f32 %v2332, %v2332
      %v2365 = vmul.f32 %v2333, %v2333
      %v2366 = vmul.f32 %v2334, %v2334
      %v2367 = vsel %vm2228, %v2335, 0.0
      %v2368 = vsel %vm2228, %v2336, 0.0
      %v2369 = vadd.f32 %v2367, %v2368
      %v2370 = vsel %vm2228, %v2337, 0.0
      %v2371 = vadd.f32 %v2369, %v2370
      %v2372 = vsel %vm2228, %v2338, 0.0
      %v2373 = vadd.f32 %v2371, %v2372
      %v2374 = vsel %vm2228, %v2339, 0.0
      %v2375 = vadd.f32 %v2373, %v2374
      %v2376 = vsel %vm2228, %v2340, 0.0
      %v2377 = vadd.f32 %v2375, %v2376
      %v2378 = vsel %vm2228, %v2341, 0.0
      %v2379 = vadd.f32 %v2377, %v2378
      %v2380 = vsel %vm2228, %v2342, 0.0
      %v2381 = vadd.f32 %v2379, %v2380
      %v2382 = vsel %vm2228, %v2343, 0.0
      %v2383 = vadd.f32 %v2381, %v2382
      %v2384 = vsel %vm2228, %v2344, 0.0
      %v2385 = vadd.f32 %v2383, %v2384
      %v2386 = vsel %vm2228, %v2345, 0.0
      %v2387 = vadd.f32 %v2385, %v2386
      %v2388 = vsel %vm2228, %v2346, 0.0
      %v2389 = vadd.f32 %v2387, %v2388
      %v2390 = vsel %vm2228, %v2347, 0.0
      %v2391 = vadd.f32 %v2389, %v2390
      %v2392 = vsel %vm2228, %v2348, 0.0
      %v2393 = vadd.f32 %v2391, %v2392
      %v2394 = vsel %vm2228, %v2349, 0.0
      %v2395 = vadd.f32 %v2393, %v2394
      %v2396 = vsel %vm2228, %v2350, 0.0
      %v2397 = vadd.f32 %v2395, %v2396
      %v2398 = vsel %vm2228, %v2351, 0.0
      %v2399 = vadd.f32 %v2397, %v2398
      %v2400 = vsel %vm2228, %v2352, 0.0
      %v2401 = vadd.f32 %v2399, %v2400
      %v2402 = vsel %vm2228, %v2353, 0.0
      %v2403 = vadd.f32 %v2401, %v2402
      %v2404 = vsel %vm2228, %v2354, 0.0
      %v2405 = vadd.f32 %v2403, %v2404
      %v2406 = vsel %vm2228, %v2355, 0.0
      %v2407 = vadd.f32 %v2405, %v2406
      %v2408 = vsel %vm2228, %v2356, 0.0
      %v2409 = vadd.f32 %v2407, %v2408
      %v2410 = vsel %vm2228, %v2357, 0.0
      %v2411 = vadd.f32 %v2409, %v2410
      %v2412 = vsel %vm2228, %v2358, 0.0
      %v2413 = vadd.f32 %v2411, %v2412
      %v2414 = vsel %vm2228, %v2359, 0.0
      %v2415 = vadd.f32 %v2413, %v2414
      %v2416 = vsel %vm2228, %v2360, 0.0
      %v2417 = vadd.f32 %v2415, %v2416
      %v2418 = vsel %vm2228, %v2361, 0.0
      %v2419 = vadd.f32 %v2417, %v2418
      %v2420 = vsel %vm2228, %v2362, 0.0
      %v2421 = vadd.f32 %v2419, %v2420
      %v2422 = vsel %vm2228, %v2363, 0.0
      %v2423 = vadd.f32 %v2421, %v2422
      %v2424 = vsel %vm2228, %v2364, 0.0
      %v2425 = vadd.f32 %v2423, %v2424
      %v2426 = vsel %vm2228, %v2365, 0.0
      %v2427 = vadd.f32 %v2425, %v2426
      %v2428 = vsel %vm2228, %v2366, 0.0
      %v2429 = vadd.f32 %v2427, %v2428
      %2430 = vadd.xlane.f32.xlu0 %v2429
      %v2431 = vpop.xlane.xlu0 %2430
      %v2432 = vrot.slane %v2431, 4
      %v2433 = vadd.f32 %v2431, %v2432
      %v2434 = vrot.slane %v2433, 2
      %v2435 = vadd.f32 %v2433, %v2434
      %v2436 = vrot.slane %v2435, 1
      %v2437 = vadd.f32 %v2435, %v2436
      %s2438 = vtos %v2437
      %v2439 = vstv %s2438
      %v2440 = vmul.f32 %v2439, 0.0009765625
      %v2441 = vadd.f32 %v2440, 1e-05
      %v2442 = vrsqrt.pop %v2441
      %v2443 = vmul.f32 %v2442, %v2441
      %v2444 = vmul.f32 %v2443, %v2442
      %v2445 = vmul.f32 0.5, %v2444
      %v2446 = vsub.f32 1.5, %v2445
      %v2447 = vmul.f32 %v2442, %v2446
      %vm2448 = vweird.f32 %v2441
      %vm2449 = vweird.f32 %v2442
      %vm2450 = vmor %vm2448, %vm2449
      %v2451 = vsel %vm2450, %v2442, %v2447
      %v2452 = vmul.f32 %v2303, %v2451
      %v2453 = vmul.f32 %v2304, %v2451
      %v2454 = vmul.f32 %v2305, %v2451
      %v2455 = vmul.f32 %v2306, %v2451
      %v2456 = vmul.f32 %v2307, %v2451
      %v2457 = vmul.f32 %v2308, %v2451
      %v2458 = vmul.f32 %v2309, %v2451
      %v2459 = vmul.f32 %v2310, %v2451
      %v2460 = vmul.f32 %v2311, %v2451
      %v2461 = vmul.f32 %v2312, %v2451
      %v2462 = vmul.f32 %v2313, %v2451
      %v2463 = vmul.f32 %v2314, %v2451
      %v2464 = vmul.f32 %v2315, %v2451
      %v2465 = vmul.f32 %v2316, %v2451
      %v2466 = vmul.f32 %v2317, %v2451
      %v2467 = vmul.f32 %v2318, %v2451
      %v2468 = vmul.f32 %v2319, %v2451
      %v2469 = vmul.f32 %v2320, %v2451
      %v2470 = vmul.f32 %v2321, %v2451
      %v2471 = vmul.f32 %v2322, %v2451
      %v2472 = vmul.f32 %v2323, %v2451
      %v2473 = vmul.f32 %v2324, %v2451
      %v2474 = vmul.f32 %v2325, %v2451
      %v2475 = vmul.f32 %v2326, %v2451
      %v2476 = vmul.f32 %v2327, %v2451
      %v2477 = vmul.f32 %v2328, %v2451
      %v2478 = vmul.f32 %v2329, %v2451
      %v2479 = vmul.f32 %v2330, %v2451
      %v2480 = vmul.f32 %v2331, %v2451
      %v2481 = vmul.f32 %v2332, %v2451
      %v2482 = vmul.f32 %v2333, %v2451
      %v2483 = vmul.f32 %v2334, %v2451
      %v2484 = vld [vmem:[%s1 + $0xa1] sm:$0x1]
      %v2485 = vperm.slane %v2484, 0
      %v2486 = vmul.f32 %v2452, %v2485
      %v2487 = vmul.f32 %v2453, %v2485
      %v2488 = vmul.f32 %v2454, %v2485
      %v2489 = vmul.f32 %v2455, %v2485
      %v2490 = vmul.f32 %v2456, %v2485
      %v2491 = vmul.f32 %v2457, %v2485
      %v2492 = vmul.f32 %v2458, %v2485
      %v2493 = vmul.f32 %v2459, %v2485
      %v2494 = vmul.f32 %v2460, %v2485
      %v2495 = vmul.f32 %v2461, %v2485
      %v2496 = vmul.f32 %v2462, %v2485
      %v2497 = vmul.f32 %v2463, %v2485
      %v2498 = vmul.f32 %v2464, %v2485
      %v2499 = vmul.f32 %v2465, %v2485
      %v2500 = vmul.f32 %v2466, %v2485
      %v2501 = vmul.f32 %v2467, %v2485
      %v2502 = vmul.f32 %v2468, %v2485
      %v2503 = vmul.f32 %v2469, %v2485
      %v2504 = vmul.f32 %v2470, %v2485
      %v2505 = vmul.f32 %v2471, %v2485
      %v2506 = vmul.f32 %v2472, %v2485
      %v2507 = vmul.f32 %v2473, %v2485
      %v2508 = vmul.f32 %v2474, %v2485
      %v2509 = vmul.f32 %v2475, %v2485
      %v2510 = vmul.f32 %v2476, %v2485
      %v2511 = vmul.f32 %v2477, %v2485
      %v2512 = vmul.f32 %v2478, %v2485
      %v2513 = vmul.f32 %v2479, %v2485
      %v2514 = vmul.f32 %v2480, %v2485
      %v2515 = vmul.f32 %v2481, %v2485
      %v2516 = vmul.f32 %v2482, %v2485
      %v2517 = vmul.f32 %v2483, %v2485
      %v2518 = vld [vmem:[%s1 + $0xa2] sm:$0x1]
      %v2519 = vperm.slane %v2518, 0
      %v2520 = vadd.f32 %v2486, %v2519
      %v2521 = vadd.f32 %v2487, %v2519
      %v2522 = vadd.f32 %v2488, %v2519
      %v2523 = vadd.f32 %v2489, %v2519
      %v2524 = vadd.f32 %v2490, %v2519
      %v2525 = vadd.f32 %v2491, %v2519
      %v2526 = vadd.f32 %v2492, %v2519
      %v2527 = vadd.f32 %v2493, %v2519
      %v2528 = vadd.f32 %v2494, %v2519
      %v2529 = vadd.f32 %v2495, %v2519
      %v2530 = vadd.f32 %v2496, %v2519
      %v2531 = vadd.f32 %v2497, %v2519
      %v2532 = vadd.f32 %v2498, %v2519
      %v2533 = vadd.f32 %v2499, %v2519
      %v2534 = vadd.f32 %v2500, %v2519
      %v2535 = vadd.f32 %v2501, %v2519
      %v2536 = vadd.f32 %v2502, %v2519
      %v2537 = vadd.f32 %v2503, %v2519
      %v2538 = vadd.f32 %v2504, %v2519
      %v2539 = vadd.f32 %v2505, %v2519
      %v2540 = vadd.f32 %v2506, %v2519
      %v2541 = vadd.f32 %v2507, %v2519
      %v2542 = vadd.f32 %v2508, %v2519
      %v2543 = vadd.f32 %v2509, %v2519
      %v2544 = vadd.f32 %v2510, %v2519
      %v2545 = vadd.f32 %v2511, %v2519
      %v2546 = vadd.f32 %v2512, %v2519
      %v2547 = vadd.f32 %v2513, %v2519
      %v2548 = vadd.f32 %v2514, %v2519
      %v2549 = vadd.f32 %v2515, %v2519
      %v2550 = vadd.f32 %v2516, %v2519
      %v2551 = vadd.f32 %v2517, %v2519
      %v2552 = vmax.f32 %v2520, 0.0
      %v2553 = vmax.f32 %v2521, 0.0
      %v2554 = vmax.f32 %v2522, 0.0
      %v2555 = vmax.f32 %v2523, 0.0
      %v2556 = vmax.f32 %v2524, 0.0
      %v2557 = vmax.f32 %v2525, 0.0
      %v2558 = vmax.f32 %v2526, 0.0
      %v2559 = vmax.f32 %v2527, 0.0
      %v2560 = vmax.f32 %v2528, 0.0
      %v2561 = vmax.f32 %v2529, 0.0
      %v2562 = vmax.f32 %v2530, 0.0
      %v2563 = vmax.f32 %v2531, 0.0
      %v2564 = vmax.f32 %v2532, 0.0
      %v2565 = vmax.f32 %v2533, 0.0
      %v2566 = vmax.f32 %v2534, 0.0
      %v2567 = vmax.f32 %v2535, 0.0
      %v2568 = vmax.f32 %v2536, 0.0
      %v2569 = vmax.f32 %v2537, 0.0
      %v2570 = vmax.f32 %v2538, 0.0
      %v2571 = vmax.f32 %v2539, 0.0
      %v2572 = vmax.f32 %v2540, 0.0
      %v2573 = vmax.f32 %v2541, 0.0
      %v2574 = vmax.f32 %v2542, 0.0
      %v2575 = vmax.f32 %v2543, 0.0
      %v2576 = vmax.f32 %v2544, 0.0
      %v2577 = vmax.f32 %v2545, 0.0
      %v2578 = vmax.f32 %v2546, 0.0
      %v2579 = vmax.f32 %v2547, 0.0
      %v2580 = vmax.f32 %v2548, 0.0
      %v2581 = vmax.f32 %v2549, 0.0
      %v2582 = vmax.f32 %v2550, 0.0
      %v2583 = vmax.f32 %v2551, 0.0
      %v2584 = vld [vmem:[%s1 + $0x90] sm:$0xf]
      %v2585 = vld [vmem:[%s1 + $0xa3] sm:$0x1]
      %v2586 = vperm.slane %v2585, 0
      %v2588 = vsel %vm2228, %v2552, 0
      %v2591 = vsel %vm2228, %v2553, 0
      %v2594 = vsel %vm2228, %v2554, 0
      %v2597 = vsel %vm2228, %v2555, 0
      %v2600 = vsel %vm2228, %v2556, 0
      %v2603 = vsel %vm2228, %v2557, 0
      %v2606 = vsel %vm2228, %v2558, 0
      %v2609 = vsel %vm2228, %v2559, 0
      %v2612 = vsel %vm2228, %v2560, 0
      %v2615 = vsel %vm2228, %v2561, 0
      %v2618 = vsel %vm2228, %v2562, 0
      %v2621 = vsel %vm2228, %v2563, 0
      %v2624 = vsel %vm2228, %v2564, 0
      %v2627 = vsel %vm2228, %v2565, 0
      %v2630 = vsel %vm2228, %v2566, 0
      %v2633 = vsel %vm2228, %v2567, 0
      %v2636 = vsel %vm2228, %v2568, 0
      %v2639 = vsel %vm2228, %v2569, 0
      %v2642 = vsel %vm2228, %v2570, 0
      %v2645 = vsel %vm2228, %v2571, 0
      %v2648 = vsel %vm2228, %v2572, 0
      %v2651 = vsel %vm2228, %v2573, 0
      %v2654 = vsel %vm2228, %v2574, 0
      %v2657 = vsel %vm2228, %v2575, 0
      %v2660 = vsel %vm2228, %v2576, 0
      %v2663 = vsel %vm2228, %v2577, 0
      %v2666 = vsel %vm2228, %v2578, 0
      %v2669 = vsel %vm2228, %v2579, 0
      %v2672 = vsel %vm2228, %v2580, 0
      %v2675 = vsel %vm2228, %v2581, 0
      %v2678 = vsel %vm2228, %v2582, 0
      %v2681 = vsel %vm2228, %v2583, 0
      %vm2683 = vcmask 1043456
      %v2685 = vsel %vm2683, %v2584, 0
      %2687 = vmatpush.msra.mxu0 0.0
      %2688 = vmatpush.msra.mxu0 0.0
      %2689 = vmatpush.msra.mxu0 0.0
      %2690 = vmatpush.msra.mxu0 0.0
      %2691 = vmatpush.msra.mxu0 0.0
      %2692 = vmatpush.msra.mxu0 0.0
      %2693 = vmatpush.msra.mxu0 0.0
      %2694 = vmatpush.msra.mxu0 0.0
      %2695 = vmatpush.msra.mxu0 0.0
      %2696 = vmatpush.msra.mxu0 0.0
      %2697 = vmatpush.msra.mxu0 0.0
      %2698 = vmatpush.msra.mxu0 0.0
      %2699 = vmatpush.msra.mxu0 0.0
      %2700 = vmatpush.msra.mxu0 0.0
      %2701 = vmatpush.msra.mxu0 0.0
      %2702 = vmatpush.msra.mxu0 %v2685
      %2703 = vmatmul.f32.gmra.mxu0 %v2588
      %v2704 = vpop.f32.mrf.mxu0
      %v2705 = vadd.f32 %v2586, %v2704
      %2706 = vmatmul.f32.gmra.mxu0 %v2591
      %v2707 = vpop.f32.mrf.mxu0
      %v2708 = vadd.f32 %v2586, %v2707
      %2709 = vmatmul.f32.gmra.mxu0 %v2594
      %v2710 = vpop.f32.mrf.mxu0
      %v2711 = vadd.f32 %v2586, %v2710
      %2712 = vmatmul.f32.gmra.mxu0 %v2597
      %v2713 = vpop.f32.mrf.mxu0
      %v2714 = vadd.f32 %v2586, %v2713
      %2715 = vmatmul.f32.gmra.mxu0 %v2600
      %v2716 = vpop.f32.mrf.mxu0
      %v2717 = vadd.f32 %v2586, %v2716
      %2718 = vmatmul.f32.gmra.mxu0 %v2603
      %v2719 = vpop.f32.mrf.mxu0
      %v2720 = vadd.f32 %v2586, %v2719
      %2721 = vmatmul.f32.gmra.mxu0 %v2606
      %v2722 = vpop.f32.mrf.mxu0
      %v2723 = vadd.f32 %v2586, %v2722
      %2724 = vmatmul.f32.gmra.mxu0 %v2609
      %v2725 = vpop.f32.mrf.mxu0
      %v2726 = vadd.f32 %v2586, %v2725
      %2727 = vmatmul.f32.gmra.mxu0 %v2612
      %v2728 = vpop.f32.mrf.mxu0
      %v2729 = vadd.f32 %v2586, %v2728
      %2730 = vmatmul.f32.gmra.mxu0 %v2615
      %v2731 = vpop.f32.mrf.mxu0
      %v2732 = vadd.f32 %v2586, %v2731
      %2733 = vmatmul.f32.gmra.mxu0 %v2618
      %v2734 = vpop.f32.mrf.mxu0
      %v2735 = vadd.f32 %v2586, %v2734
      %2736 = vmatmul.f32.gmra.mxu0 %v2621
      %v2737 = vpop.f32.mrf.mxu0
      %v2738 = vadd.f32 %v2586, %v2737
      %2739 = vmatmul.f32.gmra.mxu0 %v2624
      %v2740 = vpop.f32.mrf.mxu0
      %v2741 = vadd.f32 %v2586, %v2740
      %2742 = vmatmul.f32.gmra.mxu0 %v2627
      %v2743 = vpop.f32.mrf.mxu0
      %v2744 = vadd.f32 %v2586, %v2743
      %2745 = vmatmul.f32.gmra.mxu0 %v2630
      %v2746 = vpop.f32.mrf.mxu0
      %v2747 = vadd.f32 %v2586, %v2746
      %2748 = vmatmul.f32.gmra.mxu0 %v2633
      %v2749 = vpop.f32.mrf.mxu0
      %v2750 = vadd.f32 %v2586, %v2749
      %2751 = vmatmul.f32.gmra.mxu0 %v2636
      %v2752 = vpop.f32.mrf.mxu0
      %v2753 = vadd.f32 %v2586, %v2752
      %2754 = vmatmul.f32.gmra.mxu0 %v2639
      %v2755 = vpop.f32.mrf.mxu0
      %v2756 = vadd.f32 %v2586, %v2755
      %2757 = vmatmul.f32.gmra.mxu0 %v2642
      %v2758 = vpop.f32.mrf.mxu0
      %v2759 = vadd.f32 %v2586, %v2758
      %2760 = vmatmul.f32.gmra.mxu0 %v2645
      %v2761 = vpop.f32.mrf.mxu0
      %v2762 = vadd.f32 %v2586, %v2761
      %2763 = vmatmul.f32.gmra.mxu0 %v2648
      %v2764 = vpop.f32.mrf.mxu0
      %v2765 = vadd.f32 %v2586, %v2764
      %2766 = vmatmul.f32.gmra.mxu0 %v2651
      %v2767 = vpop.f32.mrf.mxu0
      %v2768 = vadd.f32 %v2586, %v2767
      %2769 = vmatmul.f32.gmra.mxu0 %v2654
      %v2770 = vpop.f32.mrf.mxu0
      %v2771 = vadd.f32 %v2586, %v2770
      %2772 = vmatmul.f32.gmra.mxu0 %v2657
      %v2773 = vpop.f32.mrf.mxu0
      %v2774 = vadd.f32 %v2586, %v2773
      %2775 = vmatmul.f32.gmra.mxu0 %v2660
      %v2776 = vpop.f32.mrf.mxu0
      %v2777 = vadd.f32 %v2586, %v2776
      %2778 = vmatmul.f32.gmra.mxu0 %v2663
      %v2779 = vpop.f32.mrf.mxu0
      %v2780 = vadd.f32 %v2586, %v2779
      %2781 = vmatmul.f32.gmra.mxu0 %v2666
      %v2782 = vpop.f32.mrf.mxu0
      %v2783 = vadd.f32 %v2586, %v2782
      %2784 = vmatmul.f32.gmra.mxu0 %v2669
      %v2785 = vpop.f32.mrf.mxu0
      %v2786 = vadd.f32 %v2586, %v2785
      %2787 = vmatmul.f32.gmra.mxu0 %v2672
      %v2788 = vpop.f32.mrf.mxu0
      %v2789 = vadd.f32 %v2586, %v2788
      %2790 = vmatmul.f32.gmra.mxu0 %v2675
      %v2791 = vpop.f32.mrf.mxu0
      %v2792 = vadd.f32 %v2586, %v2791
      %2793 = vmatmul.f32.gmra.mxu0 %v2678
      %v2794 = vpop.f32.mrf.mxu0
      %v2795 = vadd.f32 %v2586, %v2794
      %2796 = vmatmul.f32.gmra.mxu0 %v2681
      %v2797 = vpop.f32.mrf.mxu0
      %v2798 = vadd.f32 %v2586, %v2797
      %2799 = vdwg.mxu0
      %v2800 = vsel %vm2228, %v2705, 0.0
      %v2801 = vsel %vm2228, %v2708, 0.0
      %v2802 = vadd.f32 %v2800, %v2801
      %v2803 = vsel %vm2228, %v2711, 0.0
      %v2804 = vadd.f32 %v2802, %v2803
      %v2805 = vsel %vm2228, %v2714, 0.0
      %v2806 = vadd.f32 %v2804, %v2805
      %v2807 = vsel %vm2228, %v2717, 0.0
      %v2808 = vadd.f32 %v2806, %v2807
      %v2809 = vsel %vm2228, %v2720, 0.0
      %v2810 = vadd.f32 %v2808, %v2809
      %v2811 = vsel %vm2228, %v2723, 0.0
      %v2812 = vadd.f32 %v2810, %v2811
      %v2813 = vsel %vm2228, %v2726, 0.0
      %v2814 = vadd.f32 %v2812, %v2813
      %v2815 = vsel %vm2228, %v2729, 0.0
      %v2816 = vadd.f32 %v2814, %v2815
      %v2817 = vsel %vm2228, %v2732, 0.0
      %v2818 = vadd.f32 %v2816, %v2817
      %v2819 = vsel %vm2228, %v2735, 0.0
      %v2820 = vadd.f32 %v2818, %v2819
      %v2821 = vsel %vm2228, %v2738, 0.0
      %v2822 = vadd.f32 %v2820, %v2821
      %v2823 = vsel %vm2228, %v2741, 0.0
      %v2824 = vadd.f32 %v2822, %v2823
      %v2825 = vsel %vm2228, %v2744, 0.0
      %v2826 = vadd.f32 %v2824, %v2825
      %v2827 = vsel %vm2228, %v2747, 0.0
      %v2828 = vadd.f32 %v2826, %v2827
      %v2829 = vsel %vm2228, %v2750, 0.0
      %v2830 = vadd.f32 %v2828, %v2829
      %v2831 = vsel %vm2228, %v2753, 0.0
      %v2832 = vadd.f32 %v2830, %v2831
      %v2833 = vsel %vm2228, %v2756, 0.0
      %v2834 = vadd.f32 %v2832, %v2833
      %v2835 = vsel %vm2228, %v2759, 0.0
      %v2836 = vadd.f32 %v2834, %v2835
      %v2837 = vsel %vm2228, %v2762, 0.0
      %v2838 = vadd.f32 %v2836, %v2837
      %v2839 = vsel %vm2228, %v2765, 0.0
      %v2840 = vadd.f32 %v2838, %v2839
      %v2841 = vsel %vm2228, %v2768, 0.0
      %v2842 = vadd.f32 %v2840, %v2841
      %v2843 = vsel %vm2228, %v2771, 0.0
      %v2844 = vadd.f32 %v2842, %v2843
      %v2845 = vsel %vm2228, %v2774, 0.0
      %v2846 = vadd.f32 %v2844, %v2845
      %v2847 = vsel %vm2228, %v2777, 0.0
      %v2848 = vadd.f32 %v2846, %v2847
      %v2849 = vsel %vm2228, %v2780, 0.0
      %v2850 = vadd.f32 %v2848, %v2849
      %v2851 = vsel %vm2228, %v2783, 0.0
      %v2852 = vadd.f32 %v2850, %v2851
      %v2853 = vsel %vm2228, %v2786, 0.0
      %v2854 = vadd.f32 %v2852, %v2853
      %v2855 = vsel %vm2228, %v2789, 0.0
      %v2856 = vadd.f32 %v2854, %v2855
      %v2857 = vsel %vm2228, %v2792, 0.0
      %v2858 = vadd.f32 %v2856, %v2857
      %v2859 = vsel %vm2228, %v2795, 0.0
      %v2860 = vadd.f32 %v2858, %v2859
      %v2861 = vsel %vm2228, %v2798, 0.0
      %v2862 = vadd.f32 %v2860, %v2861
      %2863 = vadd.xlane.f32.xlu0 %v2862
      %v2864 = vpop.xlane.xlu0 %2863
      %v2865 = vrot.slane %v2864, 4
      %v2866 = vadd.f32 %v2864, %v2865
      %v2867 = vrot.slane %v2866, 2
      %v2868 = vadd.f32 %v2866, %v2867
      %v2869 = vrot.slane %v2868, 1
      %v2870 = vadd.f32 %v2868, %v2869
      %s2871 = vtos %v2870
      %v2872 = vstv %s2871
      %v2873 = vmul.f32 %v2872, 0.0009765625
      %v2874 = vsub.f32 %v2705, %v2873
      %v2875 = vsub.f32 %v2708, %v2873
      %v2876 = vsub.f32 %v2711, %v2873
      %v2877 = vsub.f32 %v2714, %v2873
      %v2878 = vsub.f32 %v2717, %v2873
      %v2879 = vsub.f32 %v2720, %v2873
      %v2880 = vsub.f32 %v2723, %v2873
      %v2881 = vsub.f32 %v2726, %v2873
      %v2882 = vsub.f32 %v2729, %v2873
      %v2883 = vsub.f32 %v2732, %v2873
      %v2884 = vsub.f32 %v2735, %v2873
      %v2885 = vsub.f32 %v2738, %v2873
      %v2886 = vsub.f32 %v2741, %v2873
      %v2887 = vsub.f32 %v2744, %v2873
      %v2888 = vsub.f32 %v2747, %v2873
      %v2889 = vsub.f32 %v2750, %v2873
      %v2890 = vsub.f32 %v2753, %v2873
      %v2891 = vsub.f32 %v2756, %v2873
      %v2892 = vsub.f32 %v2759, %v2873
      %v2893 = vsub.f32 %v2762, %v2873
      %v2894 = vsub.f32 %v2765, %v2873
      %v2895 = vsub.f32 %v2768, %v2873
      %v2896 = vsub.f32 %v2771, %v2873
      %v2897 = vsub.f32 %v2774, %v2873
      %v2898 = vsub.f32 %v2777, %v2873
      %v2899 = vsub.f32 %v2780, %v2873
      %v2900 = vsub.f32 %v2783, %v2873
      %v2901 = vsub.f32 %v2786, %v2873
      %v2902 = vsub.f32 %v2789, %v2873
      %v2903 = vsub.f32 %v2792, %v2873
      %v2904 = vsub.f32 %v2795, %v2873
      %v2905 = vsub.f32 %v2798, %v2873
      %v2906 = vmul.f32 %v2874, %v2874
      %v2907 = vmul.f32 %v2875, %v2875
      %v2908 = vmul.f32 %v2876, %v2876
      %v2909 = vmul.f32 %v2877, %v2877
      %v2910 = vmul.f32 %v2878, %v2878
      %v2911 = vmul.f32 %v2879, %v2879
      %v2912 = vmul.f32 %v2880, %v2880
      %v2913 = vmul.f32 %v2881, %v2881
      %v2914 = vmul.f32 %v2882, %v2882
      %v2915 = vmul.f32 %v2883, %v2883
      %v2916 = vmul.f32 %v2884, %v2884
      %v2917 = vmul.f32 %v2885, %v2885
      %v2918 = vmul.f32 %v2886, %v2886
      %v2919 = vmul.f32 %v2887, %v2887
      %v2920 = vmul.f32 %v2888, %v2888
      %v2921 = vmul.f32 %v2889, %v2889
      %v2922 = vmul.f32 %v2890, %v2890
      %v2923 = vmul.f32 %v2891, %v2891
      %v2924 = vmul.f32 %v2892, %v2892
      %v2925 = vmul.f32 %v2893, %v2893
      %v2926 = vmul.f32 %v2894, %v2894
      %v2927 = vmul.f32 %v2895, %v2895
      %v2928 = vmul.f32 %v2896, %v2896
      %v2929 = vmul.f32 %v2897, %v2897
      %v2930 = vmul.f32 %v2898, %v2898
      %v2931 = vmul.f32 %v2899, %v2899
      %v2932 = vmul.f32 %v2900, %v2900
      %v2933 = vmul.f32 %v2901, %v2901
      %v2934 = vmul.f32 %v2902, %v2902
      %v2935 = vmul.f32 %v2903, %v2903
      %v2936 = vmul.f32 %v2904, %v2904
      %v2937 = vmul.f32 %v2905, %v2905
      %v2938 = vsel %vm2228, %v2906, 0.0
      %v2939 = vsel %vm2228, %v2907, 0.0
      %v2940 = vadd.f32 %v2938, %v2939
      %v2941 = vsel %vm2228, %v2908, 0.0
      %v2942 = vadd.f32 %v2940, %v2941
      %v2943 = vsel %vm2228, %v2909, 0.0
      %v2944 = vadd.f32 %v2942, %v2943
      %v2945 = vsel %vm2228, %v2910, 0.0
      %v2946 = vadd.f32 %v2944, %v2945
      %v2947 = vsel %vm2228, %v2911, 0.0
      %v2948 = vadd.f32 %v2946, %v2947
      %v2949 = vsel %vm2228, %v2912, 0.0
      %v2950 = vadd.f32 %v2948, %v2949
      %v2951 = vsel %vm2228, %v2913, 0.0
      %v2952 = vadd.f32 %v2950, %v2951
      %v2953 = vsel %vm2228, %v2914, 0.0
      %v2954 = vadd.f32 %v2952, %v2953
      %v2955 = vsel %vm2228, %v2915, 0.0
      %v2956 = vadd.f32 %v2954, %v2955
      %v2957 = vsel %vm2228, %v2916, 0.0
      %v2958 = vadd.f32 %v2956, %v2957
      %v2959 = vsel %vm2228, %v2917, 0.0
      %v2960 = vadd.f32 %v2958, %v2959
      %v2961 = vsel %vm2228, %v2918, 0.0
      %v2962 = vadd.f32 %v2960, %v2961
      %v2963 = vsel %vm2228, %v2919, 0.0
      %v2964 = vadd.f32 %v2962, %v2963
      %v2965 = vsel %vm2228, %v2920, 0.0
      %v2966 = vadd.f32 %v2964, %v2965
      %v2967 = vsel %vm2228, %v2921, 0.0
      %v2968 = vadd.f32 %v2966, %v2967
      %v2969 = vsel %vm2228, %v2922, 0.0
      %v2970 = vadd.f32 %v2968, %v2969
      %v2971 = vsel %vm2228, %v2923, 0.0
      %v2972 = vadd.f32 %v2970, %v2971
      %v2973 = vsel %vm2228, %v2924, 0.0
      %v2974 = vadd.f32 %v2972, %v2973
      %v2975 = vsel %vm2228, %v2925, 0.0
      %v2976 = vadd.f32 %v2974, %v2975
      %v2977 = vsel %vm2228, %v2926, 0.0
      %v2978 = vadd.f32 %v2976, %v2977
      %v2979 = vsel %vm2228, %v2927, 0.0
      %v2980 = vadd.f32 %v2978, %v2979
      %v2981 = vsel %vm2228, %v2928, 0.0
      %v2982 = vadd.f32 %v2980, %v2981
      %v2983 = vsel %vm2228, %v2929, 0.0
      %v2984 = vadd.f32 %v2982, %v2983
      %v2985 = vsel %vm2228, %v2930, 0.0
      %v2986 = vadd.f32 %v2984, %v2985
      %v2987 = vsel %vm2228, %v2931, 0.0
      %v2988 = vadd.f32 %v2986, %v2987
      %v2989 = vsel %vm2228, %v2932, 0.0
      %v2990 = vadd.f32 %v2988, %v2989
      %v2991 = vsel %vm2228, %v2933, 0.0
      %v2992 = vadd.f32 %v2990, %v2991
      %v2993 = vsel %vm2228, %v2934, 0.0
      %v2994 = vadd.f32 %v2992, %v2993
      %v2995 = vsel %vm2228, %v2935, 0.0
      %v2996 = vadd.f32 %v2994, %v2995
      %v2997 = vsel %vm2228, %v2936, 0.0
      %v2998 = vadd.f32 %v2996, %v2997
      %v2999 = vsel %vm2228, %v2937, 0.0
      %v3000 = vadd.f32 %v2998, %v2999
      %3001 = vadd.xlane.f32.xlu0 %v3000
      %v3002 = vpop.xlane.xlu0 %3001
      %v3003 = vrot.slane %v3002, 4
      %v3004 = vadd.f32 %v3002, %v3003
      %v3005 = vrot.slane %v3004, 2
      %v3006 = vadd.f32 %v3004, %v3005
      %v3007 = vrot.slane %v3006, 1
      %v3008 = vadd.f32 %v3006, %v3007
      %s3009 = vtos %v3008
      %v3010 = vstv %s3009
      %v3011 = vmul.f32 %v3010, 0.0009765625
      %v3012 = vadd.f32 %v3011, 1e-05
      %v3013 = vrsqrt.pop %v3012
      %v3014 = vmul.f32 %v3013, %v3012
      %v3015 = vmul.f32 %v3014, %v3013
      %v3016 = vmul.f32 0.5, %v3015
      %v3017 = vsub.f32 1.5, %v3016
      %v3018 = vmul.f32 %v3013, %v3017
      %vm3019 = vweird.f32 %v3012
      %vm3020 = vweird.f32 %v3013
      %vm3021 = vmor %vm3019, %vm3020
      %v3022 = vsel %vm3021, %v3013, %v3018
      %v3023 = vmul.f32 %v2874, %v3022
      %v3024 = vmul.f32 %v2875, %v3022
      %v3025 = vmul.f32 %v2876, %v3022
      %v3026 = vmul.f32 %v2877, %v3022
      %v3027 = vmul.f32 %v2878, %v3022
      %v3028 = vmul.f32 %v2879, %v3022
      %v3029 = vmul.f32 %v2880, %v3022
      %v3030 = vmul.f32 %v2881, %v3022
      %v3031 = vmul.f32 %v2882, %v3022
      %v3032 = vmul.f32 %v2883, %v3022
      %v3033 = vmul.f32 %v2884, %v3022
      %v3034 = vmul.f32 %v2885, %v3022
      %v3035 = vmul.f32 %v2886, %v3022
      %v3036 = vmul.f32 %v2887, %v3022
      %v3037 = vmul.f32 %v2888, %v3022
      %v3038 = vmul.f32 %v2889, %v3022
      %v3039 = vmul.f32 %v2890, %v3022
      %v3040 = vmul.f32 %v2891, %v3022
      %v3041 = vmul.f32 %v2892, %v3022
      %v3042 = vmul.f32 %v2893, %v3022
      %v3043 = vmul.f32 %v2894, %v3022
      %v3044 = vmul.f32 %v2895, %v3022
      %v3045 = vmul.f32 %v2896, %v3022
      %v3046 = vmul.f32 %v2897, %v3022
      %v3047 = vmul.f32 %v2898, %v3022
      %v3048 = vmul.f32 %v2899, %v3022
      %v3049 = vmul.f32 %v2900, %v3022
      %v3050 = vmul.f32 %v2901, %v3022
      %v3051 = vmul.f32 %v2902, %v3022
      %v3052 = vmul.f32 %v2903, %v3022
      %v3053 = vmul.f32 %v2904, %v3022
      %v3054 = vmul.f32 %v2905, %v3022
      %v3055 = vld [vmem:[%s1 + $0xa4] sm:$0x1]
      %v3056 = vperm.slane %v3055, 0
      %v3057 = vmul.f32 %v3023, %v3056
      %v3058 = vmul.f32 %v3024, %v3056
      %v3059 = vmul.f32 %v3025, %v3056
      %v3060 = vmul.f32 %v3026, %v3056
      %v3061 = vmul.f32 %v3027, %v3056
      %v3062 = vmul.f32 %v3028, %v3056
      %v3063 = vmul.f32 %v3029, %v3056
      %v3064 = vmul.f32 %v3030, %v3056
      %v3065 = vmul.f32 %v3031, %v3056
      %v3066 = vmul.f32 %v3032, %v3056
      %v3067 = vmul.f32 %v3033, %v3056
      %v3068 = vmul.f32 %v3034, %v3056
      %v3069 = vmul.f32 %v3035, %v3056
      %v3070 = vmul.f32 %v3036, %v3056
      %v3071 = vmul.f32 %v3037, %v3056
      %v3072 = vmul.f32 %v3038, %v3056
      %v3073 = vmul.f32 %v3039, %v3056
      %v3074 = vmul.f32 %v3040, %v3056
      %v3075 = vmul.f32 %v3041, %v3056
      %v3076 = vmul.f32 %v3042, %v3056
      %v3077 = vmul.f32 %v3043, %v3056
      %v3078 = vmul.f32 %v3044, %v3056
      %v3079 = vmul.f32 %v3045, %v3056
      %v3080 = vmul.f32 %v3046, %v3056
      %v3081 = vmul.f32 %v3047, %v3056
      %v3082 = vmul.f32 %v3048, %v3056
      %v3083 = vmul.f32 %v3049, %v3056
      %v3084 = vmul.f32 %v3050, %v3056
      %v3085 = vmul.f32 %v3051, %v3056
      %v3086 = vmul.f32 %v3052, %v3056
      %v3087 = vmul.f32 %v3053, %v3056
      %v3088 = vmul.f32 %v3054, %v3056
      %v3089 = vld [vmem:[%s1 + $0xa5] sm:$0x1]
      %v3090 = vperm.slane %v3089, 0
      %v3091 = vadd.f32 %v3057, %v3090
      %v3092 = vadd.f32 %v3058, %v3090
      %v3093 = vadd.f32 %v3059, %v3090
      %v3094 = vadd.f32 %v3060, %v3090
      %v3095 = vadd.f32 %v3061, %v3090
      %v3096 = vadd.f32 %v3062, %v3090
      %v3097 = vadd.f32 %v3063, %v3090
      %v3098 = vadd.f32 %v3064, %v3090
      %v3099 = vadd.f32 %v3065, %v3090
      %v3100 = vadd.f32 %v3066, %v3090
      %v3101 = vadd.f32 %v3067, %v3090
      %v3102 = vadd.f32 %v3068, %v3090
      %v3103 = vadd.f32 %v3069, %v3090
      %v3104 = vadd.f32 %v3070, %v3090
      %v3105 = vadd.f32 %v3071, %v3090
      %v3106 = vadd.f32 %v3072, %v3090
      %v3107 = vadd.f32 %v3073, %v3090
      %v3108 = vadd.f32 %v3074, %v3090
      %v3109 = vadd.f32 %v3075, %v3090
      %v3110 = vadd.f32 %v3076, %v3090
      %v3111 = vadd.f32 %v3077, %v3090
      %v3112 = vadd.f32 %v3078, %v3090
      %v3113 = vadd.f32 %v3079, %v3090
      %v3114 = vadd.f32 %v3080, %v3090
      %v3115 = vadd.f32 %v3081, %v3090
      %v3116 = vadd.f32 %v3082, %v3090
      %v3117 = vadd.f32 %v3083, %v3090
      %v3118 = vadd.f32 %v3084, %v3090
      %v3119 = vadd.f32 %v3085, %v3090
      %v3120 = vadd.f32 %v3086, %v3090
      %v3121 = vadd.f32 %v3087, %v3090
      %v3122 = vadd.f32 %v3088, %v3090
      %v3123 = vmax.f32 %v3091, 0.0
      %v3124 = vmax.f32 %v3092, 0.0
      %v3125 = vmax.f32 %v3093, 0.0
      %v3126 = vmax.f32 %v3094, 0.0
      %v3127 = vmax.f32 %v3095, 0.0
      %v3128 = vmax.f32 %v3096, 0.0
      %v3129 = vmax.f32 %v3097, 0.0
      %v3130 = vmax.f32 %v3098, 0.0
      %v3131 = vmax.f32 %v3099, 0.0
      %v3132 = vmax.f32 %v3100, 0.0
      %v3133 = vmax.f32 %v3101, 0.0
      %v3134 = vmax.f32 %v3102, 0.0
      %v3135 = vmax.f32 %v3103, 0.0
      %v3136 = vmax.f32 %v3104, 0.0
      %v3137 = vmax.f32 %v3105, 0.0
      %v3138 = vmax.f32 %v3106, 0.0
      %v3139 = vmax.f32 %v3107, 0.0
      %v3140 = vmax.f32 %v3108, 0.0
      %v3141 = vmax.f32 %v3109, 0.0
      %v3142 = vmax.f32 %v3110, 0.0
      %v3143 = vmax.f32 %v3111, 0.0
      %v3144 = vmax.f32 %v3112, 0.0
      %v3145 = vmax.f32 %v3113, 0.0
      %v3146 = vmax.f32 %v3114, 0.0
      %v3147 = vmax.f32 %v3115, 0.0
      %v3148 = vmax.f32 %v3116, 0.0
      %v3149 = vmax.f32 %v3117, 0.0
      %v3150 = vmax.f32 %v3118, 0.0
      %v3151 = vmax.f32 %v3119, 0.0
      %v3152 = vmax.f32 %v3120, 0.0
      %v3153 = vmax.f32 %v3121, 0.0
      %v3154 = vmax.f32 %v3122, 0.0
      %v3155 = vld [vmem:[%s1 + $0x98] sm:$0xf]
      %v3156 = vld [vmem:[%s1 + $0xa6] sm:$0x1]
      %v3157 = vperm.slane %v3156, 0
      %v3159 = vsel %vm2228, %v3123, 0
      %v3162 = vsel %vm2228, %v3124, 0
      %v3165 = vsel %vm2228, %v3125, 0
      %v3168 = vsel %vm2228, %v3126, 0
      %v3171 = vsel %vm2228, %v3127, 0
      %v3174 = vsel %vm2228, %v3128, 0
      %v3177 = vsel %vm2228, %v3129, 0
      %v3180 = vsel %vm2228, %v3130, 0
      %v3183 = vsel %vm2228, %v3131, 0
      %v3186 = vsel %vm2228, %v3132, 0
      %v3189 = vsel %vm2228, %v3133, 0
      %v3192 = vsel %vm2228, %v3134, 0
      %v3195 = vsel %vm2228, %v3135, 0
      %v3198 = vsel %vm2228, %v3136, 0
      %v3201 = vsel %vm2228, %v3137, 0
      %v3204 = vsel %vm2228, %v3138, 0
      %v3207 = vsel %vm2228, %v3139, 0
      %v3210 = vsel %vm2228, %v3140, 0
      %v3213 = vsel %vm2228, %v3141, 0
      %v3216 = vsel %vm2228, %v3142, 0
      %v3219 = vsel %vm2228, %v3143, 0
      %v3222 = vsel %vm2228, %v3144, 0
      %v3225 = vsel %vm2228, %v3145, 0
      %v3228 = vsel %vm2228, %v3146, 0
      %v3231 = vsel %vm2228, %v3147, 0
      %v3234 = vsel %vm2228, %v3148, 0
      %v3237 = vsel %vm2228, %v3149, 0
      %v3240 = vsel %vm2228, %v3150, 0
      %v3243 = vsel %vm2228, %v3151, 0
      %v3246 = vsel %vm2228, %v3152, 0
      %v3249 = vsel %vm2228, %v3153, 0
      %v3252 = vsel %vm2228, %v3154, 0
      %v3255 = vsel %vm2683, %v3155, 0
      %3257 = vmatpush.msra.mxu0 0.0
      %3258 = vmatpush.msra.mxu0 0.0
      %3259 = vmatpush.msra.mxu0 0.0
      %3260 = vmatpush.msra.mxu0 0.0
      %3261 = vmatpush.msra.mxu0 0.0
      %3262 = vmatpush.msra.mxu0 0.0
      %3263 = vmatpush.msra.mxu0 0.0
      %3264 = vmatpush.msra.mxu0 0.0
      %3265 = vmatpush.msra.mxu0 0.0
      %3266 = vmatpush.msra.mxu0 0.0
      %3267 = vmatpush.msra.mxu0 0.0
      %3268 = vmatpush.msra.mxu0 0.0
      %3269 = vmatpush.msra.mxu0 0.0
      %3270 = vmatpush.msra.mxu0 0.0
      %3271 = vmatpush.msra.mxu0 0.0
      %3272 = vmatpush.msra.mxu0 %v3255
      %3273 = vmatmul.f32.gmra.mxu0 %v3159
      %v3274 = vpop.f32.mrf.mxu0
      %v3275 = vadd.f32 %v3157, %v3274
      %3276 = vmatmul.f32.gmra.mxu0 %v3162
      %v3277 = vpop.f32.mrf.mxu0
      %v3278 = vadd.f32 %v3157, %v3277
      %3279 = vmatmul.f32.gmra.mxu0 %v3165
      %v3280 = vpop.f32.mrf.mxu0
      %v3281 = vadd.f32 %v3157, %v3280
      %3282 = vmatmul.f32.gmra.mxu0 %v3168
      %v3283 = vpop.f32.mrf.mxu0
      %v3284 = vadd.f32 %v3157, %v3283
      %3285 = vmatmul.f32.gmra.mxu0 %v3171
      %v3286 = vpop.f32.mrf.mxu0
      %v3287 = vadd.f32 %v3157, %v3286
      %3288 = vmatmul.f32.gmra.mxu0 %v3174
      %v3289 = vpop.f32.mrf.mxu0
      %v3290 = vadd.f32 %v3157, %v3289
      %3291 = vmatmul.f32.gmra.mxu0 %v3177
      %v3292 = vpop.f32.mrf.mxu0
      %v3293 = vadd.f32 %v3157, %v3292
      %3294 = vmatmul.f32.gmra.mxu0 %v3180
      %v3295 = vpop.f32.mrf.mxu0
      %v3296 = vadd.f32 %v3157, %v3295
      %3297 = vmatmul.f32.gmra.mxu0 %v3183
      %v3298 = vpop.f32.mrf.mxu0
      %v3299 = vadd.f32 %v3157, %v3298
      %3300 = vmatmul.f32.gmra.mxu0 %v3186
      %v3301 = vpop.f32.mrf.mxu0
      %v3302 = vadd.f32 %v3157, %v3301
      %3303 = vmatmul.f32.gmra.mxu0 %v3189
      %v3304 = vpop.f32.mrf.mxu0
      %v3305 = vadd.f32 %v3157, %v3304
      %3306 = vmatmul.f32.gmra.mxu0 %v3192
      %v3307 = vpop.f32.mrf.mxu0
      %v3308 = vadd.f32 %v3157, %v3307
      %3309 = vmatmul.f32.gmra.mxu0 %v3195
      %v3310 = vpop.f32.mrf.mxu0
      %v3311 = vadd.f32 %v3157, %v3310
      %3312 = vmatmul.f32.gmra.mxu0 %v3198
      %v3313 = vpop.f32.mrf.mxu0
      %v3314 = vadd.f32 %v3157, %v3313
      %3315 = vmatmul.f32.gmra.mxu0 %v3201
      %v3316 = vpop.f32.mrf.mxu0
      %v3317 = vadd.f32 %v3157, %v3316
      %3318 = vmatmul.f32.gmra.mxu0 %v3204
      %v3319 = vpop.f32.mrf.mxu0
      %v3320 = vadd.f32 %v3157, %v3319
      %3321 = vmatmul.f32.gmra.mxu0 %v3207
      %v3322 = vpop.f32.mrf.mxu0
      %v3323 = vadd.f32 %v3157, %v3322
      %3324 = vmatmul.f32.gmra.mxu0 %v3210
      %v3325 = vpop.f32.mrf.mxu0
      %v3326 = vadd.f32 %v3157, %v3325
      %3327 = vmatmul.f32.gmra.mxu0 %v3213
      %v3328 = vpop.f32.mrf.mxu0
      %v3329 = vadd.f32 %v3157, %v3328
      %3330 = vmatmul.f32.gmra.mxu0 %v3216
      %v3331 = vpop.f32.mrf.mxu0
      %v3332 = vadd.f32 %v3157, %v3331
      %3333 = vmatmul.f32.gmra.mxu0 %v3219
      %v3334 = vpop.f32.mrf.mxu0
      %v3335 = vadd.f32 %v3157, %v3334
      %3336 = vmatmul.f32.gmra.mxu0 %v3222
      %v3337 = vpop.f32.mrf.mxu0
      %v3338 = vadd.f32 %v3157, %v3337
      %3339 = vmatmul.f32.gmra.mxu0 %v3225
      %v3340 = vpop.f32.mrf.mxu0
      %v3341 = vadd.f32 %v3157, %v3340
      %3342 = vmatmul.f32.gmra.mxu0 %v3228
      %v3343 = vpop.f32.mrf.mxu0
      %v3344 = vadd.f32 %v3157, %v3343
      %3345 = vmatmul.f32.gmra.mxu0 %v3231
      %v3346 = vpop.f32.mrf.mxu0
      %v3347 = vadd.f32 %v3157, %v3346
      %3348 = vmatmul.f32.gmra.mxu0 %v3234
      %v3349 = vpop.f32.mrf.mxu0
      %v3350 = vadd.f32 %v3157, %v3349
      %3351 = vmatmul.f32.gmra.mxu0 %v3237
      %v3352 = vpop.f32.mrf.mxu0
      %v3353 = vadd.f32 %v3157, %v3352
      %3354 = vmatmul.f32.gmra.mxu0 %v3240
      %v3355 = vpop.f32.mrf.mxu0
      %v3356 = vadd.f32 %v3157, %v3355
      %3357 = vmatmul.f32.gmra.mxu0 %v3243
      %v3358 = vpop.f32.mrf.mxu0
      %v3359 = vadd.f32 %v3157, %v3358
      %3360 = vmatmul.f32.gmra.mxu0 %v3246
      %v3361 = vpop.f32.mrf.mxu0
      %v3362 = vadd.f32 %v3157, %v3361
      %3363 = vmatmul.f32.gmra.mxu0 %v3249
      %v3364 = vpop.f32.mrf.mxu0
      %v3365 = vadd.f32 %v3157, %v3364
      %3366 = vmatmul.f32.gmra.mxu0 %v3252
      %v3367 = vpop.f32.mrf.mxu0
      %v3368 = vadd.f32 %v3157, %v3367
      %3369 = vdwg.mxu0
      %v3370 = vsel %vm2228, %v3275, 0.0
      %v3371 = vsel %vm2228, %v3278, 0.0
      %v3372 = vadd.f32 %v3370, %v3371
      %v3373 = vsel %vm2228, %v3281, 0.0
      %v3374 = vadd.f32 %v3372, %v3373
      %v3375 = vsel %vm2228, %v3284, 0.0
      %v3376 = vadd.f32 %v3374, %v3375
      %v3377 = vsel %vm2228, %v3287, 0.0
      %v3378 = vadd.f32 %v3376, %v3377
      %v3379 = vsel %vm2228, %v3290, 0.0
      %v3380 = vadd.f32 %v3378, %v3379
      %v3381 = vsel %vm2228, %v3293, 0.0
      %v3382 = vadd.f32 %v3380, %v3381
      %v3383 = vsel %vm2228, %v3296, 0.0
      %v3384 = vadd.f32 %v3382, %v3383
      %v3385 = vsel %vm2228, %v3299, 0.0
      %v3386 = vadd.f32 %v3384, %v3385
      %v3387 = vsel %vm2228, %v3302, 0.0
      %v3388 = vadd.f32 %v3386, %v3387
      %v3389 = vsel %vm2228, %v3305, 0.0
      %v3390 = vadd.f32 %v3388, %v3389
      %v3391 = vsel %vm2228, %v3308, 0.0
      %v3392 = vadd.f32 %v3390, %v3391
      %v3393 = vsel %vm2228, %v3311, 0.0
      %v3394 = vadd.f32 %v3392, %v3393
      %v3395 = vsel %vm2228, %v3314, 0.0
      %v3396 = vadd.f32 %v3394, %v3395
      %v3397 = vsel %vm2228, %v3317, 0.0
      %v3398 = vadd.f32 %v3396, %v3397
      %v3399 = vsel %vm2228, %v3320, 0.0
      %v3400 = vadd.f32 %v3398, %v3399
      %v3401 = vsel %vm2228, %v3323, 0.0
      %v3402 = vadd.f32 %v3400, %v3401
      %v3403 = vsel %vm2228, %v3326, 0.0
      %v3404 = vadd.f32 %v3402, %v3403
      %v3405 = vsel %vm2228, %v3329, 0.0
      %v3406 = vadd.f32 %v3404, %v3405
      %v3407 = vsel %vm2228, %v3332, 0.0
      %v3408 = vadd.f32 %v3406, %v3407
      %v3409 = vsel %vm2228, %v3335, 0.0
      %v3410 = vadd.f32 %v3408, %v3409
      %v3411 = vsel %vm2228, %v3338, 0.0
      %v3412 = vadd.f32 %v3410, %v3411
      %v3413 = vsel %vm2228, %v3341, 0.0
      %v3414 = vadd.f32 %v3412, %v3413
      %v3415 = vsel %vm2228, %v3344, 0.0
      %v3416 = vadd.f32 %v3414, %v3415
      %v3417 = vsel %vm2228, %v3347, 0.0
      %v3418 = vadd.f32 %v3416, %v3417
      %v3419 = vsel %vm2228, %v3350, 0.0
      %v3420 = vadd.f32 %v3418, %v3419
      %v3421 = vsel %vm2228, %v3353, 0.0
      %v3422 = vadd.f32 %v3420, %v3421
      %v3423 = vsel %vm2228, %v3356, 0.0
      %v3424 = vadd.f32 %v3422, %v3423
      %v3425 = vsel %vm2228, %v3359, 0.0
      %v3426 = vadd.f32 %v3424, %v3425
      %v3427 = vsel %vm2228, %v3362, 0.0
      %v3428 = vadd.f32 %v3426, %v3427
      %v3429 = vsel %vm2228, %v3365, 0.0
      %v3430 = vadd.f32 %v3428, %v3429
      %v3431 = vsel %vm2228, %v3368, 0.0
      %v3432 = vadd.f32 %v3430, %v3431
      %3433 = vadd.xlane.f32.xlu0 %v3432
      %v3434 = vpop.xlane.xlu0 %3433
      %v3435 = vrot.slane %v3434, 4
      %v3436 = vadd.f32 %v3434, %v3435
      %v3437 = vrot.slane %v3436, 2
      %v3438 = vadd.f32 %v3436, %v3437
      %v3439 = vrot.slane %v3438, 1
      %v3440 = vadd.f32 %v3438, %v3439
      %s3441 = vtos %v3440
      %v3442 = vstv %s3441
      %v3443 = vmul.f32 %v3442, 0.0009765625
      %v3444 = vsub.f32 %v3275, %v3443
      %v3445 = vsub.f32 %v3278, %v3443
      %v3446 = vsub.f32 %v3281, %v3443
      %v3447 = vsub.f32 %v3284, %v3443
      %v3448 = vsub.f32 %v3287, %v3443
      %v3449 = vsub.f32 %v3290, %v3443
      %v3450 = vsub.f32 %v3293, %v3443
      %v3451 = vsub.f32 %v3296, %v3443
      %v3452 = vsub.f32 %v3299, %v3443
      %v3453 = vsub.f32 %v3302, %v3443
      %v3454 = vsub.f32 %v3305, %v3443
      %v3455 = vsub.f32 %v3308, %v3443
      %v3456 = vsub.f32 %v3311, %v3443
      %v3457 = vsub.f32 %v3314, %v3443
      %v3458 = vsub.f32 %v3317, %v3443
      %v3459 = vsub.f32 %v3320, %v3443
      %v3460 = vsub.f32 %v3323, %v3443
      %v3461 = vsub.f32 %v3326, %v3443
      %v3462 = vsub.f32 %v3329, %v3443
      %v3463 = vsub.f32 %v3332, %v3443
      %v3464 = vsub.f32 %v3335, %v3443
      %v3465 = vsub.f32 %v3338, %v3443
      %v3466 = vsub.f32 %v3341, %v3443
      %v3467 = vsub.f32 %v3344, %v3443
      %v3468 = vsub.f32 %v3347, %v3443
      %v3469 = vsub.f32 %v3350, %v3443
      %v3470 = vsub.f32 %v3353, %v3443
      %v3471 = vsub.f32 %v3356, %v3443
      %v3472 = vsub.f32 %v3359, %v3443
      %v3473 = vsub.f32 %v3362, %v3443
      %v3474 = vsub.f32 %v3365, %v3443
      %v3475 = vsub.f32 %v3368, %v3443
      %v3476 = vmul.f32 %v3444, %v3444
      %v3477 = vmul.f32 %v3445, %v3445
      %v3478 = vmul.f32 %v3446, %v3446
      %v3479 = vmul.f32 %v3447, %v3447
      %v3480 = vmul.f32 %v3448, %v3448
      %v3481 = vmul.f32 %v3449, %v3449
      %v3482 = vmul.f32 %v3450, %v3450
      %v3483 = vmul.f32 %v3451, %v3451
      %v3484 = vmul.f32 %v3452, %v3452
      %v3485 = vmul.f32 %v3453, %v3453
      %v3486 = vmul.f32 %v3454, %v3454
      %v3487 = vmul.f32 %v3455, %v3455
      %v3488 = vmul.f32 %v3456, %v3456
      %v3489 = vmul.f32 %v3457, %v3457
      %v3490 = vmul.f32 %v3458, %v3458
      %v3491 = vmul.f32 %v3459, %v3459
      %v3492 = vmul.f32 %v3460, %v3460
      %v3493 = vmul.f32 %v3461, %v3461
      %v3494 = vmul.f32 %v3462, %v3462
      %v3495 = vmul.f32 %v3463, %v3463
      %v3496 = vmul.f32 %v3464, %v3464
      %v3497 = vmul.f32 %v3465, %v3465
      %v3498 = vmul.f32 %v3466, %v3466
      %v3499 = vmul.f32 %v3467, %v3467
      %v3500 = vmul.f32 %v3468, %v3468
      %v3501 = vmul.f32 %v3469, %v3469
      %v3502 = vmul.f32 %v3470, %v3470
      %v3503 = vmul.f32 %v3471, %v3471
      %v3504 = vmul.f32 %v3472, %v3472
      %v3505 = vmul.f32 %v3473, %v3473
      %v3506 = vmul.f32 %v3474, %v3474
      %v3507 = vmul.f32 %v3475, %v3475
      %v3508 = vsel %vm2228, %v3476, 0.0
      %v3509 = vsel %vm2228, %v3477, 0.0
      %v3510 = vadd.f32 %v3508, %v3509
      %v3511 = vsel %vm2228, %v3478, 0.0
      %v3512 = vadd.f32 %v3510, %v3511
      %v3513 = vsel %vm2228, %v3479, 0.0
      %v3514 = vadd.f32 %v3512, %v3513
      %v3515 = vsel %vm2228, %v3480, 0.0
      %v3516 = vadd.f32 %v3514, %v3515
      %v3517 = vsel %vm2228, %v3481, 0.0
      %v3518 = vadd.f32 %v3516, %v3517
      %v3519 = vsel %vm2228, %v3482, 0.0
      %v3520 = vadd.f32 %v3518, %v3519
      %v3521 = vsel %vm2228, %v3483, 0.0
      %v3522 = vadd.f32 %v3520, %v3521
      %v3523 = vsel %vm2228, %v3484, 0.0
      %v3524 = vadd.f32 %v3522, %v3523
      %v3525 = vsel %vm2228, %v3485, 0.0
      %v3526 = vadd.f32 %v3524, %v3525
      %v3527 = vsel %vm2228, %v3486, 0.0
      %v3528 = vadd.f32 %v3526, %v3527
      %v3529 = vsel %vm2228, %v3487, 0.0
      %v3530 = vadd.f32 %v3528, %v3529
      %v3531 = vsel %vm2228, %v3488, 0.0
      %v3532 = vadd.f32 %v3530, %v3531
      %v3533 = vsel %vm2228, %v3489, 0.0
      %v3534 = vadd.f32 %v3532, %v3533
      %v3535 = vsel %vm2228, %v3490, 0.0
      %v3536 = vadd.f32 %v3534, %v3535
      %v3537 = vsel %vm2228, %v3491, 0.0
      %v3538 = vadd.f32 %v3536, %v3537
      %v3539 = vsel %vm2228, %v3492, 0.0
      %v3540 = vadd.f32 %v3538, %v3539
      %v3541 = vsel %vm2228, %v3493, 0.0
      %v3542 = vadd.f32 %v3540, %v3541
      %v3543 = vsel %vm2228, %v3494, 0.0
      %v3544 = vadd.f32 %v3542, %v3543
      %v3545 = vsel %vm2228, %v3495, 0.0
      %v3546 = vadd.f32 %v3544, %v3545
      %v3547 = vsel %vm2228, %v3496, 0.0
      %v3548 = vadd.f32 %v3546, %v3547
      %v3549 = vsel %vm2228, %v3497, 0.0
      %v3550 = vadd.f32 %v3548, %v3549
      %v3551 = vsel %vm2228, %v3498, 0.0
      %v3552 = vadd.f32 %v3550, %v3551
      %v3553 = vsel %vm2228, %v3499, 0.0
      %v3554 = vadd.f32 %v3552, %v3553
      %v3555 = vsel %vm2228, %v3500, 0.0
      %v3556 = vadd.f32 %v3554, %v3555
      %v3557 = vsel %vm2228, %v3501, 0.0
      %v3558 = vadd.f32 %v3556, %v3557
      %v3559 = vsel %vm2228, %v3502, 0.0
      %v3560 = vadd.f32 %v3558, %v3559
      %v3561 = vsel %vm2228, %v3503, 0.0
      %v3562 = vadd.f32 %v3560, %v3561
      %v3563 = vsel %vm2228, %v3504, 0.0
      %v3564 = vadd.f32 %v3562, %v3563
      %v3565 = vsel %vm2228, %v3505, 0.0
      %v3566 = vadd.f32 %v3564, %v3565
      %v3567 = vsel %vm2228, %v3506, 0.0
      %v3568 = vadd.f32 %v3566, %v3567
      %v3569 = vsel %vm2228, %v3507, 0.0
      %v3570 = vadd.f32 %v3568, %v3569
      %3571 = vadd.xlane.f32.xlu0 %v3570
      %v3572 = vpop.xlane.xlu0 %3571
      %v3573 = vrot.slane %v3572, 4
      %v3574 = vadd.f32 %v3572, %v3573
      %v3575 = vrot.slane %v3574, 2
      %v3576 = vadd.f32 %v3574, %v3575
      %v3577 = vrot.slane %v3576, 1
      %v3578 = vadd.f32 %v3576, %v3577
      %s3579 = vtos %v3578
      %v3580 = vstv %s3579
      %v3581 = vmul.f32 %v3580, 0.0009765625
      %v3582 = vadd.f32 %v3581, 1e-05
      %v3583 = vrsqrt.pop %v3582
      %v3584 = vmul.f32 %v3583, %v3582
      %v3585 = vmul.f32 %v3584, %v3583
      %v3586 = vmul.f32 0.5, %v3585
      %v3587 = vsub.f32 1.5, %v3586
      %v3588 = vmul.f32 %v3583, %v3587
      %vm3589 = vweird.f32 %v3582
      %vm3590 = vweird.f32 %v3583
      %vm3591 = vmor %vm3589, %vm3590
      %v3592 = vsel %vm3591, %v3583, %v3588
      %v3593 = vmul.f32 %v3444, %v3592
      %v3594 = vmul.f32 %v3445, %v3592
      %v3595 = vmul.f32 %v3446, %v3592
      %v3596 = vmul.f32 %v3447, %v3592
      %v3597 = vmul.f32 %v3448, %v3592
      %v3598 = vmul.f32 %v3449, %v3592
      %v3599 = vmul.f32 %v3450, %v3592
      %v3600 = vmul.f32 %v3451, %v3592
      %v3601 = vmul.f32 %v3452, %v3592
      %v3602 = vmul.f32 %v3453, %v3592
      %v3603 = vmul.f32 %v3454, %v3592
      %v3604 = vmul.f32 %v3455, %v3592
      %v3605 = vmul.f32 %v3456, %v3592
      %v3606 = vmul.f32 %v3457, %v3592
      %v3607 = vmul.f32 %v3458, %v3592
      %v3608 = vmul.f32 %v3459, %v3592
      %v3609 = vmul.f32 %v3460, %v3592
      %v3610 = vmul.f32 %v3461, %v3592
      %v3611 = vmul.f32 %v3462, %v3592
      %v3612 = vmul.f32 %v3463, %v3592
      %v3613 = vmul.f32 %v3464, %v3592
      %v3614 = vmul.f32 %v3465, %v3592
      %v3615 = vmul.f32 %v3466, %v3592
      %v3616 = vmul.f32 %v3467, %v3592
      %v3617 = vmul.f32 %v3468, %v3592
      %v3618 = vmul.f32 %v3469, %v3592
      %v3619 = vmul.f32 %v3470, %v3592
      %v3620 = vmul.f32 %v3471, %v3592
      %v3621 = vmul.f32 %v3472, %v3592
      %v3622 = vmul.f32 %v3473, %v3592
      %v3623 = vmul.f32 %v3474, %v3592
      %v3624 = vmul.f32 %v3475, %v3592
      %v3625 = vld [vmem:[%s1 + $0xa7] sm:$0x1]
      %v3626 = vperm.slane %v3625, 0
      %v3627 = vmul.f32 %v3593, %v3626
      %v3628 = vmul.f32 %v3594, %v3626
      %v3629 = vmul.f32 %v3595, %v3626
      %v3630 = vmul.f32 %v3596, %v3626
      %v3631 = vmul.f32 %v3597, %v3626
      %v3632 = vmul.f32 %v3598, %v3626
      %v3633 = vmul.f32 %v3599, %v3626
      %v3634 = vmul.f32 %v3600, %v3626
      %v3635 = vmul.f32 %v3601, %v3626
      %v3636 = vmul.f32 %v3602, %v3626
      %v3637 = vmul.f32 %v3603, %v3626
      %v3638 = vmul.f32 %v3604, %v3626
      %v3639 = vmul.f32 %v3605, %v3626
      %v3640 = vmul.f32 %v3606, %v3626
      %v3641 = vmul.f32 %v3607, %v3626
      %v3642 = vmul.f32 %v3608, %v3626
      %v3643 = vmul.f32 %v3609, %v3626
      %v3644 = vmul.f32 %v3610, %v3626
      %v3645 = vmul.f32 %v3611, %v3626
      %v3646 = vmul.f32 %v3612, %v3626
      %v3647 = vmul.f32 %v3613, %v3626
      %v3648 = vmul.f32 %v3614, %v3626
      %v3649 = vmul.f32 %v3615, %v3626
      %v3650 = vmul.f32 %v3616, %v3626
      %v3651 = vmul.f32 %v3617, %v3626
      %v3652 = vmul.f32 %v3618, %v3626
      %v3653 = vmul.f32 %v3619, %v3626
      %v3654 = vmul.f32 %v3620, %v3626
      %v3655 = vmul.f32 %v3621, %v3626
      %v3656 = vmul.f32 %v3622, %v3626
      %v3657 = vmul.f32 %v3623, %v3626
      %v3658 = vmul.f32 %v3624, %v3626
      %v3659 = vld [vmem:[%s1 + $0xa8] sm:$0x1]
      %v3660 = vperm.slane %v3659, 0
      %v3661 = vadd.f32 %v3627, %v3660
      %v3662 = vadd.f32 %v3628, %v3660
      %v3663 = vadd.f32 %v3629, %v3660
      %v3664 = vadd.f32 %v3630, %v3660
      %v3665 = vadd.f32 %v3631, %v3660
      %v3666 = vadd.f32 %v3632, %v3660
      %v3667 = vadd.f32 %v3633, %v3660
      %v3668 = vadd.f32 %v3634, %v3660
      %v3669 = vadd.f32 %v3635, %v3660
      %v3670 = vadd.f32 %v3636, %v3660
      %v3671 = vadd.f32 %v3637, %v3660
      %v3672 = vadd.f32 %v3638, %v3660
      %v3673 = vadd.f32 %v3639, %v3660
      %v3674 = vadd.f32 %v3640, %v3660
      %v3675 = vadd.f32 %v3641, %v3660
      %v3676 = vadd.f32 %v3642, %v3660
      %v3677 = vadd.f32 %v3643, %v3660
      %v3678 = vadd.f32 %v3644, %v3660
      %v3679 = vadd.f32 %v3645, %v3660
      %v3680 = vadd.f32 %v3646, %v3660
      %v3681 = vadd.f32 %v3647, %v3660
      %v3682 = vadd.f32 %v3648, %v3660
      %v3683 = vadd.f32 %v3649, %v3660
      %v3684 = vadd.f32 %v3650, %v3660
      %v3685 = vadd.f32 %v3651, %v3660
      %v3686 = vadd.f32 %v3652, %v3660
      %v3687 = vadd.f32 %v3653, %v3660
      %v3688 = vadd.f32 %v3654, %v3660
      %v3689 = vadd.f32 %v3655, %v3660
      %v3690 = vadd.f32 %v3656, %v3660
      %v3691 = vadd.f32 %v3657, %v3660
      %v3692 = vadd.f32 %v3658, %v3660
      %v3693 = vadd.f32 %v3661, %v2552
      %v3694 = vadd.f32 %v3662, %v2553
      %v3695 = vadd.f32 %v3663, %v2554
      %v3696 = vadd.f32 %v3664, %v2555
      %v3697 = vadd.f32 %v3665, %v2556
      %v3698 = vadd.f32 %v3666, %v2557
      %v3699 = vadd.f32 %v3667, %v2558
      %v3700 = vadd.f32 %v3668, %v2559
      %v3701 = vadd.f32 %v3669, %v2560
      %v3702 = vadd.f32 %v3670, %v2561
      %v3703 = vadd.f32 %v3671, %v2562
      %v3704 = vadd.f32 %v3672, %v2563
      %v3705 = vadd.f32 %v3673, %v2564
      %v3706 = vadd.f32 %v3674, %v2565
      %v3707 = vadd.f32 %v3675, %v2566
      %v3708 = vadd.f32 %v3676, %v2567
      %v3709 = vadd.f32 %v3677, %v2568
      %v3710 = vadd.f32 %v3678, %v2569
      %v3711 = vadd.f32 %v3679, %v2570
      %v3712 = vadd.f32 %v3680, %v2571
      %v3713 = vadd.f32 %v3681, %v2572
      %v3714 = vadd.f32 %v3682, %v2573
      %v3715 = vadd.f32 %v3683, %v2574
      %v3716 = vadd.f32 %v3684, %v2575
      %v3717 = vadd.f32 %v3685, %v2576
      %v3718 = vadd.f32 %v3686, %v2577
      %v3719 = vadd.f32 %v3687, %v2578
      %v3720 = vadd.f32 %v3688, %v2579
      %v3721 = vadd.f32 %v3689, %v2580
      %v3722 = vadd.f32 %v3690, %v2581
      %v3723 = vadd.f32 %v3691, %v2582
      %v3724 = vadd.f32 %v3692, %v2583
      %v3725 = vmax.f32 %v3693, 0.0
      %v3726 = vmax.f32 %v3694, 0.0
      %v3727 = vmax.f32 %v3695, 0.0
      %v3728 = vmax.f32 %v3696, 0.0
      %v3729 = vmax.f32 %v3697, 0.0
      %v3730 = vmax.f32 %v3698, 0.0
      %v3731 = vmax.f32 %v3699, 0.0
      %v3732 = vmax.f32 %v3700, 0.0
      %v3733 = vmax.f32 %v3701, 0.0
      %v3734 = vmax.f32 %v3702, 0.0
      %v3735 = vmax.f32 %v3703, 0.0
      %v3736 = vmax.f32 %v3704, 0.0
      %v3737 = vmax.f32 %v3705, 0.0
      %v3738 = vmax.f32 %v3706, 0.0
      %v3739 = vmax.f32 %v3707, 0.0
      %v3740 = vmax.f32 %v3708, 0.0
      %v3741 = vmax.f32 %v3709, 0.0
      %v3742 = vmax.f32 %v3710, 0.0
      %v3743 = vmax.f32 %v3711, 0.0
      %v3744 = vmax.f32 %v3712, 0.0
      %v3745 = vmax.f32 %v3713, 0.0
      %v3746 = vmax.f32 %v3714, 0.0
      %v3747 = vmax.f32 %v3715, 0.0
      %v3748 = vmax.f32 %v3716, 0.0
      %v3749 = vmax.f32 %v3717, 0.0
      %v3750 = vmax.f32 %v3718, 0.0
      %v3751 = vmax.f32 %v3719, 0.0
      %v3752 = vmax.f32 %v3720, 0.0
      %v3753 = vmax.f32 %v3721, 0.0
      %v3754 = vmax.f32 %v3722, 0.0
      %v3755 = vmax.f32 %v3723, 0.0
      %v3756 = vmax.f32 %v3724, 0.0
      %v3757 = vld [vmem:[%s1 + $0xa9] sm:$0x1]
      %v3758 = vperm.slane %v3757, 0
      %v3759 = vmul.f32 %v3725, %v3758
      %v3760 = vmul.f32 %v3726, %v3758
      %v3761 = vmul.f32 %v3727, %v3758
      %v3762 = vmul.f32 %v3728, %v3758
      %v3763 = vmul.f32 %v3729, %v3758
      %v3764 = vmul.f32 %v3730, %v3758
      %v3765 = vmul.f32 %v3731, %v3758
      %v3766 = vmul.f32 %v3732, %v3758
      %v3767 = vmul.f32 %v3733, %v3758
      %v3768 = vmul.f32 %v3734, %v3758
      %v3769 = vmul.f32 %v3735, %v3758
      %v3770 = vmul.f32 %v3736, %v3758
      %v3771 = vmul.f32 %v3737, %v3758
      %v3772 = vmul.f32 %v3738, %v3758
      %v3773 = vmul.f32 %v3739, %v3758
      %v3774 = vmul.f32 %v3740, %v3758
      %v3775 = vmul.f32 %v3741, %v3758
      %v3776 = vmul.f32 %v3742, %v3758
      %v3777 = vmul.f32 %v3743, %v3758
      %v3778 = vmul.f32 %v3744, %v3758
      %v3779 = vmul.f32 %v3745, %v3758
      %v3780 = vmul.f32 %v3746, %v3758
      %v3781 = vmul.f32 %v3747, %v3758
      %v3782 = vmul.f32 %v3748, %v3758
      %v3783 = vmul.f32 %v3749, %v3758
      %v3784 = vmul.f32 %v3750, %v3758
      %v3785 = vmul.f32 %v3751, %v3758
      %v3786 = vmul.f32 %v3752, %v3758
      %v3787 = vmul.f32 %v3753, %v3758
      %v3788 = vmul.f32 %v3754, %v3758
      %v3789 = vmul.f32 %v3755, %v3758
      %v3790 = vmul.f32 %v3756, %v3758
      %v3791 = vsel %vm2228, %v3759, 0.0
      %3792 = vadd.xlane.f32.xlu0 %v3791
      %v3793 = vpop.xlane.xlu0 %3792
      %v3794 = vsel %vm2228, %v3760, 0.0
      %3795 = vadd.xlane.f32.xlu0 %v3794
      %v3796 = vpop.xlane.xlu0 %3795
      %v3797 = vsel %vm2228, %v3761, 0.0
      %3798 = vadd.xlane.f32.xlu0 %v3797
      %v3799 = vpop.xlane.xlu0 %3798
      %v3800 = vsel %vm2228, %v3762, 0.0
      %3801 = vadd.xlane.f32.xlu0 %v3800
      %v3802 = vpop.xlane.xlu0 %3801
      %v3803 = vsel %vm2228, %v3763, 0.0
      %3804 = vadd.xlane.f32.xlu0 %v3803
      %v3805 = vpop.xlane.xlu0 %3804
      %v3806 = vsel %vm2228, %v3764, 0.0
      %3807 = vadd.xlane.f32.xlu0 %v3806
      %v3808 = vpop.xlane.xlu0 %3807
      %v3809 = vsel %vm2228, %v3765, 0.0
      %3810 = vadd.xlane.f32.xlu0 %v3809
      %v3811 = vpop.xlane.xlu0 %3810
      %v3812 = vsel %vm2228, %v3766, 0.0
      %3813 = vadd.xlane.f32.xlu0 %v3812
      %v3814 = vpop.xlane.xlu0 %3813
      %v3815 = vsel %vm2228, %v3767, 0.0
      %3816 = vadd.xlane.f32.xlu0 %v3815
      %v3817 = vpop.xlane.xlu0 %3816
      %v3818 = vsel %vm2228, %v3768, 0.0
      %3819 = vadd.xlane.f32.xlu0 %v3818
      %v3820 = vpop.xlane.xlu0 %3819
      %v3821 = vsel %vm2228, %v3769, 0.0
      %3822 = vadd.xlane.f32.xlu0 %v3821
      %v3823 = vpop.xlane.xlu0 %3822
      %v3824 = vsel %vm2228, %v3770, 0.0
      %3825 = vadd.xlane.f32.xlu0 %v3824
      %v3826 = vpop.xlane.xlu0 %3825
      %v3827 = vsel %vm2228, %v3771, 0.0
      %3828 = vadd.xlane.f32.xlu0 %v3827
      %v3829 = vpop.xlane.xlu0 %3828
      %v3830 = vsel %vm2228, %v3772, 0.0
      %3831 = vadd.xlane.f32.xlu0 %v3830
      %v3832 = vpop.xlane.xlu0 %3831
      %v3833 = vsel %vm2228, %v3773, 0.0
      %3834 = vadd.xlane.f32.xlu0 %v3833
      %v3835 = vpop.xlane.xlu0 %3834
      %v3836 = vsel %vm2228, %v3774, 0.0
      %3837 = vadd.xlane.f32.xlu0 %v3836
      %v3838 = vpop.xlane.xlu0 %3837
      %v3839 = vsel %vm2228, %v3775, 0.0
      %3840 = vadd.xlane.f32.xlu0 %v3839
      %v3841 = vpop.xlane.xlu0 %3840
      %v3842 = vsel %vm2228, %v3776, 0.0
      %3843 = vadd.xlane.f32.xlu0 %v3842
      %v3844 = vpop.xlane.xlu0 %3843
      %v3845 = vsel %vm2228, %v3777, 0.0
      %3846 = vadd.xlane.f32.xlu0 %v3845
      %v3847 = vpop.xlane.xlu0 %3846
      %v3848 = vsel %vm2228, %v3778, 0.0
      %3849 = vadd.xlane.f32.xlu0 %v3848
      %v3850 = vpop.xlane.xlu0 %3849
      %v3851 = vsel %vm2228, %v3779, 0.0
      %3852 = vadd.xlane.f32.xlu0 %v3851
      %v3853 = vpop.xlane.xlu0 %3852
      %v3854 = vsel %vm2228, %v3780, 0.0
      %3855 = vadd.xlane.f32.xlu0 %v3854
      %v3856 = vpop.xlane.xlu0 %3855
      %v3857 = vsel %vm2228, %v3781, 0.0
      %3858 = vadd.xlane.f32.xlu0 %v3857
      %v3859 = vpop.xlane.xlu0 %3858
      %v3860 = vsel %vm2228, %v3782, 0.0
      %3861 = vadd.xlane.f32.xlu0 %v3860
      %v3862 = vpop.xlane.xlu0 %3861
      %v3863 = vsel %vm2228, %v3783, 0.0
      %3864 = vadd.xlane.f32.xlu0 %v3863
      %v3865 = vpop.xlane.xlu0 %3864
      %v3866 = vsel %vm2228, %v3784, 0.0
      %3867 = vadd.xlane.f32.xlu0 %v3866
      %v3868 = vpop.xlane.xlu0 %3867
      %v3869 = vsel %vm2228, %v3785, 0.0
      %3870 = vadd.xlane.f32.xlu0 %v3869
      %v3871 = vpop.xlane.xlu0 %3870
      %v3872 = vsel %vm2228, %v3786, 0.0
      %3873 = vadd.xlane.f32.xlu0 %v3872
      %v3874 = vpop.xlane.xlu0 %3873
      %v3875 = vsel %vm2228, %v3787, 0.0
      %3876 = vadd.xlane.f32.xlu0 %v3875
      %v3877 = vpop.xlane.xlu0 %3876
      %v3878 = vsel %vm2228, %v3788, 0.0
      %3879 = vadd.xlane.f32.xlu0 %v3878
      %v3880 = vpop.xlane.xlu0 %3879
      %v3881 = vsel %vm2228, %v3789, 0.0
      %3882 = vadd.xlane.f32.xlu0 %v3881
      %v3883 = vpop.xlane.xlu0 %3882
      %v3884 = vsel %vm2228, %v3790, 0.0
      %3885 = vadd.xlane.f32.xlu0 %v3884
      %v3886 = vpop.xlane.xlu0 %3885
      %v3887 = vld [vmem:[%s1 + $0xaa] sm:$0x1]
      %v3888 = vperm.slane %v3887, 0
      %v3889 = vadd.f32 %v3793, %v3888
      %v3890 = vadd.f32 %v3796, %v3888
      %v3891 = vadd.f32 %v3799, %v3888
      %v3892 = vadd.f32 %v3802, %v3888
      %v3893 = vadd.f32 %v3805, %v3888
      %v3894 = vadd.f32 %v3808, %v3888
      %v3895 = vadd.f32 %v3811, %v3888
      %v3896 = vadd.f32 %v3814, %v3888
      %v3897 = vadd.f32 %v3817, %v3888
      %v3898 = vadd.f32 %v3820, %v3888
      %v3899 = vadd.f32 %v3823, %v3888
      %v3900 = vadd.f32 %v3826, %v3888
      %v3901 = vadd.f32 %v3829, %v3888
      %v3902 = vadd.f32 %v3832, %v3888
      %v3903 = vadd.f32 %v3835, %v3888
      %v3904 = vadd.f32 %v3838, %v3888
      %v3905 = vadd.f32 %v3841, %v3888
      %v3906 = vadd.f32 %v3844, %v3888
      %v3907 = vadd.f32 %v3847, %v3888
      %v3908 = vadd.f32 %v3850, %v3888
      %v3909 = vadd.f32 %v3853, %v3888
      %v3910 = vadd.f32 %v3856, %v3888
      %v3911 = vadd.f32 %v3859, %v3888
      %v3912 = vadd.f32 %v3862, %v3888
      %v3913 = vadd.f32 %v3865, %v3888
      %v3914 = vadd.f32 %v3868, %v3888
      %v3915 = vadd.f32 %v3871, %v3888
      %v3916 = vadd.f32 %v3874, %v3888
      %v3917 = vadd.f32 %v3877, %v3888
      %v3918 = vadd.f32 %v3880, %v3888
      %v3919 = vadd.f32 %v3883, %v3888
      %v3920 = vadd.f32 %v3886, %v3888
      %v3921 = vxor.u32 %v3889, 2147483648
      %v3922 = vxor.u32 %v3890, 2147483648
      %v3923 = vxor.u32 %v3891, 2147483648
      %v3924 = vxor.u32 %v3892, 2147483648
      %v3925 = vxor.u32 %v3893, 2147483648
      %v3926 = vxor.u32 %v3894, 2147483648
      %v3927 = vxor.u32 %v3895, 2147483648
      %v3928 = vxor.u32 %v3896, 2147483648
      %v3929 = vxor.u32 %v3897, 2147483648
      %v3930 = vxor.u32 %v3898, 2147483648
      %v3931 = vxor.u32 %v3899, 2147483648
      %v3932 = vxor.u32 %v3900, 2147483648
      %v3933 = vxor.u32 %v3901, 2147483648
      %v3934 = vxor.u32 %v3902, 2147483648
      %v3935 = vxor.u32 %v3903, 2147483648
      %v3936 = vxor.u32 %v3904, 2147483648
      %v3937 = vxor.u32 %v3905, 2147483648
      %v3938 = vxor.u32 %v3906, 2147483648
      %v3939 = vxor.u32 %v3907, 2147483648
      %v3940 = vxor.u32 %v3908, 2147483648
      %v3941 = vxor.u32 %v3909, 2147483648
      %v3942 = vxor.u32 %v3910, 2147483648
      %v3943 = vxor.u32 %v3911, 2147483648
      %v3944 = vxor.u32 %v3912, 2147483648
      %v3945 = vxor.u32 %v3913, 2147483648
      %v3946 = vxor.u32 %v3914, 2147483648
      %v3947 = vxor.u32 %v3915, 2147483648
      %v3948 = vxor.u32 %v3916, 2147483648
      %v3949 = vxor.u32 %v3917, 2147483648
      %v3950 = vxor.u32 %v3918, 2147483648
      %v3951 = vxor.u32 %v3919, 2147483648
      %v3952 = vxor.u32 %v3920, 2147483648
      %v3953 = vmul.f32 %v3921, 1.442695
      %v3954 = vpow.pop %v3953
      %v3955 = vmul.f32 %v3922, 1.442695
      %v3956 = vpow.pop %v3955
      %v3957 = vmul.f32 %v3923, 1.442695
      %v3958 = vpow.pop %v3957
      %v3959 = vmul.f32 %v3924, 1.442695
      %v3960 = vpow.pop %v3959
      %v3961 = vmul.f32 %v3925, 1.442695
      %v3962 = vpow.pop %v3961
      %v3963 = vmul.f32 %v3926, 1.442695
      %v3964 = vpow.pop %v3963
      %v3965 = vmul.f32 %v3927, 1.442695
      %v3966 = vpow.pop %v3965
      %v3967 = vmul.f32 %v3928, 1.442695
      %v3968 = vpow.pop %v3967
      %v3969 = vmul.f32 %v3929, 1.442695
      %v3970 = vpow.pop %v3969
      %v3971 = vmul.f32 %v3930, 1.442695
      %v3972 = vpow.pop %v3971
      %v3973 = vmul.f32 %v3931, 1.442695
      %v3974 = vpow.pop %v3973
      %v3975 = vmul.f32 %v3932, 1.442695
      %v3976 = vpow.pop %v3975
      %v3977 = vmul.f32 %v3933, 1.442695
      %v3978 = vpow.pop %v3977
      %v3979 = vmul.f32 %v3934, 1.442695
      %v3980 = vpow.pop %v3979
      %v3981 = vmul.f32 %v3935, 1.442695
      %v3982 = vpow.pop %v3981
      %v3983 = vmul.f32 %v3936, 1.442695
      %v3984 = vpow.pop %v3983
      %v3985 = vmul.f32 %v3937, 1.442695
      %v3986 = vpow.pop %v3985
      %v3987 = vmul.f32 %v3938, 1.442695
      %v3988 = vpow.pop %v3987
      %v3989 = vmul.f32 %v3939, 1.442695
      %v3990 = vpow.pop %v3989
      %v3991 = vmul.f32 %v3940, 1.442695
      %v3992 = vpow.pop %v3991
      %v3993 = vmul.f32 %v3941, 1.442695
      %v3994 = vpow.pop %v3993
      %v3995 = vmul.f32 %v3942, 1.442695
      %v3996 = vpow.pop %v3995
      %v3997 = vmul.f32 %v3943, 1.442695
      %v3998 = vpow.pop %v3997
      %v3999 = vmul.f32 %v3944, 1.442695
      %v4000 = vpow.pop %v3999
      %v4001 = vmul.f32 %v3945, 1.442695
      %v4002 = vpow.pop %v4001
      %v4003 = vmul.f32 %v3946, 1.442695
      %v4004 = vpow.pop %v4003
      %v4005 = vmul.f32 %v3947, 1.442695
      %v4006 = vpow.pop %v4005
      %v4007 = vmul.f32 %v3948, 1.442695
      %v4008 = vpow.pop %v4007
      %v4009 = vmul.f32 %v3949, 1.442695
      %v4010 = vpow.pop %v4009
      %v4011 = vmul.f32 %v3950, 1.442695
      %v4012 = vpow.pop %v4011
      %v4013 = vmul.f32 %v3951, 1.442695
      %v4014 = vpow.pop %v4013
      %v4015 = vmul.f32 %v3952, 1.442695
      %v4016 = vpow.pop %v4015
      %v4017 = vadd.f32 %v3954, 1.0
      %v4018 = vadd.f32 %v3956, 1.0
      %v4019 = vadd.f32 %v3958, 1.0
      %v4020 = vadd.f32 %v3960, 1.0
      %v4021 = vadd.f32 %v3962, 1.0
      %v4022 = vadd.f32 %v3964, 1.0
      %v4023 = vadd.f32 %v3966, 1.0
      %v4024 = vadd.f32 %v3968, 1.0
      %v4025 = vadd.f32 %v3970, 1.0
      %v4026 = vadd.f32 %v3972, 1.0
      %v4027 = vadd.f32 %v3974, 1.0
      %v4028 = vadd.f32 %v3976, 1.0
      %v4029 = vadd.f32 %v3978, 1.0
      %v4030 = vadd.f32 %v3980, 1.0
      %v4031 = vadd.f32 %v3982, 1.0
      %v4032 = vadd.f32 %v3984, 1.0
      %v4033 = vadd.f32 %v3986, 1.0
      %v4034 = vadd.f32 %v3988, 1.0
      %v4035 = vadd.f32 %v3990, 1.0
      %v4036 = vadd.f32 %v3992, 1.0
      %v4037 = vadd.f32 %v3994, 1.0
      %v4038 = vadd.f32 %v3996, 1.0
      %v4039 = vadd.f32 %v3998, 1.0
      %v4040 = vadd.f32 %v4000, 1.0
      %v4041 = vadd.f32 %v4002, 1.0
      %v4042 = vadd.f32 %v4004, 1.0
      %v4043 = vadd.f32 %v4006, 1.0
      %v4044 = vadd.f32 %v4008, 1.0
      %v4045 = vadd.f32 %v4010, 1.0
      %v4046 = vadd.f32 %v4012, 1.0
      %v4047 = vadd.f32 %v4014, 1.0
      %v4048 = vadd.f32 %v4016, 1.0
      %v4049 = vrcp.pop %v4017
      %v4050 = vmul.f32 %v4017, %v4049
      %v4051 = vsub.f32 1.0, %v4050
      %v4052 = vmul.f32 %v4049, %v4051
      %v4053 = vadd.f32 %v4049, %v4052
      %vm4054 = vweird.f32 %v4017
      %vm4055 = vweird.f32 %v4049
      %vm4056 = vmor %vm4054, %vm4055
      %v4057 = vsel %vm4056, %v4049, %v4053
      %v4058 = vand.u32 2147483647, %v4017
      %vm4059 = vcmp.eq.f32.partialorder %v4058, 8.507059e+37
      %v4060 = vand.u32 %v4017, 2147483648
      %v4061 = vor.u32 1.1754944e-38, %v4060
      %v4062 = vsel %vm4059, %v4061, %v4057
      %v4063 = vmul.f32 1.0, %v4062
      %v4064 = vrcp.pop %v4018
      %v4065 = vmul.f32 %v4018, %v4064
      %v4066 = vsub.f32 1.0, %v4065
      %v4067 = vmul.f32 %v4064, %v4066
      %v4068 = vadd.f32 %v4064, %v4067
      %vm4069 = vweird.f32 %v4018
      %vm4070 = vweird.f32 %v4064
      %vm4071 = vmor %vm4069, %vm4070
      %v4072 = vsel %vm4071, %v4064, %v4068
      %v4073 = vand.u32 2147483647, %v4018
      %vm4074 = vcmp.eq.f32.partialorder %v4073, 8.507059e+37
      %v4075 = vand.u32 %v4018, 2147483648
      %v4076 = vor.u32 1.1754944e-38, %v4075
      %v4077 = vsel %vm4074, %v4076, %v4072
      %v4078 = vmul.f32 1.0, %v4077
      %v4079 = vrcp.pop %v4019
      %v4080 = vmul.f32 %v4019, %v4079
      %v4081 = vsub.f32 1.0, %v4080
      %v4082 = vmul.f32 %v4079, %v4081
      %v4083 = vadd.f32 %v4079, %v4082
      %vm4084 = vweird.f32 %v4019
      %vm4085 = vweird.f32 %v4079
      %vm4086 = vmor %vm4084, %vm4085
      %v4087 = vsel %vm4086, %v4079, %v4083
      %v4088 = vand.u32 2147483647, %v4019
      %vm4089 = vcmp.eq.f32.partialorder %v4088, 8.507059e+37
      %v4090 = vand.u32 %v4019, 2147483648
      %v4091 = vor.u32 1.1754944e-38, %v4090
      %v4092 = vsel %vm4089, %v4091, %v4087
      %v4093 = vmul.f32 1.0, %v4092
      %v4094 = vrcp.pop %v4020
      %v4095 = vmul.f32 %v4020, %v4094
      %v4096 = vsub.f32 1.0, %v4095
      %v4097 = vmul.f32 %v4094, %v4096
      %v4098 = vadd.f32 %v4094, %v4097
      %vm4099 = vweird.f32 %v4020
      %vm4100 = vweird.f32 %v4094
      %vm4101 = vmor %vm4099, %vm4100
      %v4102 = vsel %vm4101, %v4094, %v4098
      %v4103 = vand.u32 2147483647, %v4020
      %vm4104 = vcmp.eq.f32.partialorder %v4103, 8.507059e+37
      %v4105 = vand.u32 %v4020, 2147483648
      %v4106 = vor.u32 1.1754944e-38, %v4105
      %v4107 = vsel %vm4104, %v4106, %v4102
      %v4108 = vmul.f32 1.0, %v4107
      %v4109 = vrcp.pop %v4021
      %v4110 = vmul.f32 %v4021, %v4109
      %v4111 = vsub.f32 1.0, %v4110
      %v4112 = vmul.f32 %v4109, %v4111
      %v4113 = vadd.f32 %v4109, %v4112
      %vm4114 = vweird.f32 %v4021
      %vm4115 = vweird.f32 %v4109
      %vm4116 = vmor %vm4114, %vm4115
      %v4117 = vsel %vm4116, %v4109, %v4113
      %v4118 = vand.u32 2147483647, %v4021
      %vm4119 = vcmp.eq.f32.partialorder %v4118, 8.507059e+37
      %v4120 = vand.u32 %v4021, 2147483648
      %v4121 = vor.u32 1.1754944e-38, %v4120
      %v4122 = vsel %vm4119, %v4121, %v4117
      %v4123 = vmul.f32 1.0, %v4122
      %v4124 = vrcp.pop %v4022
      %v4125 = vmul.f32 %v4022, %v4124
      %v4126 = vsub.f32 1.0, %v4125
      %v4127 = vmul.f32 %v4124, %v4126
      %v4128 = vadd.f32 %v4124, %v4127
      %vm4129 = vweird.f32 %v4022
      %vm4130 = vweird.f32 %v4124
      %vm4131 = vmor %vm4129, %vm4130
      %v4132 = vsel %vm4131, %v4124, %v4128
      %v4133 = vand.u32 2147483647, %v4022
      %vm4134 = vcmp.eq.f32.partialorder %v4133, 8.507059e+37
      %v4135 = vand.u32 %v4022, 2147483648
      %v4136 = vor.u32 1.1754944e-38, %v4135
      %v4137 = vsel %vm4134, %v4136, %v4132
      %v4138 = vmul.f32 1.0, %v4137
      %v4139 = vrcp.pop %v4023
      %v4140 = vmul.f32 %v4023, %v4139
      %v4141 = vsub.f32 1.0, %v4140
      %v4142 = vmul.f32 %v4139, %v4141
      %v4143 = vadd.f32 %v4139, %v4142
      %vm4144 = vweird.f32 %v4023
      %vm4145 = vweird.f32 %v4139
      %vm4146 = vmor %vm4144, %vm4145
      %v4147 = vsel %vm4146, %v4139, %v4143
      %v4148 = vand.u32 2147483647, %v4023
      %vm4149 = vcmp.eq.f32.partialorder %v4148, 8.507059e+37
      %v4150 = vand.u32 %v4023, 2147483648
      %v4151 = vor.u32 1.1754944e-38, %v4150
      %v4152 = vsel %vm4149, %v4151, %v4147
      %v4153 = vmul.f32 1.0, %v4152
      %v4154 = vrcp.pop %v4024
      %v4155 = vmul.f32 %v4024, %v4154
      %v4156 = vsub.f32 1.0, %v4155
      %v4157 = vmul.f32 %v4154, %v4156
      %v4158 = vadd.f32 %v4154, %v4157
      %vm4159 = vweird.f32 %v4024
      %vm4160 = vweird.f32 %v4154
      %vm4161 = vmor %vm4159, %vm4160
      %v4162 = vsel %vm4161, %v4154, %v4158
      %v4163 = vand.u32 2147483647, %v4024
      %vm4164 = vcmp.eq.f32.partialorder %v4163, 8.507059e+37
      %v4165 = vand.u32 %v4024, 2147483648
      %v4166 = vor.u32 1.1754944e-38, %v4165
      %v4167 = vsel %vm4164, %v4166, %v4162
      %v4168 = vmul.f32 1.0, %v4167
      %v4169 = vrcp.pop %v4025
      %v4170 = vmul.f32 %v4025, %v4169
      %v4171 = vsub.f32 1.0, %v4170
      %v4172 = vmul.f32 %v4169, %v4171
      %v4173 = vadd.f32 %v4169, %v4172
      %vm4174 = vweird.f32 %v4025
      %vm4175 = vweird.f32 %v4169
      %vm4176 = vmor %vm4174, %vm4175
      %v4177 = vsel %vm4176, %v4169, %v4173
      %v4178 = vand.u32 2147483647, %v4025
      %vm4179 = vcmp.eq.f32.partialorder %v4178, 8.507059e+37
      %v4180 = vand.u32 %v4025, 2147483648
      %v4181 = vor.u32 1.1754944e-38, %v4180
      %v4182 = vsel %vm4179, %v4181, %v4177
      %v4183 = vmul.f32 1.0, %v4182
      %v4184 = vrcp.pop %v4026
      %v4185 = vmul.f32 %v4026, %v4184
      %v4186 = vsub.f32 1.0, %v4185
      %v4187 = vmul.f32 %v4184, %v4186
      %v4188 = vadd.f32 %v4184, %v4187
      %vm4189 = vweird.f32 %v4026
      %vm4190 = vweird.f32 %v4184
      %vm4191 = vmor %vm4189, %vm4190
      %v4192 = vsel %vm4191, %v4184, %v4188
      %v4193 = vand.u32 2147483647, %v4026
      %vm4194 = vcmp.eq.f32.partialorder %v4193, 8.507059e+37
      %v4195 = vand.u32 %v4026, 2147483648
      %v4196 = vor.u32 1.1754944e-38, %v4195
      %v4197 = vsel %vm4194, %v4196, %v4192
      %v4198 = vmul.f32 1.0, %v4197
      %v4199 = vrcp.pop %v4027
      %v4200 = vmul.f32 %v4027, %v4199
      %v4201 = vsub.f32 1.0, %v4200
      %v4202 = vmul.f32 %v4199, %v4201
      %v4203 = vadd.f32 %v4199, %v4202
      %vm4204 = vweird.f32 %v4027
      %vm4205 = vweird.f32 %v4199
      %vm4206 = vmor %vm4204, %vm4205
      %v4207 = vsel %vm4206, %v4199, %v4203
      %v4208 = vand.u32 2147483647, %v4027
      %vm4209 = vcmp.eq.f32.partialorder %v4208, 8.507059e+37
      %v4210 = vand.u32 %v4027, 2147483648
      %v4211 = vor.u32 1.1754944e-38, %v4210
      %v4212 = vsel %vm4209, %v4211, %v4207
      %v4213 = vmul.f32 1.0, %v4212
      %v4214 = vrcp.pop %v4028
      %v4215 = vmul.f32 %v4028, %v4214
      %v4216 = vsub.f32 1.0, %v4215
      %v4217 = vmul.f32 %v4214, %v4216
      %v4218 = vadd.f32 %v4214, %v4217
      %vm4219 = vweird.f32 %v4028
      %vm4220 = vweird.f32 %v4214
      %vm4221 = vmor %vm4219, %vm4220
      %v4222 = vsel %vm4221, %v4214, %v4218
      %v4223 = vand.u32 2147483647, %v4028
      %vm4224 = vcmp.eq.f32.partialorder %v4223, 8.507059e+37
      %v4225 = vand.u32 %v4028, 2147483648
      %v4226 = vor.u32 1.1754944e-38, %v4225
      %v4227 = vsel %vm4224, %v4226, %v4222
      %v4228 = vmul.f32 1.0, %v4227
      %v4229 = vrcp.pop %v4029
      %v4230 = vmul.f32 %v4029, %v4229
      %v4231 = vsub.f32 1.0, %v4230
      %v4232 = vmul.f32 %v4229, %v4231
      %v4233 = vadd.f32 %v4229, %v4232
      %vm4234 = vweird.f32 %v4029
      %vm4235 = vweird.f32 %v4229
      %vm4236 = vmor %vm4234, %vm4235
      %v4237 = vsel %vm4236, %v4229, %v4233
      %v4238 = vand.u32 2147483647, %v4029
      %vm4239 = vcmp.eq.f32.partialorder %v4238, 8.507059e+37
      %v4240 = vand.u32 %v4029, 2147483648
      %v4241 = vor.u32 1.1754944e-38, %v4240
      %v4242 = vsel %vm4239, %v4241, %v4237
      %v4243 = vmul.f32 1.0, %v4242
      %v4244 = vrcp.pop %v4030
      %v4245 = vmul.f32 %v4030, %v4244
      %v4246 = vsub.f32 1.0, %v4245
      %v4247 = vmul.f32 %v4244, %v4246
      %v4248 = vadd.f32 %v4244, %v4247
      %vm4249 = vweird.f32 %v4030
      %vm4250 = vweird.f32 %v4244
      %vm4251 = vmor %vm4249, %vm4250
      %v4252 = vsel %vm4251, %v4244, %v4248
      %v4253 = vand.u32 2147483647, %v4030
      %vm4254 = vcmp.eq.f32.partialorder %v4253, 8.507059e+37
      %v4255 = vand.u32 %v4030, 2147483648
      %v4256 = vor.u32 1.1754944e-38, %v4255
      %v4257 = vsel %vm4254, %v4256, %v4252
      %v4258 = vmul.f32 1.0, %v4257
      %v4259 = vrcp.pop %v4031
      %v4260 = vmul.f32 %v4031, %v4259
      %v4261 = vsub.f32 1.0, %v4260
      %v4262 = vmul.f32 %v4259, %v4261
      %v4263 = vadd.f32 %v4259, %v4262
      %vm4264 = vweird.f32 %v4031
      %vm4265 = vweird.f32 %v4259
      %vm4266 = vmor %vm4264, %vm4265
      %v4267 = vsel %vm4266, %v4259, %v4263
      %v4268 = vand.u32 2147483647, %v4031
      %vm4269 = vcmp.eq.f32.partialorder %v4268, 8.507059e+37
      %v4270 = vand.u32 %v4031, 2147483648
      %v4271 = vor.u32 1.1754944e-38, %v4270
      %v4272 = vsel %vm4269, %v4271, %v4267
      %v4273 = vmul.f32 1.0, %v4272
      %v4274 = vrcp.pop %v4032
      %v4275 = vmul.f32 %v4032, %v4274
      %v4276 = vsub.f32 1.0, %v4275
      %v4277 = vmul.f32 %v4274, %v4276
      %v4278 = vadd.f32 %v4274, %v4277
      %vm4279 = vweird.f32 %v4032
      %vm4280 = vweird.f32 %v4274
      %vm4281 = vmor %vm4279, %vm4280
      %v4282 = vsel %vm4281, %v4274, %v4278
      %v4283 = vand.u32 2147483647, %v4032
      %vm4284 = vcmp.eq.f32.partialorder %v4283, 8.507059e+37
      %v4285 = vand.u32 %v4032, 2147483648
      %v4286 = vor.u32 1.1754944e-38, %v4285
      %v4287 = vsel %vm4284, %v4286, %v4282
      %v4288 = vmul.f32 1.0, %v4287
      %v4289 = vrcp.pop %v4033
      %v4290 = vmul.f32 %v4033, %v4289
      %v4291 = vsub.f32 1.0, %v4290
      %v4292 = vmul.f32 %v4289, %v4291
      %v4293 = vadd.f32 %v4289, %v4292
      %vm4294 = vweird.f32 %v4033
      %vm4295 = vweird.f32 %v4289
      %vm4296 = vmor %vm4294, %vm4295
      %v4297 = vsel %vm4296, %v4289, %v4293
      %v4298 = vand.u32 2147483647, %v4033
      %vm4299 = vcmp.eq.f32.partialorder %v4298, 8.507059e+37
      %v4300 = vand.u32 %v4033, 2147483648
      %v4301 = vor.u32 1.1754944e-38, %v4300
      %v4302 = vsel %vm4299, %v4301, %v4297
      %v4303 = vmul.f32 1.0, %v4302
      %v4304 = vrcp.pop %v4034
      %v4305 = vmul.f32 %v4034, %v4304
      %v4306 = vsub.f32 1.0, %v4305
      %v4307 = vmul.f32 %v4304, %v4306
      %v4308 = vadd.f32 %v4304, %v4307
      %vm4309 = vweird.f32 %v4034
      %vm4310 = vweird.f32 %v4304
      %vm4311 = vmor %vm4309, %vm4310
      %v4312 = vsel %vm4311, %v4304, %v4308
      %v4313 = vand.u32 2147483647, %v4034
      %vm4314 = vcmp.eq.f32.partialorder %v4313, 8.507059e+37
      %v4315 = vand.u32 %v4034, 2147483648
      %v4316 = vor.u32 1.1754944e-38, %v4315
      %v4317 = vsel %vm4314, %v4316, %v4312
      %v4318 = vmul.f32 1.0, %v4317
      %v4319 = vrcp.pop %v4035
      %v4320 = vmul.f32 %v4035, %v4319
      %v4321 = vsub.f32 1.0, %v4320
      %v4322 = vmul.f32 %v4319, %v4321
      %v4323 = vadd.f32 %v4319, %v4322
      %vm4324 = vweird.f32 %v4035
      %vm4325 = vweird.f32 %v4319
      %vm4326 = vmor %vm4324, %vm4325
      %v4327 = vsel %vm4326, %v4319, %v4323
      %v4328 = vand.u32 2147483647, %v4035
      %vm4329 = vcmp.eq.f32.partialorder %v4328, 8.507059e+37
      %v4330 = vand.u32 %v4035, 2147483648
      %v4331 = vor.u32 1.1754944e-38, %v4330
      %v4332 = vsel %vm4329, %v4331, %v4327
      %v4333 = vmul.f32 1.0, %v4332
      %v4334 = vrcp.pop %v4036
      %v4335 = vmul.f32 %v4036, %v4334
      %v4336 = vsub.f32 1.0, %v4335
      %v4337 = vmul.f32 %v4334, %v4336
      %v4338 = vadd.f32 %v4334, %v4337
      %vm4339 = vweird.f32 %v4036
      %vm4340 = vweird.f32 %v4334
      %vm4341 = vmor %vm4339, %vm4340
      %v4342 = vsel %vm4341, %v4334, %v4338
      %v4343 = vand.u32 2147483647, %v4036
      %vm4344 = vcmp.eq.f32.partialorder %v4343, 8.507059e+37
      %v4345 = vand.u32 %v4036, 2147483648
      %v4346 = vor.u32 1.1754944e-38, %v4345
      %v4347 = vsel %vm4344, %v4346, %v4342
      %v4348 = vmul.f32 1.0, %v4347
      %v4349 = vrcp.pop %v4037
      %v4350 = vmul.f32 %v4037, %v4349
      %v4351 = vsub.f32 1.0, %v4350
      %v4352 = vmul.f32 %v4349, %v4351
      %v4353 = vadd.f32 %v4349, %v4352
      %vm4354 = vweird.f32 %v4037
      %vm4355 = vweird.f32 %v4349
      %vm4356 = vmor %vm4354, %vm4355
      %v4357 = vsel %vm4356, %v4349, %v4353
      %v4358 = vand.u32 2147483647, %v4037
      %vm4359 = vcmp.eq.f32.partialorder %v4358, 8.507059e+37
      %v4360 = vand.u32 %v4037, 2147483648
      %v4361 = vor.u32 1.1754944e-38, %v4360
      %v4362 = vsel %vm4359, %v4361, %v4357
      %v4363 = vmul.f32 1.0, %v4362
      %v4364 = vrcp.pop %v4038
      %v4365 = vmul.f32 %v4038, %v4364
      %v4366 = vsub.f32 1.0, %v4365
      %v4367 = vmul.f32 %v4364, %v4366
      %v4368 = vadd.f32 %v4364, %v4367
      %vm4369 = vweird.f32 %v4038
      %vm4370 = vweird.f32 %v4364
      %vm4371 = vmor %vm4369, %vm4370
      %v4372 = vsel %vm4371, %v4364, %v4368
      %v4373 = vand.u32 2147483647, %v4038
      %vm4374 = vcmp.eq.f32.partialorder %v4373, 8.507059e+37
      %v4375 = vand.u32 %v4038, 2147483648
      %v4376 = vor.u32 1.1754944e-38, %v4375
      %v4377 = vsel %vm4374, %v4376, %v4372
      %v4378 = vmul.f32 1.0, %v4377
      %v4379 = vrcp.pop %v4039
      %v4380 = vmul.f32 %v4039, %v4379
      %v4381 = vsub.f32 1.0, %v4380
      %v4382 = vmul.f32 %v4379, %v4381
      %v4383 = vadd.f32 %v4379, %v4382
      %vm4384 = vweird.f32 %v4039
      %vm4385 = vweird.f32 %v4379
      %vm4386 = vmor %vm4384, %vm4385
      %v4387 = vsel %vm4386, %v4379, %v4383
      %v4388 = vand.u32 2147483647, %v4039
      %vm4389 = vcmp.eq.f32.partialorder %v4388, 8.507059e+37
      %v4390 = vand.u32 %v4039, 2147483648
      %v4391 = vor.u32 1.1754944e-38, %v4390
      %v4392 = vsel %vm4389, %v4391, %v4387
      %v4393 = vmul.f32 1.0, %v4392
      %v4394 = vrcp.pop %v4040
      %v4395 = vmul.f32 %v4040, %v4394
      %v4396 = vsub.f32 1.0, %v4395
      %v4397 = vmul.f32 %v4394, %v4396
      %v4398 = vadd.f32 %v4394, %v4397
      %vm4399 = vweird.f32 %v4040
      %vm4400 = vweird.f32 %v4394
      %vm4401 = vmor %vm4399, %vm4400
      %v4402 = vsel %vm4401, %v4394, %v4398
      %v4403 = vand.u32 2147483647, %v4040
      %vm4404 = vcmp.eq.f32.partialorder %v4403, 8.507059e+37
      %v4405 = vand.u32 %v4040, 2147483648
      %v4406 = vor.u32 1.1754944e-38, %v4405
      %v4407 = vsel %vm4404, %v4406, %v4402
      %v4408 = vmul.f32 1.0, %v4407
      %v4409 = vrcp.pop %v4041
      %v4410 = vmul.f32 %v4041, %v4409
      %v4411 = vsub.f32 1.0, %v4410
      %v4412 = vmul.f32 %v4409, %v4411
      %v4413 = vadd.f32 %v4409, %v4412
      %vm4414 = vweird.f32 %v4041
      %vm4415 = vweird.f32 %v4409
      %vm4416 = vmor %vm4414, %vm4415
      %v4417 = vsel %vm4416, %v4409, %v4413
      %v4418 = vand.u32 2147483647, %v4041
      %vm4419 = vcmp.eq.f32.partialorder %v4418, 8.507059e+37
      %v4420 = vand.u32 %v4041, 2147483648
      %v4421 = vor.u32 1.1754944e-38, %v4420
      %v4422 = vsel %vm4419, %v4421, %v4417
      %v4423 = vmul.f32 1.0, %v4422
      %v4424 = vrcp.pop %v4042
      %v4425 = vmul.f32 %v4042, %v4424
      %v4426 = vsub.f32 1.0, %v4425
      %v4427 = vmul.f32 %v4424, %v4426
      %v4428 = vadd.f32 %v4424, %v4427
      %vm4429 = vweird.f32 %v4042
      %vm4430 = vweird.f32 %v4424
      %vm4431 = vmor %vm4429, %vm4430
      %v4432 = vsel %vm4431, %v4424, %v4428
      %v4433 = vand.u32 2147483647, %v4042
      %vm4434 = vcmp.eq.f32.partialorder %v4433, 8.507059e+37
      %v4435 = vand.u32 %v4042, 2147483648
      %v4436 = vor.u32 1.1754944e-38, %v4435
      %v4437 = vsel %vm4434, %v4436, %v4432
      %v4438 = vmul.f32 1.0, %v4437
      %v4439 = vrcp.pop %v4043
      %v4440 = vmul.f32 %v4043, %v4439
      %v4441 = vsub.f32 1.0, %v4440
      %v4442 = vmul.f32 %v4439, %v4441
      %v4443 = vadd.f32 %v4439, %v4442
      %vm4444 = vweird.f32 %v4043
      %vm4445 = vweird.f32 %v4439
      %vm4446 = vmor %vm4444, %vm4445
      %v4447 = vsel %vm4446, %v4439, %v4443
      %v4448 = vand.u32 2147483647, %v4043
      %vm4449 = vcmp.eq.f32.partialorder %v4448, 8.507059e+37
      %v4450 = vand.u32 %v4043, 2147483648
      %v4451 = vor.u32 1.1754944e-38, %v4450
      %v4452 = vsel %vm4449, %v4451, %v4447
      %v4453 = vmul.f32 1.0, %v4452
      %v4454 = vrcp.pop %v4044
      %v4455 = vmul.f32 %v4044, %v4454
      %v4456 = vsub.f32 1.0, %v4455
      %v4457 = vmul.f32 %v4454, %v4456
      %v4458 = vadd.f32 %v4454, %v4457
      %vm4459 = vweird.f32 %v4044
      %vm4460 = vweird.f32 %v4454
      %vm4461 = vmor %vm4459, %vm4460
      %v4462 = vsel %vm4461, %v4454, %v4458
      %v4463 = vand.u32 2147483647, %v4044
      %vm4464 = vcmp.eq.f32.partialorder %v4463, 8.507059e+37
      %v4465 = vand.u32 %v4044, 2147483648
      %v4466 = vor.u32 1.1754944e-38, %v4465
      %v4467 = vsel %vm4464, %v4466, %v4462
      %v4468 = vmul.f32 1.0, %v4467
      %v4469 = vrcp.pop %v4045
      %v4470 = vmul.f32 %v4045, %v4469
      %v4471 = vsub.f32 1.0, %v4470
      %v4472 = vmul.f32 %v4469, %v4471
      %v4473 = vadd.f32 %v4469, %v4472
      %vm4474 = vweird.f32 %v4045
      %vm4475 = vweird.f32 %v4469
      %vm4476 = vmor %vm4474, %vm4475
      %v4477 = vsel %vm4476, %v4469, %v4473
      %v4478 = vand.u32 2147483647, %v4045
      %vm4479 = vcmp.eq.f32.partialorder %v4478, 8.507059e+37
      %v4480 = vand.u32 %v4045, 2147483648
      %v4481 = vor.u32 1.1754944e-38, %v4480
      %v4482 = vsel %vm4479, %v4481, %v4477
      %v4483 = vmul.f32 1.0, %v4482
      %v4484 = vrcp.pop %v4046
      %v4485 = vmul.f32 %v4046, %v4484
      %v4486 = vsub.f32 1.0, %v4485
      %v4487 = vmul.f32 %v4484, %v4486
      %v4488 = vadd.f32 %v4484, %v4487
      %vm4489 = vweird.f32 %v4046
      %vm4490 = vweird.f32 %v4484
      %vm4491 = vmor %vm4489, %vm4490
      %v4492 = vsel %vm4491, %v4484, %v4488
      %v4493 = vand.u32 2147483647, %v4046
      %vm4494 = vcmp.eq.f32.partialorder %v4493, 8.507059e+37
      %v4495 = vand.u32 %v4046, 2147483648
      %v4496 = vor.u32 1.1754944e-38, %v4495
      %v4497 = vsel %vm4494, %v4496, %v4492
      %v4498 = vmul.f32 1.0, %v4497
      %v4499 = vrcp.pop %v4047
      %v4500 = vmul.f32 %v4047, %v4499
      %v4501 = vsub.f32 1.0, %v4500
      %v4502 = vmul.f32 %v4499, %v4501
      %v4503 = vadd.f32 %v4499, %v4502
      %vm4504 = vweird.f32 %v4047
      %vm4505 = vweird.f32 %v4499
      %vm4506 = vmor %vm4504, %vm4505
      %v4507 = vsel %vm4506, %v4499, %v4503
      %v4508 = vand.u32 2147483647, %v4047
      %vm4509 = vcmp.eq.f32.partialorder %v4508, 8.507059e+37
      %v4510 = vand.u32 %v4047, 2147483648
      %v4511 = vor.u32 1.1754944e-38, %v4510
      %v4512 = vsel %vm4509, %v4511, %v4507
      %v4513 = vmul.f32 1.0, %v4512
      %v4514 = vrcp.pop %v4048
      %v4515 = vmul.f32 %v4048, %v4514
      %v4516 = vsub.f32 1.0, %v4515
      %v4517 = vmul.f32 %v4514, %v4516
      %v4518 = vadd.f32 %v4514, %v4517
      %vm4519 = vweird.f32 %v4048
      %vm4520 = vweird.f32 %v4514
      %vm4521 = vmor %vm4519, %vm4520
      %v4522 = vsel %vm4521, %v4514, %v4518
      %v4523 = vand.u32 2147483647, %v4048
      %vm4524 = vcmp.eq.f32.partialorder %v4523, 8.507059e+37
      %v4525 = vand.u32 %v4048, 2147483648
      %v4526 = vor.u32 1.1754944e-38, %v4525
      %v4527 = vsel %vm4524, %v4526, %v4522
      %v4528 = vmul.f32 1.0, %v4527
      %vm4529 = vcmask 7168
      %4530 = vst.msk [vmem:[%s143] sm:$0xff] %vm4529, %v4063
      %4531 = vst.msk [vmem:[%s143 + $0x8] sm:$0xff] %vm4529, %v4078
      %4532 = vst.msk [vmem:[%s143 + $0x10] sm:$0xff] %vm4529, %v4093
      %4533 = vst.msk [vmem:[%s143 + $0x18] sm:$0xff] %vm4529, %v4108
      %4534 = vst.msk [vmem:[%s143 + $0x20] sm:$0xff] %vm4529, %v4123
      %4535 = vst.msk [vmem:[%s143 + $0x28] sm:$0xff] %vm4529, %v4138
      %4536 = vst.msk [vmem:[%s143 + $0x30] sm:$0xff] %vm4529, %v4153
      %4537 = vst.msk [vmem:[%s143 + $0x38] sm:$0xff] %vm4529, %v4168
      %4538 = vst.msk [vmem:[%s143 + $0x40] sm:$0xff] %vm4529, %v4183
      %4539 = vst.msk [vmem:[%s143 + $0x48] sm:$0xff] %vm4529, %v4198
      %4540 = vst.msk [vmem:[%s143 + $0x50] sm:$0xff] %vm4529, %v4213
      %4541 = vst.msk [vmem:[%s143 + $0x58] sm:$0xff] %vm4529, %v4228
      %4542 = vst.msk [vmem:[%s143 + $0x60] sm:$0xff] %vm4529, %v4243
      %4543 = vst.msk [vmem:[%s143 + $0x68] sm:$0xff] %vm4529, %v4258
      %4544 = vst.msk [vmem:[%s143 + $0x70] sm:$0xff] %vm4529, %v4273
      %4545 = vst.msk [vmem:[%s143 + $0x78] sm:$0xff] %vm4529, %v4288
      %4546 = vst.msk [vmem:[%s143 + $0x80] sm:$0xff] %vm4529, %v4303
      %4547 = vst.msk [vmem:[%s143 + $0x88] sm:$0xff] %vm4529, %v4318
      %4548 = vst.msk [vmem:[%s143 + $0x90] sm:$0xff] %vm4529, %v4333
      %4549 = vst.msk [vmem:[%s143 + $0x98] sm:$0xff] %vm4529, %v4348
      %4550 = vst.msk [vmem:[%s143 + $0xa0] sm:$0xff] %vm4529, %v4363
      %4551 = vst.msk [vmem:[%s143 + $0xa8] sm:$0xff] %vm4529, %v4378
      %4552 = vst.msk [vmem:[%s143 + $0xb0] sm:$0xff] %vm4529, %v4393
      %4553 = vst.msk [vmem:[%s143 + $0xb8] sm:$0xff] %vm4529, %v4408
      %4554 = vst.msk [vmem:[%s143 + $0xc0] sm:$0xff] %vm4529, %v4423
      %4555 = vst.msk [vmem:[%s143 + $0xc8] sm:$0xff] %vm4529, %v4438
      %4556 = vst.msk [vmem:[%s143 + $0xd0] sm:$0xff] %vm4529, %v4453
      %4557 = vst.msk [vmem:[%s143 + $0xd8] sm:$0xff] %vm4529, %v4468
      %4558 = vst.msk [vmem:[%s143 + $0xe0] sm:$0xff] %vm4529, %v4483
      %4559 = vst.msk [vmem:[%s143 + $0xe8] sm:$0xff] %vm4529, %v4498
      %4560 = vst.msk [vmem:[%s143 + $0xf0] sm:$0xff] %vm4529, %v4513
      %4561 = vst.msk [vmem:[%s143 + $0xf8] sm:$0xff] %vm4529, %v4528
      %p4562 = scmp.lt.s32.totalorder %s13, 1
      %s4563 = scalar_select %p4562, %s13, 1
      %s4564 = smul.addr %s4563, 32
      %s4565 = smul.addr %s4564, 8
      %s4566 = scalar_lea.vmem %s2, %s4565
      // Predicated region
      $region29: #{tpu_custom_call.1} parent=27 // pred_check
        %p4567 = pneg %p78
      $region30: #{tpu_custom_call.1} parent=27 // pred_check_branch
        %4569 = sbr.rel (%p4567) target = $region32
      $region31: #{tpu_custom_call.1} parent=27 // pred_region
        _
      $region32: #{tpu_custom_call.1} parent=27 // pred_fallthru
        _
    $region28: #{tpu_custom_call.1} parent=5 // pred_fallthru
      _
    %p4570 = scmp.le.s32.totalorder 2, %s8
    // Predicated region
    $region33: #{tpu_custom_call.1} parent=5 // pred_check
      %p4571 = pneg %p4570
    $region34: #{tpu_custom_call.1} parent=5 // pred_check_branch
      %4573 = sbr.rel (%p4571) target = $region36
    $region35: #{tpu_custom_call.1} parent=5 // pred_region
      %s4574 = ssub.s32 %s8, 2
      // Predicated region
      $region37: #{tpu_custom_call.1} parent=35 // pred_check
        %p4575 = pneg %p84
      $region38: #{tpu_custom_call.1} parent=35 // pred_check_branch
        %4577 = sbr.rel (%p4575) target = $region40
      $region39: #{tpu_custom_call.1} parent=35 // pred_region
        %p4578 = scmp.lt.s32.totalorder %s14, 1
        %s4579 = scalar_select %p4578, %s14, 1
        %s4580 = smul.addr %s4579, 32
        %s4581 = smul.addr %s4580, 8
        %s4582 = scalar_lea.vmem %s2, %s4581
      $region40: #{tpu_custom_call.1} parent=35 // pred_fallthru
        _
    $region36: #{tpu_custom_call.1} parent=5 // pred_fallthru
      _
  $region6: #{tpu_custom_call.1} parent=0 // loop_footer
    %s12 = sadd.s32 1, %s8
  $region7: #{tpu_custom_call.1} parent=0 // loop_footer_branch
    %7 = sbr.rel target = $region3
  $region8: #{tpu_custom_call.1} parent=0 // loop_exit
    _

</llo_original>
